<compile_context>
chip_gen: v6e
topology: v6e:2x2x1
jax: 0.10.0
libtpu: 0.0.40
codegen_flags: <defaults>
</compile_context>

<pallas_src>
import functools
import math

import jax
import jax.numpy as jnp
from jax.experimental import pallas as pl
from jax.experimental.pallas import tpu as pltpu

LN_EPS = 1e-5  # matches torch.nn.LayerNorm default


def _layernorm(x, gamma, beta):
    mean = jnp.mean(x, axis=-1, keepdims=True)
    var = jnp.mean((x - mean) ** 2, axis=-1, keepdims=True)
    return (x - mean) * jax.lax.rsqrt(var + LN_EPS) * gamma + beta


def _rel_width(seq_len):
    """Lane-dense (multiple of 128) width holding the 2*T-1 relative positions."""
    return ((2 * seq_len - 1 + 127) // 128) * 128


# ----------------------------------------------------------------------------
# Skewing trick: given M[i, c] = <q_i, R_c> with c = (T-1) + (j - i), produce
# S_rel[i, j] = M[i, (T-1) + j - i].  Three implementations, probed at runtime.
# ----------------------------------------------------------------------------
def _skew_roll(m, seq_len):
    """Per-row lane rotation on the XLU (preferred; scales to long sequences)."""
    w = m.shape[-1]                       # padded relative width (>= 2*seq_len-1)
    shift = w - (seq_len - 1)             # shift for row i is  shift + i  (mod w)
    rolled = pltpu.roll(m, shift, 1, stride=1, stride_axis=0)
    return rolled[:, :seq_len]


def _skew_reshape(m, seq_len):
    """Classic Music-Transformer pad-and-reshape skew (exact, no strided roll)."""
    T = seq_len
    m = m[:, :2 * T - 1]                          # drop lane padding
    mp = jnp.pad(m, ((0, 0), (1, 0)))             # (T, 2T)
    s = mp.reshape(2 * T, T)[1:, :].reshape(T, 2 * T - 1)
    return s[:, :T]


def _skew_masked(m, seq_len):
    """Last-resort O(T) full-tile VPU fallback; only acceptable at tiny T."""
    L = seq_len
    row = jax.lax.broadcasted_iota(jnp.int32, (L, L), 0)
    col = jax.lax.broadcasted_iota(jnp.int32, (L, L), 1)
    idx = (L - 1) + col - row
    out = jnp.zeros((L, L), m.dtype)
    for c in range(2 * L - 1):
        out = out + jnp.where(idx == c, m[:, c:c + 1], 0.0)
    return out


def _probe_skew(skew_fn, seq_len):
    """Runtime probe: check the skew lowers with the expected semantics at the
    exact (T, padded-rel-width) shape used by the decoder kernel."""
    wpad = _rel_width(seq_len)

    def probe_kernel(m_ref, o_ref):
        o_ref[...] = skew_fn(m_ref[...], seq_len)

    m = (jnp.arange(seq_len, dtype=jnp.float32)[:, None] * 1000.0
         + jnp.arange(wpad, dtype=jnp.float32)[None, :])
    ii = jnp.arange(seq_len)[:, None]
    jj = jnp.arange(seq_len)[None, :]
    expected = m[ii, (seq_len - 1) + jj - ii]
    try:
        out = pl.pallas_call(
            probe_kernel,
            out_shape=jax.ShapeDtypeStruct((seq_len, seq_len), jnp.float32),
        )(m)
        out = jax.block_until_ready(out)
        return bool(jnp.allclose(out, expected))
    except Exception:
        return False


def select_skew(seq_len):
    for fn in (_skew_roll, _skew_reshape):
        if _probe_skew(fn, seq_len):
            return fn
    # TODO(synk): masked fallback is O(T^3) VPU work — tiny-T safety net only.
    return _skew_masked


# ----------------------------------------------------------------------------
# Fused decoder-stack kernel: grid = (batch, layer).  The residual stream stays
# resident in the revisited output block across the layer axis; per-layer
# weights are pipeline-prefetched via their leading layer dim.
# ----------------------------------------------------------------------------
def decoder_stack_kernel(x_ref, ln1g_ref, ln1b_ref, wqkv_ref, rel_ref, wpT_ref,
                         bp_ref, ln2g_ref, ln2b_ref, w1T_ref, b1_ref, w2T_ref,
                         b2_ref, out_ref, *, n_head, head_size, seq_len, skew_fn):
    l = pl.program_id(1)
    T, hs = seq_len, head_size
    E = n_head * hs
    wpad = _rel_width(T)

    # Layer input: token+pos embedding at l == 0, previous layer's output
    # (kept resident in the revisited VMEM output block) for l > 0.
    @pl.when(l == 0)
    def _():
        out_ref[0] = x_ref[0]

    x = out_ref[0]                                            # (T, E) f32

    # --- multi-head relative self-attention on LN1(x) ---
    xn = _layernorm(x, ln1g_ref[0], ln1b_ref[0])
    qkv = jnp.dot(xn.astype(jnp.bfloat16), wqkv_ref[0],
                  preferred_element_type=jnp.float32)         # (T, 3E) f32
    qkv_b = qkv.astype(jnp.bfloat16)                          # single lane-dense cast

    scale = 1.0 / math.sqrt(hs)
    row = jax.lax.broadcasted_iota(jnp.int32, (T, T), 0)
    col = jax.lax.broadcasted_iota(jnp.int32, (T, T), 1)
    causal = row >= col
    neg_inf = jnp.float32(-jnp.inf)

    outs = []
    for h in range(n_head):                                   # small static head loop
        qb = qkv_b[:, h * hs:(h + 1) * hs]
        kb = qkv_b[:, E + h * hs:E + (h + 1) * hs]
        vb = qkv_b[:, 2 * E + h * hs:2 * E + (h + 1) * hs]

        # Fused relative + content scores: one NT dot_general per head against
        # [rel_emb_sel ; K]  (rel part first so both result slices start at a
        # lane offset that is a multiple of 128).  No explicit K transpose.
        rhs = jnp.concatenate([rel_ref[0, h], kb], axis=0)    # (Wp + T, hs)
        fused = jax.lax.dot_general(
            qb, rhs, dimension_numbers=(((1,), (1,)), ((), ())),
            preferred_element_type=jnp.float32)               # (T, Wp + T)

        m_rel = fused[:, :wpad]                               # (T, Wp)
        scores = fused[:, wpad:] * scale + skew_fn(m_rel, T)  # QK^T scaled, S_rel not

        # causal mask + softmax (diagonal always unmasked -> no NaN rows)
        scores = jnp.where(causal, scores, neg_inf)
        scores = scores - jnp.max(scores, axis=-1, keepdims=True)
        p = jnp.exp(scores)
        # NOTE: approx reciprocal (~1e-3 rel err) is fine for inference only.
        wei = p * pl.reciprocal(jnp.sum(p, axis=-1, keepdims=True), approx=True)

        outs.append(jnp.dot(wei.astype(jnp.bfloat16), vb,
                            preferred_element_type=jnp.float32))   # (T, hs)

    # concat heads as a value (no VMEM scratch / masked column stores) + proj
    attn = jnp.dot(jnp.concatenate(outs, axis=-1).astype(jnp.bfloat16),
                   wpT_ref[0], preferred_element_type=jnp.float32) + bp_ref[0]
    x1 = x + attn

    # --- feed-forward on LN2(x1) ---
    xn2 = _layernorm(x1, ln2g_ref[0], ln2b_ref[0])
    h1 = jnp.maximum(
        jnp.dot(xn2.astype(jnp.bfloat16), w1T_ref[0],
                preferred_element_type=jnp.float32) + b1_ref[0], 0.0)
    ffn = jnp.dot(h1.astype(jnp.bfloat16), w2T_ref[0],
                  preferred_element_type=jnp.float32) + b2_ref[0]

    out_ref[0] = x1 + ffn


# ----------------------------------------------------------------------------
# Final LayerNorm + LM head kernel (tiled over the vocab axis)
# ----------------------------------------------------------------------------
def lm_head_kernel(x_ref, lng_ref, lnb_ref, wlmT_ref, blm_ref, out_ref):
    xn = _layernorm(x_ref[0], lng_ref[...], lnb_ref[...])
    out_ref[0] = jnp.dot(xn.astype(jnp.bfloat16), wlmT_ref[...],
                         preferred_element_type=jnp.float32) + blm_ref[...]


# ----------------------------------------------------------------------------
# pallas_call wrappers
# ----------------------------------------------------------------------------
def _full_spec(a):
    nd = a.ndim
    return pl.BlockSpec(a.shape, lambda *_, _nd=nd: (0,) * _nd)


def _per_layer_spec(a):
    """Block over the leading layer axis; last two dims stay full (lane-dense)."""
    nd = a.ndim
    return pl.BlockSpec((1,) + a.shape[1:],
                        lambda b, l, _nd=nd: (l,) + (0,) * (_nd - 1))


def decoder_stack(x, kp, n_head, skew_fn):
    B, T, E = x.shape
    n_layer = kp["wqkv"].shape[0]
    hs = E // n_head
    weights = (kp["ln1g"], kp["ln1b"], kp["wqkv"], kp["rel"], kp["wpT"], kp["bp"],
               kp["ln2g"], kp["ln2b"], kp["w1T"], kp["b1"], kp["w2T"], kp["b2"])
    in_specs = [pl.BlockSpec((1, T, E), lambda b, l: (b, 0, 0))] + \
               [_per_layer_spec(w) for w in weights]
    out_spec = pl.BlockSpec((1, T, E), lambda b, l: (b, 0, 0))
    kernel = functools.partial(decoder_stack_kernel, n_head=n_head, head_size=hs,
                               seq_len=T, skew_fn=skew_fn)
    return pl.pallas_call(
        kernel,
        grid=(B, n_layer),
        in_specs=in_specs,
        out_specs=out_spec,
        out_shape=jax.ShapeDtypeStruct((B, T, E), jnp.float32),
        compiler_params=pltpu.CompilerParams(
            # batch axis independent (megacore), layer axis carries the stream
            dimension_semantics=("parallel", "arbitrary")),
    )(x, *weights)


def _pick_vocab_tile(V):
    # Larger lane-dense tiles amortize per-grid-step overhead and the per-tile
    # LayerNorm recompute; (E, tv) bf16 tile + double buffering stays well
    # under the v7x 64 MiB VMEM budget at realistic E.
    for tv in (2048, 1024, 512, 256, 128):
        if V % tv == 0:
            return tv
    return V  # small / irregular vocab: use the full axis


def lm_head(x, kp):
    B, T, E = x.shape
    V = kp["wlmT"].shape[1]
    tv = _pick_vocab_tile(V)
    nv = V // tv
    in_specs = [
        pl.BlockSpec((1, T, E), lambda b, v: (b, 0, 0)),
        _full_spec(kp["lnfg"]),
        _full_spec(kp["lnfb"]),
        pl.BlockSpec((E, tv), lambda b, v: (0, v)),
        pl.BlockSpec((tv,), lambda b, v: (v,)),
    ]
    out_spec = pl.BlockSpec((1, T, tv), lambda b, v: (b, 0, v))
    return pl.pallas_call(
        lm_head_kernel,
        grid=(B, nv),
        in_specs=in_specs,
        out_specs=out_spec,
        out_shape=jax.ShapeDtypeStruct((B, T, V), jnp.float32),
        compiler_params=pltpu.CompilerParams(
            dimension_semantics=("parallel", "parallel")),
    )(x, kp["lnfg"], kp["lnfb"], kp["wlmT"], kp["blm"])


# ----------------------------------------------------------------------------
# Deterministic parameter init (synthetic; matches module shapes).  Weights are
# stored pre-transposed (in_features, out_features) so everything is x @ W.
# ----------------------------------------------------------------------------
def init_params(key, vocab, E, H, n_layer, max_len):
    hs = E // H
    keys = jax.random.split(key, 4 + n_layer)

    def nrm(k, shape, scale=0.02):
        return scale * jax.random.normal(k, shape, jnp.float32)

    params = {
        "tok_emb": nrm(keys[0], (vocab, E)),
        "pos_emb": jnp.zeros((1, max_len, E), jnp.float32),   # torch init: zeros
        "lnfg": jnp.ones((E,), jnp.float32),
        "lnfb": jnp.zeros((E,), jnp.float32),
        "wlmT": nrm(keys[1], (E, vocab)),
        "blm": nrm(keys[2], (vocab,)),
        "blocks": [],
    }
    for l in range(n_layer):
        bk = jax.random.split(keys[4 + l], 10)
        params["blocks"].append(dict(
            ln1g=jnp.ones((E,), jnp.float32), ln1b=jnp.zeros((E,), jnp.float32),
            wq=nrm(bk[0], (H, E, hs)), wk=nrm(bk[1], (H, E, hs)), wv=nrm(bk[2], (H, E, hs)),
            rel_emb=nrm(bk[3], (H, 2 * max_len - 1, hs)),
            wpT=nrm(bk[4], (E, E)), bp=nrm(bk[5], (E,)),
            ln2g=jnp.ones((E,), jnp.float32), ln2b=jnp.zeros((E,), jnp.float32),
            w1T=nrm(bk[6], (E, 4 * E)), b1=nrm(bk[7], (4 * E,)),
            w2T=nrm(bk[8], (4 * E, E)), b2=nrm(bk[9], (E,)),
        ))
    return params


def prepare_params(params, seq_len, n_head):
    """One-time re-layout of the canonical f32 params into the fused bf16 kernel
    layout (stacked over layers).  Hoisted out of the forward pass — purely
    static for inference at a fixed sequence length."""
    E = params["tok_emb"].shape[1]
    max_len = params["pos_emb"].shape[1]
    hs = E // n_head
    wpad = _rel_width(seq_len)

    def fuse(w):  # (H, E, hs) -> (E, H*hs), column block h == head h
        return jnp.transpose(w, (1, 0, 2)).reshape(E, n_head * hs)

    names = ("ln1g", "ln1b", "wqkv", "rel", "wpT", "bp",
             "ln2g", "ln2b", "w1T", "b1", "w2T", "b2")
    stk = {k: [] for k in names}
    for blk in params["blocks"]:
        stk["ln1g"].append(blk["ln1g"]); stk["ln1b"].append(blk["ln1b"])
        stk["wqkv"].append(jnp.concatenate(
            [fuse(blk["wq"]), fuse(blk["wk"]), fuse(blk["wv"])], axis=1))   # (E, 3E)
        # rel_sel[h, c] = rel_emb[h, (max_len-1) + (c - (T-1))], c = 0 .. 2T-2
        rel_sel = blk["rel_emb"][:, max_len - seq_len:max_len - 1 + seq_len, :]
        stk["rel"].append(jnp.pad(
            rel_sel, ((0, 0), (0, wpad - (2 * seq_len - 1)), (0, 0))))      # (H, Wp, hs)
        stk["wpT"].append(blk["wpT"]); stk["bp"].append(blk["bp"])
        stk["ln2g"].append(blk["ln2g"]); stk["ln2b"].append(blk["ln2b"])
        stk["w1T"].append(blk["w1T"]); stk["b1"].append(blk["b1"])
        stk["w2T"].append(blk["w2T"]); stk["b2"].append(blk["b2"])

    def stack_vec(xs):  # per-layer vectors -> (L, 1, width): lane-dense 2-D blocks
        return jnp.stack(xs)[:, None, :]

    return dict(
        tok_emb=params["tok_emb"], pos_emb=params["pos_emb"],
        ln1g=stack_vec(stk["ln1g"]), ln1b=stack_vec(stk["ln1b"]),
        wqkv=jnp.stack(stk["wqkv"]).astype(jnp.bfloat16),     # (L, E, 3E)
        rel=jnp.stack(stk["rel"]).astype(jnp.bfloat16),       # (L, H, Wp, hs)
        wpT=jnp.stack(stk["wpT"]).astype(jnp.bfloat16),       # (L, E, E)
        bp=stack_vec(stk["bp"]),
        ln2g=stack_vec(stk["ln2g"]), ln2b=stack_vec(stk["ln2b"]),
        w1T=jnp.stack(stk["w1T"]).astype(jnp.bfloat16),       # (L, E, 4E)
        b1=stack_vec(stk["b1"]),
        w2T=jnp.stack(stk["w2T"]).astype(jnp.bfloat16),       # (L, 4E, E)
        b2=stack_vec(stk["b2"]),
        lnfg=params["lnfg"], lnfb=params["lnfb"],
        wlmT=params["wlmT"].astype(jnp.bfloat16), blm=params["blm"],
    )


# ----------------------------------------------------------------------------
# Full forward pass (Pallas) and pure-JAX reference (f32, follows the module)
# ----------------------------------------------------------------------------
def music_transformer_forward(kp, tokens, n_head, skew_fn):
    B, T = tokens.shape
    # glue: embedding gather + positional embedding (dropout is identity)
    x = (kp["tok_emb"][tokens] + kp["pos_emb"][:, :T, :]).astype(jnp.float32)
    x = decoder_stack(x, kp, n_head, skew_fn)
    return lm_head(x, kp)


def reference_forward(params, tokens, n_head, max_len):
    B, T = tokens.shape
    E = params["tok_emb"].shape[1]
    hs = E // n_head
    x = params["tok_emb"][tokens] + params["pos_emb"][:, :T, :]
    ii = jnp.arange(T)[:, None]
    jj = jnp.arange(T)[None, :]
    idx = (T - 1) + jj - ii
    for blk in params["blocks"]:
        xn = _layernorm(x, blk["ln1g"], blk["ln1b"])
        outs = []
        for h in range(n_head):
            q = xn @ blk["wq"][h]
            k = xn @ blk["wk"][h]
            v = xn @ blk["wv"][h]
            scores = jnp.einsum("btd,bsd->bts", q, k) / math.sqrt(hs)
            rel_sel = blk["rel_emb"][h, max_len - T:max_len - 1 + T, :]
            M = jnp.einsum("btd,cd->btc", q, rel_sel)
            s_rel = jnp.take_along_axis(M, jnp.broadcast_to(idx, (B, T, T)), axis=2)
            scores = scores + s_rel
            scores = jnp.where(jj <= ii, scores, -jnp.inf)
            wei = jax.nn.softmax(scores, axis=-1)
            outs.append(jnp.einsum("bts,bsd->btd", wei, v))
        attn = jnp.concatenate(outs, axis=-1) @ blk["wpT"] + blk["bp"]
        x = x + attn
        xn2 = _layernorm(x, blk["ln2g"], blk["ln2b"])
        ffn = jnp.maximum(xn2 @ blk["w1T"] + blk["b1"], 0.0) @ blk["w2T"] + blk["b2"]
        x = x + ffn
    xn = _layernorm(x, params["lnfg"], params["lnfb"])
    return xn @ params["wlmT"] + params["blm"]


if __name__ == "__main__":
    vocab_size, n_embd, n_head, n_layer, max_len = 64, 32, 4, 2, 16
    dropout = 0.0   # inference: all Dropout layers are identity
    B, T = 2, 8

    key = jax.random.PRNGKey(0)
    pkey, dkey = jax.random.split(key)
    params = init_params(pkey, vocab_size, n_embd, n_head, n_layer, max_len)
    tokens = jax.random.randint(dkey, (B, T), 0, vocab_size, dtype=jnp.int32)

    # Pick the fastest in-kernel skew that lowers correctly on this build:
    # strided pltpu.roll -> pad/reshape -> masked (tiny-T only).  The probe is
    # parameterized on T, so re-running it covers any production shape change.
    skew_fn = select_skew(T)

    # One-time weight re-layout (hoisted out of the forward pass).
    kp = prepare_params(params, T, n_head)

    logits = music_transformer_forward(kp, tokens, n_head, skew_fn)
    logits = jax.block_until_ready(logits)

    assert logits.shape == (B, T, vocab_size), logits.shape
    assert bool(jnp.all(jnp.isfinite(logits)))

    # correctness check against a pure-JAX f32 reference (kernel uses bf16 MXU
    # operands + approx reciprocal, so allow a small tolerance)
    ref = reference_forward(params, tokens, n_head, max_len)
    max_err = float(jnp.max(jnp.abs(logits - ref)))
    assert max_err < 3e-2, f"max abs error vs reference: {max_err}"

    print("KERNEL_OK")
</pallas_src>

<mosaic_0001>
module attributes {stable_mosaic.version = 11 : i64} {
  func.func @probe_kernel(%arg0: memref<8x128xf32, #tpu.memory_space<vmem>>, %arg1: memref<8x8xf32, #tpu.memory_space<vmem>>) attributes {dimension_semantics = [], scalar_prefetch = 0 : i64, scratch_operands = 0 : i64, tpu.core_type = #tpu.core_type<tc>} {
    %c0 = arith.constant 0 : index
    %c0_0 = arith.constant 0 : index
    %0 = vector.load %arg0[%c0, %c0_0] : memref<8x128xf32, #tpu.memory_space<vmem>>, vector<8x128xf32>
    %c121_i32 = arith.constant 121 : i32
    %1 = tpu.dynamic_rotate %0 by %c121_i32 dim 1 {stride = 1 : si32, stride_dimension = 0 : si32} : vector<8x128xf32>, i32 -> vector<8x128xf32>
    %2 = vector.extract_strided_slice %1 {offsets = [0, 0], sizes = [8, 8], strides = [1, 1]} : vector<8x128xf32> to vector<8x8xf32>
    %c0_1 = arith.constant 0 : index
    %c0_2 = arith.constant 0 : index
    %3 = vector.load %arg1[%c0_1, %c0_2] : memref<8x8xf32, #tpu.memory_space<vmem>>, vector<8x8xf32>
    tpu.vector_store %arg1[%c0_1, %c0_2], %2 {strides = array<i32>} : memref<8x8xf32, #tpu.memory_space<vmem>>, vector<8x8xf32>,
    return
  }
}

module attributes {stable_mosaic.version = 11 : i64} {
  func.func @probe_kernel(%arg0: memref<8x128xf32, #tpu.memory_space<vmem>>, %arg1: memref<8x8xf32, #tpu.memory_space<vmem>>) attributes {dimension_semantics = [], scalar_prefetch = 0 : i64, scratch_operands = 0 : i64, tpu.core_type = #tpu.core_type<tc>} {
    %c0 = arith.constant 0 : index
    %c0_0 = arith.constant 0 : index
    %0 = vector.load %arg0[%c0, %c0_0] : memref<8x128xf32, #tpu.memory_space<vmem>>, vector<8x128xf32>
    %1 = vector.extract_strided_slice %0 {offsets = [0, 0], sizes = [8, 15], strides = [1, 1]} : vector<8x128xf32> to vector<8x15xf32>
    %c0_i32 = arith.constant 0 : i32
    %2 = arith.sitofp %c0_i32 : i32 to f32
    %3 = vector.broadcast %2 : f32 to vector<8x1xf32>
    %4 = tpu.concatenate %3, %1 in 1 : vector<8x1xf32>, vector<8x15xf32> -> vector<8x16xf32>
    %5 = vector.shape_cast %4 : vector<8x16xf32> to vector<16x8xf32>
    %6 = vector.extract_strided_slice %5 {offsets = [1, 0], sizes = [15, 8], strides = [1, 1]} : vector<16x8xf32> to vector<15x8xf32>
    %7 = vector.shape_cast %6 : vector<15x8xf32> to vector<8x15xf32>
    %8 = vector.extract_strided_slice %7 {offsets = [0, 0], sizes = [8, 8], strides = [1, 1]} : vector<8x15xf32> to vector<8x8xf32>
    %c0_1 = arith.constant 0 : index
    %c0_2 = arith.constant 0 : index
    %9 = vector.load %arg1[%c0_1, %c0_2] : memref<8x8xf32, #tpu.memory_space<vmem>>, vector<8x8xf32>
    tpu.vector_store %arg1[%c0_1, %c0_2], %8 {strides = array<i32>} : memref<8x8xf32, #tpu.memory_space<vmem>>, vector<8x8xf32>,
    return
  }
}

module attributes {stable_mosaic.version = 11 : i64} {
  func.func @decoder_stack_kernel(%arg0: i32, %arg1: i32, %arg2: memref<1x8x32xf32, #tpu.memory_space<vmem>>, %arg3: memref<1x1x32xf32, #tpu.memory_space<vmem>>, %arg4: memref<1x1x32xf32, #tpu.memory_space<vmem>>, %arg5: memref<1x32x96xbf16, #tpu.memory_space<vmem>>, %arg6: memref<1x4x128x8xbf16, #tpu.memory_space<vmem>>, %arg7: memref<1x32x32xbf16, #tpu.memory_space<vmem>>, %arg8: memref<1x1x32xf32, #tpu.memory_space<vmem>>, %arg9: memref<1x1x32xf32, #tpu.memory_space<vmem>>, %arg10: memref<1x1x32xf32, #tpu.memory_space<vmem>>, %arg11: memref<1x32x128xbf16, #tpu.memory_space<vmem>>, %arg12: memref<1x1x128xf32, #tpu.memory_space<vmem>>, %arg13: memref<1x128x32xbf16, #tpu.memory_space<vmem>>, %arg14: memref<1x1x32xf32, #tpu.memory_space<vmem>>, %arg15: memref<1x8x32xf32, #tpu.memory_space<vmem>>) attributes {dimension_semantics = [#tpu.dimension_semantics<parallel>, #tpu.dimension_semantics<arbitrary>], iteration_bounds = array<i64: 2, 2>, scalar_prefetch = 0 : i64, scratch_operands = 0 : i64, tpu.core_type = #tpu.core_type<tc>, window_params = [{transform_indices = @transform_0, window_bounds = array<i64: 1, 8, 32>}, {transform_indices = @transform_1, window_bounds = array<i64: 1, 1, 32>}, {transform_indices = @transform_2, window_bounds = array<i64: 1, 1, 32>}, {transform_indices = @transform_3, window_bounds = array<i64: 1, 32, 96>}, {transform_indices = @transform_4, window_bounds = array<i64: 1, 4, 128, 8>}, {transform_indices = @transform_5, window_bounds = array<i64: 1, 32, 32>}, {transform_indices = @transform_6, window_bounds = array<i64: 1, 1, 32>}, {transform_indices = @transform_7, window_bounds = array<i64: 1, 1, 32>}, {transform_indices = @transform_8, window_bounds = array<i64: 1, 1, 32>}, {transform_indices = @transform_9, window_bounds = array<i64: 1, 32, 128>}, {transform_indices = @transform_10, window_bounds = array<i64: 1, 1, 128>}, {transform_indices = @transform_11, window_bounds = array<i64: 1, 128, 32>}, {transform_indices = @transform_12, window_bounds = array<i64: 1, 1, 32>}, {transform_indices = @transform_13, window_bounds = array<i64: 1, 8, 32>}]} {
    %c0_i32 = arith.constant 0 : i32
    %0 = arith.cmpi eq, %arg1, %c0_i32 : i32
    %1 = arith.extui %0 : i1 to i32
    %c0_i32_0 = arith.constant 0 : i32
    %2 = arith.cmpi ne, %1, %c0_i32_0 : i32
    scf.if %2 {
      %c0_204 = arith.constant 0 : index
      %c0_205 = arith.constant 0 : index
      %c0_206 = arith.constant 0 : index
      %705 = vector.load %arg2[%c0_204, %c0_205, %c0_206] : memref<1x8x32xf32, #tpu.memory_space<vmem>>, vector<1x8x32xf32>
      %706 = vector.shape_cast %705 : vector<1x8x32xf32> to vector<8x32xf32>
      %c0_207 = arith.constant 0 : index
      %c0_208 = arith.constant 0 : index
      %c0_209 = arith.constant 0 : index
      %707 = vector.load %arg15[%c0_207, %c0_208, %c0_209] : memref<1x8x32xf32, #tpu.memory_space<vmem>>, vector<1x8x32xf32>
      %708 = vector.shape_cast %707 : vector<1x8x32xf32> to vector<8x32xf32>
      %709 = vector.shape_cast %706 : vector<8x32xf32> to vector<1x8x32xf32>
      tpu.vector_store %arg15[%c0_207, %c0_208, %c0_209], %709 {strides = array<i32>} : memref<1x8x32xf32, #tpu.memory_space<vmem>>, vector<1x8x32xf32>,
    } else {
    }
    %c0 = arith.constant 0 : index
    %c0_1 = arith.constant 0 : index
    %c0_2 = arith.constant 0 : index
    %3 = vector.load %arg15[%c0, %c0_1, %c0_2] : memref<1x8x32xf32, #tpu.memory_space<vmem>>, vector<1x8x32xf32>
    %4 = vector.shape_cast %3 : vector<1x8x32xf32> to vector<8x32xf32>
    %c0_3 = arith.constant 0 : index
    %c0_4 = arith.constant 0 : index
    %c0_5 = arith.constant 0 : index
    %5 = vector.load %arg3[%c0_3, %c0_4, %c0_5] : memref<1x1x32xf32, #tpu.memory_space<vmem>>, vector<1x1x32xf32>
    %6 = vector.shape_cast %5 : vector<1x1x32xf32> to vector<1x32xf32>
    %c0_6 = arith.constant 0 : index
    %c0_7 = arith.constant 0 : index
    %c0_8 = arith.constant 0 : index
    %7 = vector.load %arg4[%c0_6, %c0_7, %c0_8] : memref<1x1x32xf32, #tpu.memory_space<vmem>>, vector<1x1x32xf32>
    %8 = vector.shape_cast %7 : vector<1x1x32xf32> to vector<1x32xf32>
    %cst = arith.constant dense<0.000000e+00> : vector<8xf32>
    %9 = vector.multi_reduction <add>, %4, %cst [1] : vector<8x32xf32> to vector<8xf32>
    %10 = vector.shape_cast %9 : vector<8xf32> to vector<8x1xf32>
    %cst_9 = arith.constant 3.200000e+01 : f32
    %11 = vector.broadcast %cst_9 : f32 to vector<8x1xf32>
    %12 = arith.divf %10, %11 : vector<8x1xf32>
    %13 = vector.broadcast %12 : vector<8x1xf32> to vector<8x32xf32>
    %14 = arith.subf %4, %13 : vector<8x32xf32>
    %15 = arith.mulf %14, %14 : vector<8x32xf32>
    %cst_10 = arith.constant dense<0.000000e+00> : vector<8xf32>
    %16 = vector.multi_reduction <add>, %15, %cst_10 [1] : vector<8x32xf32> to vector<8xf32>
    %17 = vector.shape_cast %16 : vector<8xf32> to vector<8x1xf32>
    %cst_11 = arith.constant 3.200000e+01 : f32
    %18 = vector.broadcast %cst_11 : f32 to vector<8x1xf32>
    %19 = arith.divf %17, %18 : vector<8x1xf32>
    %20 = vector.broadcast %12 : vector<8x1xf32> to vector<8x32xf32>
    %21 = arith.subf %4, %20 : vector<8x32xf32>
    %cst_12 = arith.constant 9.99999974E-6 : f32
    %22 = vector.broadcast %cst_12 : f32 to vector<8x1xf32>
    %23 = arith.addf %19, %22 : vector<8x1xf32>
    %24 = math.rsqrt %23 : vector<8x1xf32>
    %25 = vector.broadcast %24 : vector<8x1xf32> to vector<8x32xf32>
    %26 = arith.mulf %21, %25 : vector<8x32xf32>
    %27 = vector.broadcast %6 : vector<1x32xf32> to vector<8x32xf32>
    %28 = arith.mulf %26, %27 : vector<8x32xf32>
    %29 = vector.broadcast %8 : vector<1x32xf32> to vector<8x32xf32>
    %30 = arith.addf %28, %29 : vector<8x32xf32>
    %31 = arith.truncf %30 : vector<8x32xf32> to vector<8x32xbf16>
    %c0_13 = arith.constant 0 : index
    %c0_14 = arith.constant 0 : index
    %c0_15 = arith.constant 0 : index
    %32 = vector.load %arg5[%c0_13, %c0_14, %c0_15] : memref<1x32x96xbf16, #tpu.memory_space<vmem>>, vector<1x32x96xbf16>
    %33 = vector.shape_cast %32 : vector<1x32x96xbf16> to vector<32x96xbf16>
    %cst_16 = arith.constant dense<0.000000e+00> : vector<8x96xf32>
    %34 = tpu.matmul %31, %33, %cst_16 {dimension_numbers = #tpu.dot_dimension_numbers<[1], [0], [0], [1], [0, 0, 1, 1], [], []>} : vector<8x32xbf16>, vector<32x96xbf16>, vector<8x96xf32> -> vector<8x96xf32>
    %35 = arith.truncf %34 : vector<8x96xf32> to vector<8x96xbf16>
    %36 = tpu.iota {dimensions = array<i32: 0>} : vector<8x8xi32>
    %37 = tpu.iota {dimensions = array<i32: 1>} : vector<8x8xi32>
    %38 = arith.cmpi sge, %36, %37 : vector<8x8xi32>
    %39 = vector.extract_strided_slice %35 {offsets = [0, 0], sizes = [8, 8], strides = [1, 1]} : vector<8x96xbf16> to vector<8x8xbf16>
    %40 = vector.extract_strided_slice %35 {offsets = [0, 32], sizes = [8, 8], strides = [1, 1]} : vector<8x96xbf16> to vector<8x8xbf16>
    %41 = vector.extract_strided_slice %35 {offsets = [0, 64], sizes = [8, 8], strides = [1, 1]} : vector<8x96xbf16> to vector<8x8xbf16>
    %c0_17 = arith.constant 0 : index
    %c0_18 = arith.constant 0 : index
    %c0_19 = arith.constant 0 : index
    %c0_20 = arith.constant 0 : index
    %42 = vector.load %arg6[%c0_17, %c0_18, %c0_19, %c0_20] : memref<1x4x128x8xbf16, #tpu.memory_space<vmem>>, vector<1x1x128x8xbf16>
    %43 = vector.shape_cast %42 : vector<1x1x128x8xbf16> to vector<128x8xbf16>
    %44 = tpu.concatenate %43, %40 in 0 : vector<128x8xbf16>, vector<8x8xbf16> -> vector<136x8xbf16>
    %cst_21 = arith.constant dense<0.000000e+00> : vector<8x136xf32>
    %45 = tpu.matmul %39, %44, %cst_21 {dimension_numbers = #tpu.dot_dimension_numbers<[1], [1], [0], [0], [0, 0, 1, 0], [], []>} : vector<8x8xbf16>, vector<136x8xbf16>, vector<8x136xf32> -> vector<8x136xf32>
    %46 = vector.extract_strided_slice %45 {offsets = [0, 0], sizes = [8, 128], strides = [1, 1]} : vector<8x136xf32> to vector<8x128xf32>
    %47 = vector.extract_strided_slice %45 {offsets = [0, 128], sizes = [8, 8], strides = [1, 1]} : vector<8x136xf32> to vector<8x8xf32>
    %cst_22 = arith.constant 0.353553385 : f32
    %48 = vector.broadcast %cst_22 : f32 to vector<8x8xf32>
    %49 = arith.mulf %47, %48 : vector<8x8xf32>
    %50 = tpu.iota {dimensions = array<i32: 0>} : vector<8x8xi32>
    %51 = tpu.iota {dimensions = array<i32: 1>} : vector<8x8xi32>
    %c7_i32 = arith.constant 7 : i32
    %52 = vector.broadcast %c7_i32 : i32 to vector<8x8xi32>
    %53 = arith.addi %52, %51 : vector<8x8xi32>
    %54 = arith.subi %53, %50 : vector<8x8xi32>
    %cst_23 = arith.constant 0.000000e+00 : f32
    %55 = vector.broadcast %cst_23 : f32 to vector<8x8xf32>
    %c0_i32_24 = arith.constant 0 : i32
    %56 = vector.broadcast %c0_i32_24 : i32 to vector<8x8xi32>
    %57 = arith.cmpi eq, %54, %56 : vector<8x8xi32>
    %58 = vector.extract_strided_slice %46 {offsets = [0, 0], sizes = [8, 1], strides = [1, 1]} : vector<8x128xf32> to vector<8x1xf32>
    %cst_25 = arith.constant 0.000000e+00 : f32
    %59 = vector.shape_cast %58 : vector<8x1xf32> to vector<8x1xf32>
    %60 = vector.broadcast %59 : vector<8x1xf32> to vector<8x8xf32>
    %61 = vector.broadcast %cst_25 : f32 to vector<8x8xf32>
    %62 = arith.select %57, %60, %61 : vector<8x8xi1>, vector<8x8xf32>
    %63 = arith.addf %55, %62 : vector<8x8xf32>
    %c1_i32 = arith.constant 1 : i32
    %64 = vector.broadcast %c1_i32 : i32 to vector<8x8xi32>
    %65 = arith.cmpi eq, %54, %64 : vector<8x8xi32>
    %66 = vector.extract_strided_slice %46 {offsets = [0, 1], sizes = [8, 1], strides = [1, 1]} : vector<8x128xf32> to vector<8x1xf32>
    %cst_26 = arith.constant 0.000000e+00 : f32
    %67 = vector.shape_cast %66 : vector<8x1xf32> to vector<8x1xf32>
    %68 = vector.broadcast %67 : vector<8x1xf32> to vector<8x8xf32>
    %69 = vector.broadcast %cst_26 : f32 to vector<8x8xf32>
    %70 = arith.select %65, %68, %69 : vector<8x8xi1>, vector<8x8xf32>
    %71 = arith.addf %63, %70 : vector<8x8xf32>
    %c2_i32 = arith.constant 2 : i32
    %72 = vector.broadcast %c2_i32 : i32 to vector<8x8xi32>
    %73 = arith.cmpi eq, %54, %72 : vector<8x8xi32>
    %74 = vector.extract_strided_slice %46 {offsets = [0, 2], sizes = [8, 1], strides = [1, 1]} : vector<8x128xf32> to vector<8x1xf32>
    %cst_27 = arith.constant 0.000000e+00 : f32
    %75 = vector.shape_cast %74 : vector<8x1xf32> to vector<8x1xf32>
    %76 = vector.broadcast %75 : vector<8x1xf32> to vector<8x8xf32>
    %77 = vector.broadcast %cst_27 : f32 to vector<8x8xf32>
    %78 = arith.select %73, %76, %77 : vector<8x8xi1>, vector<8x8xf32>
    %79 = arith.addf %71, %78 : vector<8x8xf32>
    %c3_i32 = arith.constant 3 : i32
    %80 = vector.broadcast %c3_i32 : i32 to vector<8x8xi32>
    %81 = arith.cmpi eq, %54, %80 : vector<8x8xi32>
    %82 = vector.extract_strided_slice %46 {offsets = [0, 3], sizes = [8, 1], strides = [1, 1]} : vector<8x128xf32> to vector<8x1xf32>
    %cst_28 = arith.constant 0.000000e+00 : f32
    %83 = vector.shape_cast %82 : vector<8x1xf32> to vector<8x1xf32>
    %84 = vector.broadcast %83 : vector<8x1xf32> to vector<8x8xf32>
    %85 = vector.broadcast %cst_28 : f32 to vector<8x8xf32>
    %86 = arith.select %81, %84, %85 : vector<8x8xi1>, vector<8x8xf32>
    %87 = arith.addf %79, %86 : vector<8x8xf32>
    %c4_i32 = arith.constant 4 : i32
    %88 = vector.broadcast %c4_i32 : i32 to vector<8x8xi32>
    %89 = arith.cmpi eq, %54, %88 : vector<8x8xi32>
    %90 = vector.extract_strided_slice %46 {offsets = [0, 4], sizes = [8, 1], strides = [1, 1]} : vector<8x128xf32> to vector<8x1xf32>
    %cst_29 = arith.constant 0.000000e+00 : f32
    %91 = vector.shape_cast %90 : vector<8x1xf32> to vector<8x1xf32>
    %92 = vector.broadcast %91 : vector<8x1xf32> to vector<8x8xf32>
    %93 = vector.broadcast %cst_29 : f32 to vector<8x8xf32>
    %94 = arith.select %89, %92, %93 : vector<8x8xi1>, vector<8x8xf32>
    %95 = arith.addf %87, %94 : vector<8x8xf32>
    %c5_i32 = arith.constant 5 : i32
    %96 = vector.broadcast %c5_i32 : i32 to vector<8x8xi32>
    %97 = arith.cmpi eq, %54, %96 : vector<8x8xi32>
    %98 = vector.extract_strided_slice %46 {offsets = [0, 5], sizes = [8, 1], strides = [1, 1]} : vector<8x128xf32> to vector<8x1xf32>
    %cst_30 = arith.constant 0.000000e+00 : f32
    %99 = vector.shape_cast %98 : vector<8x1xf32> to vector<8x1xf32>
    %100 = vector.broadcast %99 : vector<8x1xf32> to vector<8x8xf32>
    %101 = vector.broadcast %cst_30 : f32 to vector<8x8xf32>
    %102 = arith.select %97, %100, %101 : vector<8x8xi1>, vector<8x8xf32>
    %103 = arith.addf %95, %102 : vector<8x8xf32>
    %c6_i32 = arith.constant 6 : i32
    %104 = vector.broadcast %c6_i32 : i32 to vector<8x8xi32>
    %105 = arith.cmpi eq, %54, %104 : vector<8x8xi32>
    %106 = vector.extract_strided_slice %46 {offsets = [0, 6], sizes = [8, 1], strides = [1, 1]} : vector<8x128xf32> to vector<8x1xf32>
    %cst_31 = arith.constant 0.000000e+00 : f32
    %107 = vector.shape_cast %106 : vector<8x1xf32> to vector<8x1xf32>
    %108 = vector.broadcast %107 : vector<8x1xf32> to vector<8x8xf32>
    %109 = vector.broadcast %cst_31 : f32 to vector<8x8xf32>
    %110 = arith.select %105, %108, %109 : vector<8x8xi1>, vector<8x8xf32>
    %111 = arith.addf %103, %110 : vector<8x8xf32>
    %c7_i32_32 = arith.constant 7 : i32
    %112 = vector.broadcast %c7_i32_32 : i32 to vector<8x8xi32>
    %113 = arith.cmpi eq, %54, %112 : vector<8x8xi32>
    %114 = vector.extract_strided_slice %46 {offsets = [0, 7], sizes = [8, 1], strides = [1, 1]} : vector<8x128xf32> to vector<8x1xf32>
    %cst_33 = arith.constant 0.000000e+00 : f32
    %115 = vector.shape_cast %114 : vector<8x1xf32> to vector<8x1xf32>
    %116 = vector.broadcast %115 : vector<8x1xf32> to vector<8x8xf32>
    %117 = vector.broadcast %cst_33 : f32 to vector<8x8xf32>
    %118 = arith.select %113, %116, %117 : vector<8x8xi1>, vector<8x8xf32>
    %119 = arith.addf %111, %118 : vector<8x8xf32>
    %c8_i32 = arith.constant 8 : i32
    %120 = vector.broadcast %c8_i32 : i32 to vector<8x8xi32>
    %121 = arith.cmpi eq, %54, %120 : vector<8x8xi32>
    %122 = vector.extract_strided_slice %46 {offsets = [0, 8], sizes = [8, 1], strides = [1, 1]} : vector<8x128xf32> to vector<8x1xf32>
    %cst_34 = arith.constant 0.000000e+00 : f32
    %123 = vector.shape_cast %122 : vector<8x1xf32> to vector<8x1xf32>
    %124 = vector.broadcast %123 : vector<8x1xf32> to vector<8x8xf32>
    %125 = vector.broadcast %cst_34 : f32 to vector<8x8xf32>
    %126 = arith.select %121, %124, %125 : vector<8x8xi1>, vector<8x8xf32>
    %127 = arith.addf %119, %126 : vector<8x8xf32>
    %c9_i32 = arith.constant 9 : i32
    %128 = vector.broadcast %c9_i32 : i32 to vector<8x8xi32>
    %129 = arith.cmpi eq, %54, %128 : vector<8x8xi32>
    %130 = vector.extract_strided_slice %46 {offsets = [0, 9], sizes = [8, 1], strides = [1, 1]} : vector<8x128xf32> to vector<8x1xf32>
    %cst_35 = arith.constant 0.000000e+00 : f32
    %131 = vector.shape_cast %130 : vector<8x1xf32> to vector<8x1xf32>
    %132 = vector.broadcast %131 : vector<8x1xf32> to vector<8x8xf32>
    %133 = vector.broadcast %cst_35 : f32 to vector<8x8xf32>
    %134 = arith.select %129, %132, %133 : vector<8x8xi1>, vector<8x8xf32>
    %135 = arith.addf %127, %134 : vector<8x8xf32>
    %c10_i32 = arith.constant 10 : i32
    %136 = vector.broadcast %c10_i32 : i32 to vector<8x8xi32>
    %137 = arith.cmpi eq, %54, %136 : vector<8x8xi32>
    %138 = vector.extract_strided_slice %46 {offsets = [0, 10], sizes = [8, 1], strides = [1, 1]} : vector<8x128xf32> to vector<8x1xf32>
    %cst_36 = arith.constant 0.000000e+00 : f32
    %139 = vector.shape_cast %138 : vector<8x1xf32> to vector<8x1xf32>
    %140 = vector.broadcast %139 : vector<8x1xf32> to vector<8x8xf32>
    %141 = vector.broadcast %cst_36 : f32 to vector<8x8xf32>
    %142 = arith.select %137, %140, %141 : vector<8x8xi1>, vector<8x8xf32>
    %143 = arith.addf %135, %142 : vector<8x8xf32>
    %c11_i32 = arith.constant 11 : i32
    %144 = vector.broadcast %c11_i32 : i32 to vector<8x8xi32>
    %145 = arith.cmpi eq, %54, %144 : vector<8x8xi32>
    %146 = vector.extract_strided_slice %46 {offsets = [0, 11], sizes = [8, 1], strides = [1, 1]} : vector<8x128xf32> to vector<8x1xf32>
    %cst_37 = arith.constant 0.000000e+00 : f32
    %147 = vector.shape_cast %146 : vector<8x1xf32> to vector<8x1xf32>
    %148 = vector.broadcast %147 : vector<8x1xf32> to vector<8x8xf32>
    %149 = vector.broadcast %cst_37 : f32 to vector<8x8xf32>
    %150 = arith.select %145, %148, %149 : vector<8x8xi1>, vector<8x8xf32>
    %151 = arith.addf %143, %150 : vector<8x8xf32>
    %c12_i32 = arith.constant 12 : i32
    %152 = vector.broadcast %c12_i32 : i32 to vector<8x8xi32>
    %153 = arith.cmpi eq, %54, %152 : vector<8x8xi32>
    %154 = vector.extract_strided_slice %46 {offsets = [0, 12], sizes = [8, 1], strides = [1, 1]} : vector<8x128xf32> to vector<8x1xf32>
    %cst_38 = arith.constant 0.000000e+00 : f32
    %155 = vector.shape_cast %154 : vector<8x1xf32> to vector<8x1xf32>
    %156 = vector.broadcast %155 : vector<8x1xf32> to vector<8x8xf32>
    %157 = vector.broadcast %cst_38 : f32 to vector<8x8xf32>
    %158 = arith.select %153, %156, %157 : vector<8x8xi1>, vector<8x8xf32>
    %159 = arith.addf %151, %158 : vector<8x8xf32>
    %c13_i32 = arith.constant 13 : i32
    %160 = vector.broadcast %c13_i32 : i32 to vector<8x8xi32>
    %161 = arith.cmpi eq, %54, %160 : vector<8x8xi32>
    %162 = vector.extract_strided_slice %46 {offsets = [0, 13], sizes = [8, 1], strides = [1, 1]} : vector<8x128xf32> to vector<8x1xf32>
    %cst_39 = arith.constant 0.000000e+00 : f32
    %163 = vector.shape_cast %162 : vector<8x1xf32> to vector<8x1xf32>
    %164 = vector.broadcast %163 : vector<8x1xf32> to vector<8x8xf32>
    %165 = vector.broadcast %cst_39 : f32 to vector<8x8xf32>
    %166 = arith.select %161, %164, %165 : vector<8x8xi1>, vector<8x8xf32>
    %167 = arith.addf %159, %166 : vector<8x8xf32>
    %c14_i32 = arith.constant 14 : i32
    %168 = vector.broadcast %c14_i32 : i32 to vector<8x8xi32>
    %169 = arith.cmpi eq, %54, %168 : vector<8x8xi32>
    %170 = vector.extract_strided_slice %46 {offsets = [0, 14], sizes = [8, 1], strides = [1, 1]} : vector<8x128xf32> to vector<8x1xf32>
    %cst_40 = arith.constant 0.000000e+00 : f32
    %171 = vector.shape_cast %170 : vector<8x1xf32> to vector<8x1xf32>
    %172 = vector.broadcast %171 : vector<8x1xf32> to vector<8x8xf32>
    %173 = vector.broadcast %cst_40 : f32 to vector<8x8xf32>
    %174 = arith.select %169, %172, %173 : vector<8x8xi1>, vector<8x8xf32>
    %175 = arith.addf %167, %174 : vector<8x8xf32>
    %176 = arith.addf %49, %175 : vector<8x8xf32>
    %cst_41 = arith.constant 0xFF800000 : f32
    %177 = vector.broadcast %cst_41 : f32 to vector<8x8xf32>
    %178 = arith.select %38, %176, %177 : vector<8x8xi1>, vector<8x8xf32>
    %cst_42 = arith.constant dense<0xFF800000> : vector<8xf32>
    %179 = vector.multi_reduction <maximumf>, %178, %cst_42 [1] : vector<8x8xf32> to vector<8xf32>
    %180 = vector.shape_cast %179 : vector<8xf32> to vector<8x1xf32>
    %181 = vector.broadcast %180 : vector<8x1xf32> to vector<8x8xf32>
    %182 = arith.subf %178, %181 : vector<8x8xf32>
    %183 = math.exp %182 : vector<8x8xf32>
    %cst_43 = arith.constant dense<0.000000e+00> : vector<8xf32>
    %184 = vector.multi_reduction <add>, %183, %cst_43 [1] : vector<8x8xf32> to vector<8xf32>
    %185 = vector.shape_cast %184 : vector<8xf32> to vector<8x1xf32>
    %186 = tpu.reciprocal %185 {approx = true} : vector<8x1xf32> -> vector<8x1xf32>
    %187 = vector.broadcast %186 : vector<8x1xf32> to vector<8x8xf32>
    %188 = arith.mulf %183, %187 : vector<8x8xf32>
    %189 = arith.truncf %188 : vector<8x8xf32> to vector<8x8xbf16>
    %cst_44 = arith.constant dense<0.000000e+00> : vector<8x8xf32>
    %190 = tpu.matmul %189, %41, %cst_44 {dimension_numbers = #tpu.dot_dimension_numbers<[1], [0], [0], [1], [0, 0, 1, 1], [], []>} : vector<8x8xbf16>, vector<8x8xbf16>, vector<8x8xf32> -> vector<8x8xf32>
    %191 = vector.extract_strided_slice %35 {offsets = [0, 8], sizes = [8, 8], strides = [1, 1]} : vector<8x96xbf16> to vector<8x8xbf16>
    %192 = vector.extract_strided_slice %35 {offsets = [0, 40], sizes = [8, 8], strides = [1, 1]} : vector<8x96xbf16> to vector<8x8xbf16>
    %193 = vector.extract_strided_slice %35 {offsets = [0, 72], sizes = [8, 8], strides = [1, 1]} : vector<8x96xbf16> to vector<8x8xbf16>
    %c0_45 = arith.constant 0 : index
    %c1 = arith.constant 1 : index
    %c0_46 = arith.constant 0 : index
    %c0_47 = arith.constant 0 : index
    %194 = vector.load %arg6[%c0_45, %c1, %c0_46, %c0_47] : memref<1x4x128x8xbf16, #tpu.memory_space<vmem>>, vector<1x1x128x8xbf16>
    %195 = vector.shape_cast %194 : vector<1x1x128x8xbf16> to vector<128x8xbf16>
    %196 = tpu.concatenate %195, %192 in 0 : vector<128x8xbf16>, vector<8x8xbf16> -> vector<136x8xbf16>
    %cst_48 = arith.constant dense<0.000000e+00> : vector<8x136xf32>
    %197 = tpu.matmul %191, %196, %cst_48 {dimension_numbers = #tpu.dot_dimension_numbers<[1], [1], [0], [0], [0, 0, 1, 0], [], []>} : vector<8x8xbf16>, vector<136x8xbf16>, vector<8x136xf32> -> vector<8x136xf32>
    %198 = vector.extract_strided_slice %197 {offsets = [0, 0], sizes = [8, 128], strides = [1, 1]} : vector<8x136xf32> to vector<8x128xf32>
    %199 = vector.extract_strided_slice %197 {offsets = [0, 128], sizes = [8, 8], strides = [1, 1]} : vector<8x136xf32> to vector<8x8xf32>
    %cst_49 = arith.constant 0.353553385 : f32
    %200 = vector.broadcast %cst_49 : f32 to vector<8x8xf32>
    %201 = arith.mulf %199, %200 : vector<8x8xf32>
    %202 = tpu.iota {dimensions = array<i32: 0>} : vector<8x8xi32>
    %203 = tpu.iota {dimensions = array<i32: 1>} : vector<8x8xi32>
    %c7_i32_50 = arith.constant 7 : i32
    %204 = vector.broadcast %c7_i32_50 : i32 to vector<8x8xi32>
    %205 = arith.addi %204, %203 : vector<8x8xi32>
    %206 = arith.subi %205, %202 : vector<8x8xi32>
    %cst_51 = arith.constant 0.000000e+00 : f32
    %207 = vector.broadcast %cst_51 : f32 to vector<8x8xf32>
    %c0_i32_52 = arith.constant 0 : i32
    %208 = vector.broadcast %c0_i32_52 : i32 to vector<8x8xi32>
    %209 = arith.cmpi eq, %206, %208 : vector<8x8xi32>
    %210 = vector.extract_strided_slice %198 {offsets = [0, 0], sizes = [8, 1], strides = [1, 1]} : vector<8x128xf32> to vector<8x1xf32>
    %cst_53 = arith.constant 0.000000e+00 : f32
    %211 = vector.shape_cast %210 : vector<8x1xf32> to vector<8x1xf32>
    %212 = vector.broadcast %211 : vector<8x1xf32> to vector<8x8xf32>
    %213 = vector.broadcast %cst_53 : f32 to vector<8x8xf32>
    %214 = arith.select %209, %212, %213 : vector<8x8xi1>, vector<8x8xf32>
    %215 = arith.addf %207, %214 : vector<8x8xf32>
    %c1_i32_54 = arith.constant 1 : i32
    %216 = vector.broadcast %c1_i32_54 : i32 to vector<8x8xi32>
    %217 = arith.cmpi eq, %206, %216 : vector<8x8xi32>
    %218 = vector.extract_strided_slice %198 {offsets = [0, 1], sizes = [8, 1], strides = [1, 1]} : vector<8x128xf32> to vector<8x1xf32>
    %cst_55 = arith.constant 0.000000e+00 : f32
    %219 = vector.shape_cast %218 : vector<8x1xf32> to vector<8x1xf32>
    %220 = vector.broadcast %219 : vector<8x1xf32> to vector<8x8xf32>
    %221 = vector.broadcast %cst_55 : f32 to vector<8x8xf32>
    %222 = arith.select %217, %220, %221 : vector<8x8xi1>, vector<8x8xf32>
    %223 = arith.addf %215, %222 : vector<8x8xf32>
    %c2_i32_56 = arith.constant 2 : i32
    %224 = vector.broadcast %c2_i32_56 : i32 to vector<8x8xi32>
    %225 = arith.cmpi eq, %206, %224 : vector<8x8xi32>
    %226 = vector.extract_strided_slice %198 {offsets = [0, 2], sizes = [8, 1], strides = [1, 1]} : vector<8x128xf32> to vector<8x1xf32>
    %cst_57 = arith.constant 0.000000e+00 : f32
    %227 = vector.shape_cast %226 : vector<8x1xf32> to vector<8x1xf32>
    %228 = vector.broadcast %227 : vector<8x1xf32> to vector<8x8xf32>
    %229 = vector.broadcast %cst_57 : f32 to vector<8x8xf32>
    %230 = arith.select %225, %228, %229 : vector<8x8xi1>, vector<8x8xf32>
    %231 = arith.addf %223, %230 : vector<8x8xf32>
    %c3_i32_58 = arith.constant 3 : i32
    %232 = vector.broadcast %c3_i32_58 : i32 to vector<8x8xi32>
    %233 = arith.cmpi eq, %206, %232 : vector<8x8xi32>
    %234 = vector.extract_strided_slice %198 {offsets = [0, 3], sizes = [8, 1], strides = [1, 1]} : vector<8x128xf32> to vector<8x1xf32>
    %cst_59 = arith.constant 0.000000e+00 : f32
    %235 = vector.shape_cast %234 : vector<8x1xf32> to vector<8x1xf32>
    %236 = vector.broadcast %235 : vector<8x1xf32> to vector<8x8xf32>
    %237 = vector.broadcast %cst_59 : f32 to vector<8x8xf32>
    %238 = arith.select %233, %236, %237 : vector<8x8xi1>, vector<8x8xf32>
    %239 = arith.addf %231, %238 : vector<8x8xf32>
    %c4_i32_60 = arith.constant 4 : i32
    %240 = vector.broadcast %c4_i32_60 : i32 to vector<8x8xi32>
    %241 = arith.cmpi eq, %206, %240 : vector<8x8xi32>
    %242 = vector.extract_strided_slice %198 {offsets = [0, 4], sizes = [8, 1], strides = [1, 1]} : vector<8x128xf32> to vector<8x1xf32>
    %cst_61 = arith.constant 0.000000e+00 : f32
    %243 = vector.shape_cast %242 : vector<8x1xf32> to vector<8x1xf32>
    %244 = vector.broadcast %243 : vector<8x1xf32> to vector<8x8xf32>
    %245 = vector.broadcast %cst_61 : f32 to vector<8x8xf32>
    %246 = arith.select %241, %244, %245 : vector<8x8xi1>, vector<8x8xf32>
    %247 = arith.addf %239, %246 : vector<8x8xf32>
    %c5_i32_62 = arith.constant 5 : i32
    %248 = vector.broadcast %c5_i32_62 : i32 to vector<8x8xi32>
    %249 = arith.cmpi eq, %206, %248 : vector<8x8xi32>
    %250 = vector.extract_strided_slice %198 {offsets = [0, 5], sizes = [8, 1], strides = [1, 1]} : vector<8x128xf32> to vector<8x1xf32>
    %cst_63 = arith.constant 0.000000e+00 : f32
    %251 = vector.shape_cast %250 : vector<8x1xf32> to vector<8x1xf32>
    %252 = vector.broadcast %251 : vector<8x1xf32> to vector<8x8xf32>
    %253 = vector.broadcast %cst_63 : f32 to vector<8x8xf32>
    %254 = arith.select %249, %252, %253 : vector<8x8xi1>, vector<8x8xf32>
    %255 = arith.addf %247, %254 : vector<8x8xf32>
    %c6_i32_64 = arith.constant 6 : i32
    %256 = vector.broadcast %c6_i32_64 : i32 to vector<8x8xi32>
    %257 = arith.cmpi eq, %206, %256 : vector<8x8xi32>
    %258 = vector.extract_strided_slice %198 {offsets = [0, 6], sizes = [8, 1], strides = [1, 1]} : vector<8x128xf32> to vector<8x1xf32>
    %cst_65 = arith.constant 0.000000e+00 : f32
    %259 = vector.shape_cast %258 : vector<8x1xf32> to vector<8x1xf32>
    %260 = vector.broadcast %259 : vector<8x1xf32> to vector<8x8xf32>
    %261 = vector.broadcast %cst_65 : f32 to vector<8x8xf32>
    %262 = arith.select %257, %260, %261 : vector<8x8xi1>, vector<8x8xf32>
    %263 = arith.addf %255, %262 : vector<8x8xf32>
    %c7_i32_66 = arith.constant 7 : i32
    %264 = vector.broadcast %c7_i32_66 : i32 to vector<8x8xi32>
    %265 = arith.cmpi eq, %206, %264 : vector<8x8xi32>
    %266 = vector.extract_strided_slice %198 {offsets = [0, 7], sizes = [8, 1], strides = [1, 1]} : vector<8x128xf32> to vector<8x1xf32>
    %cst_67 = arith.constant 0.000000e+00 : f32
    %267 = vector.shape_cast %266 : vector<8x1xf32> to vector<8x1xf32>
    %268 = vector.broadcast %267 : vector<8x1xf32> to vector<8x8xf32>
    %269 = vector.broadcast %cst_67 : f32 to vector<8x8xf32>
    %270 = arith.select %265, %268, %269 : vector<8x8xi1>, vector<8x8xf32>
    %271 = arith.addf %263, %270 : vector<8x8xf32>
    %c8_i32_68 = arith.constant 8 : i32
    %272 = vector.broadcast %c8_i32_68 : i32 to vector<8x8xi32>
    %273 = arith.cmpi eq, %206, %272 : vector<8x8xi32>
    %274 = vector.extract_strided_slice %198 {offsets = [0, 8], sizes = [8, 1], strides = [1, 1]} : vector<8x128xf32> to vector<8x1xf32>
    %cst_69 = arith.constant 0.000000e+00 : f32
    %275 = vector.shape_cast %274 : vector<8x1xf32> to vector<8x1xf32>
    %276 = vector.broadcast %275 : vector<8x1xf32> to vector<8x8xf32>
    %277 = vector.broadcast %cst_69 : f32 to vector<8x8xf32>
    %278 = arith.select %273, %276, %277 : vector<8x8xi1>, vector<8x8xf32>
    %279 = arith.addf %271, %278 : vector<8x8xf32>
    %c9_i32_70 = arith.constant 9 : i32
    %280 = vector.broadcast %c9_i32_70 : i32 to vector<8x8xi32>
    %281 = arith.cmpi eq, %206, %280 : vector<8x8xi32>
    %282 = vector.extract_strided_slice %198 {offsets = [0, 9], sizes = [8, 1], strides = [1, 1]} : vector<8x128xf32> to vector<8x1xf32>
    %cst_71 = arith.constant 0.000000e+00 : f32
    %283 = vector.shape_cast %282 : vector<8x1xf32> to vector<8x1xf32>
    %284 = vector.broadcast %283 : vector<8x1xf32> to vector<8x8xf32>
    %285 = vector.broadcast %cst_71 : f32 to vector<8x8xf32>
    %286 = arith.select %281, %284, %285 : vector<8x8xi1>, vector<8x8xf32>
    %287 = arith.addf %279, %286 : vector<8x8xf32>
    %c10_i32_72 = arith.constant 10 : i32
    %288 = vector.broadcast %c10_i32_72 : i32 to vector<8x8xi32>
    %289 = arith.cmpi eq, %206, %288 : vector<8x8xi32>
    %290 = vector.extract_strided_slice %198 {offsets = [0, 10], sizes = [8, 1], strides = [1, 1]} : vector<8x128xf32> to vector<8x1xf32>
    %cst_73 = arith.constant 0.000000e+00 : f32
    %291 = vector.shape_cast %290 : vector<8x1xf32> to vector<8x1xf32>
    %292 = vector.broadcast %291 : vector<8x1xf32> to vector<8x8xf32>
    %293 = vector.broadcast %cst_73 : f32 to vector<8x8xf32>
    %294 = arith.select %289, %292, %293 : vector<8x8xi1>, vector<8x8xf32>
    %295 = arith.addf %287, %294 : vector<8x8xf32>
    %c11_i32_74 = arith.constant 11 : i32
    %296 = vector.broadcast %c11_i32_74 : i32 to vector<8x8xi32>
    %297 = arith.cmpi eq, %206, %296 : vector<8x8xi32>
    %298 = vector.extract_strided_slice %198 {offsets = [0, 11], sizes = [8, 1], strides = [1, 1]} : vector<8x128xf32> to vector<8x1xf32>
    %cst_75 = arith.constant 0.000000e+00 : f32
    %299 = vector.shape_cast %298 : vector<8x1xf32> to vector<8x1xf32>
    %300 = vector.broadcast %299 : vector<8x1xf32> to vector<8x8xf32>
    %301 = vector.broadcast %cst_75 : f32 to vector<8x8xf32>
    %302 = arith.select %297, %300, %301 : vector<8x8xi1>, vector<8x8xf32>
    %303 = arith.addf %295, %302 : vector<8x8xf32>
    %c12_i32_76 = arith.constant 12 : i32
    %304 = vector.broadcast %c12_i32_76 : i32 to vector<8x8xi32>
    %305 = arith.cmpi eq, %206, %304 : vector<8x8xi32>
    %306 = vector.extract_strided_slice %198 {offsets = [0, 12], sizes = [8, 1], strides = [1, 1]} : vector<8x128xf32> to vector<8x1xf32>
    %cst_77 = arith.constant 0.000000e+00 : f32
    %307 = vector.shape_cast %306 : vector<8x1xf32> to vector<8x1xf32>
    %308 = vector.broadcast %307 : vector<8x1xf32> to vector<8x8xf32>
    %309 = vector.broadcast %cst_77 : f32 to vector<8x8xf32>
    %310 = arith.select %305, %308, %309 : vector<8x8xi1>, vector<8x8xf32>
    %311 = arith.addf %303, %310 : vector<8x8xf32>
    %c13_i32_78 = arith.constant 13 : i32
    %312 = vector.broadcast %c13_i32_78 : i32 to vector<8x8xi32>
    %313 = arith.cmpi eq, %206, %312 : vector<8x8xi32>
    %314 = vector.extract_strided_slice %198 {offsets = [0, 13], sizes = [8, 1], strides = [1, 1]} : vector<8x128xf32> to vector<8x1xf32>
    %cst_79 = arith.constant 0.000000e+00 : f32
    %315 = vector.shape_cast %314 : vector<8x1xf32> to vector<8x1xf32>
    %316 = vector.broadcast %315 : vector<8x1xf32> to vector<8x8xf32>
    %317 = vector.broadcast %cst_79 : f32 to vector<8x8xf32>
    %318 = arith.select %313, %316, %317 : vector<8x8xi1>, vector<8x8xf32>
    %319 = arith.addf %311, %318 : vector<8x8xf32>
    %c14_i32_80 = arith.constant 14 : i32
    %320 = vector.broadcast %c14_i32_80 : i32 to vector<8x8xi32>
    %321 = arith.cmpi eq, %206, %320 : vector<8x8xi32>
    %322 = vector.extract_strided_slice %198 {offsets = [0, 14], sizes = [8, 1], strides = [1, 1]} : vector<8x128xf32> to vector<8x1xf32>
    %cst_81 = arith.constant 0.000000e+00 : f32
    %323 = vector.shape_cast %322 : vector<8x1xf32> to vector<8x1xf32>
    %324 = vector.broadcast %323 : vector<8x1xf32> to vector<8x8xf32>
    %325 = vector.broadcast %cst_81 : f32 to vector<8x8xf32>
    %326 = arith.select %321, %324, %325 : vector<8x8xi1>, vector<8x8xf32>
    %327 = arith.addf %319, %326 : vector<8x8xf32>
    %328 = arith.addf %201, %327 : vector<8x8xf32>
    %cst_82 = arith.constant 0xFF800000 : f32
    %329 = vector.broadcast %cst_82 : f32 to vector<8x8xf32>
    %330 = arith.select %38, %328, %329 : vector<8x8xi1>, vector<8x8xf32>
    %cst_83 = arith.constant dense<0xFF800000> : vector<8xf32>
    %331 = vector.multi_reduction <maximumf>, %330, %cst_83 [1] : vector<8x8xf32> to vector<8xf32>
    %332 = vector.shape_cast %331 : vector<8xf32> to vector<8x1xf32>
    %333 = vector.broadcast %332 : vector<8x1xf32> to vector<8x8xf32>
    %334 = arith.subf %330, %333 : vector<8x8xf32>
    %335 = math.exp %334 : vector<8x8xf32>
    %cst_84 = arith.constant dense<0.000000e+00> : vector<8xf32>
    %336 = vector.multi_reduction <add>, %335, %cst_84 [1] : vector<8x8xf32> to vector<8xf32>
    %337 = vector.shape_cast %336 : vector<8xf32> to vector<8x1xf32>
    %338 = tpu.reciprocal %337 {approx = true} : vector<8x1xf32> -> vector<8x1xf32>
    %339 = vector.broadcast %338 : vector<8x1xf32> to vector<8x8xf32>
    %340 = arith.mulf %335, %339 : vector<8x8xf32>
    %341 = arith.truncf %340 : vector<8x8xf32> to vector<8x8xbf16>
    %cst_85 = arith.constant dense<0.000000e+00> : vector<8x8xf32>
    %342 = tpu.matmul %341, %193, %cst_85 {dimension_numbers = #tpu.dot_dimension_numbers<[1], [0], [0], [1], [0, 0, 1, 1], [], []>} : vector<8x8xbf16>, vector<8x8xbf16>, vector<8x8xf32> -> vector<8x8xf32>
    %343 = vector.extract_strided_slice %35 {offsets = [0, 16], sizes = [8, 8], strides = [1, 1]} : vector<8x96xbf16> to vector<8x8xbf16>
    %344 = vector.extract_strided_slice %35 {offsets = [0, 48], sizes = [8, 8], strides = [1, 1]} : vector<8x96xbf16> to vector<8x8xbf16>
    %345 = vector.extract_strided_slice %35 {offsets = [0, 80], sizes = [8, 8], strides = [1, 1]} : vector<8x96xbf16> to vector<8x8xbf16>
    %c0_86 = arith.constant 0 : index
    %c2 = arith.constant 2 : index
    %c0_87 = arith.constant 0 : index
    %c0_88 = arith.constant 0 : index
    %346 = vector.load %arg6[%c0_86, %c2, %c0_87, %c0_88] : memref<1x4x128x8xbf16, #tpu.memory_space<vmem>>, vector<1x1x128x8xbf16>
    %347 = vector.shape_cast %346 : vector<1x1x128x8xbf16> to vector<128x8xbf16>
    %348 = tpu.concatenate %347, %344 in 0 : vector<128x8xbf16>, vector<8x8xbf16> -> vector<136x8xbf16>
    %cst_89 = arith.constant dense<0.000000e+00> : vector<8x136xf32>
    %349 = tpu.matmul %343, %348, %cst_89 {dimension_numbers = #tpu.dot_dimension_numbers<[1], [1], [0], [0], [0, 0, 1, 0], [], []>} : vector<8x8xbf16>, vector<136x8xbf16>, vector<8x136xf32> -> vector<8x136xf32>
    %350 = vector.extract_strided_slice %349 {offsets = [0, 0], sizes = [8, 128], strides = [1, 1]} : vector<8x136xf32> to vector<8x128xf32>
    %351 = vector.extract_strided_slice %349 {offsets = [0, 128], sizes = [8, 8], strides = [1, 1]} : vector<8x136xf32> to vector<8x8xf32>
    %cst_90 = arith.constant 0.353553385 : f32
    %352 = vector.broadcast %cst_90 : f32 to vector<8x8xf32>
    %353 = arith.mulf %351, %352 : vector<8x8xf32>
    %354 = tpu.iota {dimensions = array<i32: 0>} : vector<8x8xi32>
    %355 = tpu.iota {dimensions = array<i32: 1>} : vector<8x8xi32>
    %c7_i32_91 = arith.constant 7 : i32
    %356 = vector.broadcast %c7_i32_91 : i32 to vector<8x8xi32>
    %357 = arith.addi %356, %355 : vector<8x8xi32>
    %358 = arith.subi %357, %354 : vector<8x8xi32>
    %cst_92 = arith.constant 0.000000e+00 : f32
    %359 = vector.broadcast %cst_92 : f32 to vector<8x8xf32>
    %c0_i32_93 = arith.constant 0 : i32
    %360 = vector.broadcast %c0_i32_93 : i32 to vector<8x8xi32>
    %361 = arith.cmpi eq, %358, %360 : vector<8x8xi32>
    %362 = vector.extract_strided_slice %350 {offsets = [0, 0], sizes = [8, 1], strides = [1, 1]} : vector<8x128xf32> to vector<8x1xf32>
    %cst_94 = arith.constant 0.000000e+00 : f32
    %363 = vector.shape_cast %362 : vector<8x1xf32> to vector<8x1xf32>
    %364 = vector.broadcast %363 : vector<8x1xf32> to vector<8x8xf32>
    %365 = vector.broadcast %cst_94 : f32 to vector<8x8xf32>
    %366 = arith.select %361, %364, %365 : vector<8x8xi1>, vector<8x8xf32>
    %367 = arith.addf %359, %366 : vector<8x8xf32>
    %c1_i32_95 = arith.constant 1 : i32
    %368 = vector.broadcast %c1_i32_95 : i32 to vector<8x8xi32>
    %369 = arith.cmpi eq, %358, %368 : vector<8x8xi32>
    %370 = vector.extract_strided_slice %350 {offsets = [0, 1], sizes = [8, 1], strides = [1, 1]} : vector<8x128xf32> to vector<8x1xf32>
    %cst_96 = arith.constant 0.000000e+00 : f32
    %371 = vector.shape_cast %370 : vector<8x1xf32> to vector<8x1xf32>
    %372 = vector.broadcast %371 : vector<8x1xf32> to vector<8x8xf32>
    %373 = vector.broadcast %cst_96 : f32 to vector<8x8xf32>
    %374 = arith.select %369, %372, %373 : vector<8x8xi1>, vector<8x8xf32>
    %375 = arith.addf %367, %374 : vector<8x8xf32>
    %c2_i32_97 = arith.constant 2 : i32
    %376 = vector.broadcast %c2_i32_97 : i32 to vector<8x8xi32>
    %377 = arith.cmpi eq, %358, %376 : vector<8x8xi32>
    %378 = vector.extract_strided_slice %350 {offsets = [0, 2], sizes = [8, 1], strides = [1, 1]} : vector<8x128xf32> to vector<8x1xf32>
    %cst_98 = arith.constant 0.000000e+00 : f32
    %379 = vector.shape_cast %378 : vector<8x1xf32> to vector<8x1xf32>
    %380 = vector.broadcast %379 : vector<8x1xf32> to vector<8x8xf32>
    %381 = vector.broadcast %cst_98 : f32 to vector<8x8xf32>
    %382 = arith.select %377, %380, %381 : vector<8x8xi1>, vector<8x8xf32>
    %383 = arith.addf %375, %382 : vector<8x8xf32>
    %c3_i32_99 = arith.constant 3 : i32
    %384 = vector.broadcast %c3_i32_99 : i32 to vector<8x8xi32>
    %385 = arith.cmpi eq, %358, %384 : vector<8x8xi32>
    %386 = vector.extract_strided_slice %350 {offsets = [0, 3], sizes = [8, 1], strides = [1, 1]} : vector<8x128xf32> to vector<8x1xf32>
    %cst_100 = arith.constant 0.000000e+00 : f32
    %387 = vector.shape_cast %386 : vector<8x1xf32> to vector<8x1xf32>
    %388 = vector.broadcast %387 : vector<8x1xf32> to vector<8x8xf32>
    %389 = vector.broadcast %cst_100 : f32 to vector<8x8xf32>
    %390 = arith.select %385, %388, %389 : vector<8x8xi1>, vector<8x8xf32>
    %391 = arith.addf %383, %390 : vector<8x8xf32>
    %c4_i32_101 = arith.constant 4 : i32
    %392 = vector.broadcast %c4_i32_101 : i32 to vector<8x8xi32>
    %393 = arith.cmpi eq, %358, %392 : vector<8x8xi32>
    %394 = vector.extract_strided_slice %350 {offsets = [0, 4], sizes = [8, 1], strides = [1, 1]} : vector<8x128xf32> to vector<8x1xf32>
    %cst_102 = arith.constant 0.000000e+00 : f32
    %395 = vector.shape_cast %394 : vector<8x1xf32> to vector<8x1xf32>
    %396 = vector.broadcast %395 : vector<8x1xf32> to vector<8x8xf32>
    %397 = vector.broadcast %cst_102 : f32 to vector<8x8xf32>
    %398 = arith.select %393, %396, %397 : vector<8x8xi1>, vector<8x8xf32>
    %399 = arith.addf %391, %398 : vector<8x8xf32>
    %c5_i32_103 = arith.constant 5 : i32
    %400 = vector.broadcast %c5_i32_103 : i32 to vector<8x8xi32>
    %401 = arith.cmpi eq, %358, %400 : vector<8x8xi32>
    %402 = vector.extract_strided_slice %350 {offsets = [0, 5], sizes = [8, 1], strides = [1, 1]} : vector<8x128xf32> to vector<8x1xf32>
    %cst_104 = arith.constant 0.000000e+00 : f32
    %403 = vector.shape_cast %402 : vector<8x1xf32> to vector<8x1xf32>
    %404 = vector.broadcast %403 : vector<8x1xf32> to vector<8x8xf32>
    %405 = vector.broadcast %cst_104 : f32 to vector<8x8xf32>
    %406 = arith.select %401, %404, %405 : vector<8x8xi1>, vector<8x8xf32>
    %407 = arith.addf %399, %406 : vector<8x8xf32>
    %c6_i32_105 = arith.constant 6 : i32
    %408 = vector.broadcast %c6_i32_105 : i32 to vector<8x8xi32>
    %409 = arith.cmpi eq, %358, %408 : vector<8x8xi32>
    %410 = vector.extract_strided_slice %350 {offsets = [0, 6], sizes = [8, 1], strides = [1, 1]} : vector<8x128xf32> to vector<8x1xf32>
    %cst_106 = arith.constant 0.000000e+00 : f32
    %411 = vector.shape_cast %410 : vector<8x1xf32> to vector<8x1xf32>
    %412 = vector.broadcast %411 : vector<8x1xf32> to vector<8x8xf32>
    %413 = vector.broadcast %cst_106 : f32 to vector<8x8xf32>
    %414 = arith.select %409, %412, %413 : vector<8x8xi1>, vector<8x8xf32>
    %415 = arith.addf %407, %414 : vector<8x8xf32>
    %c7_i32_107 = arith.constant 7 : i32
    %416 = vector.broadcast %c7_i32_107 : i32 to vector<8x8xi32>
    %417 = arith.cmpi eq, %358, %416 : vector<8x8xi32>
    %418 = vector.extract_strided_slice %350 {offsets = [0, 7], sizes = [8, 1], strides = [1, 1]} : vector<8x128xf32> to vector<8x1xf32>
    %cst_108 = arith.constant 0.000000e+00 : f32
    %419 = vector.shape_cast %418 : vector<8x1xf32> to vector<8x1xf32>
    %420 = vector.broadcast %419 : vector<8x1xf32> to vector<8x8xf32>
    %421 = vector.broadcast %cst_108 : f32 to vector<8x8xf32>
    %422 = arith.select %417, %420, %421 : vector<8x8xi1>, vector<8x8xf32>
    %423 = arith.addf %415, %422 : vector<8x8xf32>
    %c8_i32_109 = arith.constant 8 : i32
    %424 = vector.broadcast %c8_i32_109 : i32 to vector<8x8xi32>
    %425 = arith.cmpi eq, %358, %424 : vector<8x8xi32>
    %426 = vector.extract_strided_slice %350 {offsets = [0, 8], sizes = [8, 1], strides = [1, 1]} : vector<8x128xf32> to vector<8x1xf32>
    %cst_110 = arith.constant 0.000000e+00 : f32
    %427 = vector.shape_cast %426 : vector<8x1xf32> to vector<8x1xf32>
    %428 = vector.broadcast %427 : vector<8x1xf32> to vector<8x8xf32>
    %429 = vector.broadcast %cst_110 : f32 to vector<8x8xf32>
    %430 = arith.select %425, %428, %429 : vector<8x8xi1>, vector<8x8xf32>
    %431 = arith.addf %423, %430 : vector<8x8xf32>
    %c9_i32_111 = arith.constant 9 : i32
    %432 = vector.broadcast %c9_i32_111 : i32 to vector<8x8xi32>
    %433 = arith.cmpi eq, %358, %432 : vector<8x8xi32>
    %434 = vector.extract_strided_slice %350 {offsets = [0, 9], sizes = [8, 1], strides = [1, 1]} : vector<8x128xf32> to vector<8x1xf32>
    %cst_112 = arith.constant 0.000000e+00 : f32
    %435 = vector.shape_cast %434 : vector<8x1xf32> to vector<8x1xf32>
    %436 = vector.broadcast %435 : vector<8x1xf32> to vector<8x8xf32>
    %437 = vector.broadcast %cst_112 : f32 to vector<8x8xf32>
    %438 = arith.select %433, %436, %437 : vector<8x8xi1>, vector<8x8xf32>
    %439 = arith.addf %431, %438 : vector<8x8xf32>
    %c10_i32_113 = arith.constant 10 : i32
    %440 = vector.broadcast %c10_i32_113 : i32 to vector<8x8xi32>
    %441 = arith.cmpi eq, %358, %440 : vector<8x8xi32>
    %442 = vector.extract_strided_slice %350 {offsets = [0, 10], sizes = [8, 1], strides = [1, 1]} : vector<8x128xf32> to vector<8x1xf32>
    %cst_114 = arith.constant 0.000000e+00 : f32
    %443 = vector.shape_cast %442 : vector<8x1xf32> to vector<8x1xf32>
    %444 = vector.broadcast %443 : vector<8x1xf32> to vector<8x8xf32>
    %445 = vector.broadcast %cst_114 : f32 to vector<8x8xf32>
    %446 = arith.select %441, %444, %445 : vector<8x8xi1>, vector<8x8xf32>
    %447 = arith.addf %439, %446 : vector<8x8xf32>
    %c11_i32_115 = arith.constant 11 : i32
    %448 = vector.broadcast %c11_i32_115 : i32 to vector<8x8xi32>
    %449 = arith.cmpi eq, %358, %448 : vector<8x8xi32>
    %450 = vector.extract_strided_slice %350 {offsets = [0, 11], sizes = [8, 1], strides = [1, 1]} : vector<8x128xf32> to vector<8x1xf32>
    %cst_116 = arith.constant 0.000000e+00 : f32
    %451 = vector.shape_cast %450 : vector<8x1xf32> to vector<8x1xf32>
    %452 = vector.broadcast %451 : vector<8x1xf32> to vector<8x8xf32>
    %453 = vector.broadcast %cst_116 : f32 to vector<8x8xf32>
    %454 = arith.select %449, %452, %453 : vector<8x8xi1>, vector<8x8xf32>
    %455 = arith.addf %447, %454 : vector<8x8xf32>
    %c12_i32_117 = arith.constant 12 : i32
    %456 = vector.broadcast %c12_i32_117 : i32 to vector<8x8xi32>
    %457 = arith.cmpi eq, %358, %456 : vector<8x8xi32>
    %458 = vector.extract_strided_slice %350 {offsets = [0, 12], sizes = [8, 1], strides = [1, 1]} : vector<8x128xf32> to vector<8x1xf32>
    %cst_118 = arith.constant 0.000000e+00 : f32
    %459 = vector.shape_cast %458 : vector<8x1xf32> to vector<8x1xf32>
    %460 = vector.broadcast %459 : vector<8x1xf32> to vector<8x8xf32>
    %461 = vector.broadcast %cst_118 : f32 to vector<8x8xf32>
    %462 = arith.select %457, %460, %461 : vector<8x8xi1>, vector<8x8xf32>
    %463 = arith.addf %455, %462 : vector<8x8xf32>
    %c13_i32_119 = arith.constant 13 : i32
    %464 = vector.broadcast %c13_i32_119 : i32 to vector<8x8xi32>
    %465 = arith.cmpi eq, %358, %464 : vector<8x8xi32>
    %466 = vector.extract_strided_slice %350 {offsets = [0, 13], sizes = [8, 1], strides = [1, 1]} : vector<8x128xf32> to vector<8x1xf32>
    %cst_120 = arith.constant 0.000000e+00 : f32
    %467 = vector.shape_cast %466 : vector<8x1xf32> to vector<8x1xf32>
    %468 = vector.broadcast %467 : vector<8x1xf32> to vector<8x8xf32>
    %469 = vector.broadcast %cst_120 : f32 to vector<8x8xf32>
    %470 = arith.select %465, %468, %469 : vector<8x8xi1>, vector<8x8xf32>
    %471 = arith.addf %463, %470 : vector<8x8xf32>
    %c14_i32_121 = arith.constant 14 : i32
    %472 = vector.broadcast %c14_i32_121 : i32 to vector<8x8xi32>
    %473 = arith.cmpi eq, %358, %472 : vector<8x8xi32>
    %474 = vector.extract_strided_slice %350 {offsets = [0, 14], sizes = [8, 1], strides = [1, 1]} : vector<8x128xf32> to vector<8x1xf32>
    %cst_122 = arith.constant 0.000000e+00 : f32
    %475 = vector.shape_cast %474 : vector<8x1xf32> to vector<8x1xf32>
    %476 = vector.broadcast %475 : vector<8x1xf32> to vector<8x8xf32>
    %477 = vector.broadcast %cst_122 : f32 to vector<8x8xf32>
    %478 = arith.select %473, %476, %477 : vector<8x8xi1>, vector<8x8xf32>
    %479 = arith.addf %471, %478 : vector<8x8xf32>
    %480 = arith.addf %353, %479 : vector<8x8xf32>
    %cst_123 = arith.constant 0xFF800000 : f32
    %481 = vector.broadcast %cst_123 : f32 to vector<8x8xf32>
    %482 = arith.select %38, %480, %481 : vector<8x8xi1>, vector<8x8xf32>
    %cst_124 = arith.constant dense<0xFF800000> : vector<8xf32>
    %483 = vector.multi_reduction <maximumf>, %482, %cst_124 [1] : vector<8x8xf32> to vector<8xf32>
    %484 = vector.shape_cast %483 : vector<8xf32> to vector<8x1xf32>
    %485 = vector.broadcast %484 : vector<8x1xf32> to vector<8x8xf32>
    %486 = arith.subf %482, %485 : vector<8x8xf32>
    %487 = math.exp %486 : vector<8x8xf32>
    %cst_125 = arith.constant dense<0.000000e+00> : vector<8xf32>
    %488 = vector.multi_reduction <add>, %487, %cst_125 [1] : vector<8x8xf32> to vector<8xf32>
    %489 = vector.shape_cast %488 : vector<8xf32> to vector<8x1xf32>
    %490 = tpu.reciprocal %489 {approx = true} : vector<8x1xf32> -> vector<8x1xf32>
    %491 = vector.broadcast %490 : vector<8x1xf32> to vector<8x8xf32>
    %492 = arith.mulf %487, %491 : vector<8x8xf32>
    %493 = arith.truncf %492 : vector<8x8xf32> to vector<8x8xbf16>
    %cst_126 = arith.constant dense<0.000000e+00> : vector<8x8xf32>
    %494 = tpu.matmul %493, %345, %cst_126 {dimension_numbers = #tpu.dot_dimension_numbers<[1], [0], [0], [1], [0, 0, 1, 1], [], []>} : vector<8x8xbf16>, vector<8x8xbf16>, vector<8x8xf32> -> vector<8x8xf32>
    %495 = vector.extract_strided_slice %35 {offsets = [0, 24], sizes = [8, 8], strides = [1, 1]} : vector<8x96xbf16> to vector<8x8xbf16>
    %496 = vector.extract_strided_slice %35 {offsets = [0, 56], sizes = [8, 8], strides = [1, 1]} : vector<8x96xbf16> to vector<8x8xbf16>
    %497 = vector.extract_strided_slice %35 {offsets = [0, 88], sizes = [8, 8], strides = [1, 1]} : vector<8x96xbf16> to vector<8x8xbf16>
    %c0_127 = arith.constant 0 : index
    %c3 = arith.constant 3 : index
    %c0_128 = arith.constant 0 : index
    %c0_129 = arith.constant 0 : index
    %498 = vector.load %arg6[%c0_127, %c3, %c0_128, %c0_129] : memref<1x4x128x8xbf16, #tpu.memory_space<vmem>>, vector<1x1x128x8xbf16>
    %499 = vector.shape_cast %498 : vector<1x1x128x8xbf16> to vector<128x8xbf16>
    %500 = tpu.concatenate %499, %496 in 0 : vector<128x8xbf16>, vector<8x8xbf16> -> vector<136x8xbf16>
    %cst_130 = arith.constant dense<0.000000e+00> : vector<8x136xf32>
    %501 = tpu.matmul %495, %500, %cst_130 {dimension_numbers = #tpu.dot_dimension_numbers<[1], [1], [0], [0], [0, 0, 1, 0], [], []>} : vector<8x8xbf16>, vector<136x8xbf16>, vector<8x136xf32> -> vector<8x136xf32>
    %502 = vector.extract_strided_slice %501 {offsets = [0, 0], sizes = [8, 128], strides = [1, 1]} : vector<8x136xf32> to vector<8x128xf32>
    %503 = vector.extract_strided_slice %501 {offsets = [0, 128], sizes = [8, 8], strides = [1, 1]} : vector<8x136xf32> to vector<8x8xf32>
    %cst_131 = arith.constant 0.353553385 : f32
    %504 = vector.broadcast %cst_131 : f32 to vector<8x8xf32>
    %505 = arith.mulf %503, %504 : vector<8x8xf32>
    %506 = tpu.iota {dimensions = array<i32: 0>} : vector<8x8xi32>
    %507 = tpu.iota {dimensions = array<i32: 1>} : vector<8x8xi32>
    %c7_i32_132 = arith.constant 7 : i32
    %508 = vector.broadcast %c7_i32_132 : i32 to vector<8x8xi32>
    %509 = arith.addi %508, %507 : vector<8x8xi32>
    %510 = arith.subi %509, %506 : vector<8x8xi32>
    %cst_133 = arith.constant 0.000000e+00 : f32
    %511 = vector.broadcast %cst_133 : f32 to vector<8x8xf32>
    %c0_i32_134 = arith.constant 0 : i32
    %512 = vector.broadcast %c0_i32_134 : i32 to vector<8x8xi32>
    %513 = arith.cmpi eq, %510, %512 : vector<8x8xi32>
    %514 = vector.extract_strided_slice %502 {offsets = [0, 0], sizes = [8, 1], strides = [1, 1]} : vector<8x128xf32> to vector<8x1xf32>
    %cst_135 = arith.constant 0.000000e+00 : f32
    %515 = vector.shape_cast %514 : vector<8x1xf32> to vector<8x1xf32>
    %516 = vector.broadcast %515 : vector<8x1xf32> to vector<8x8xf32>
    %517 = vector.broadcast %cst_135 : f32 to vector<8x8xf32>
    %518 = arith.select %513, %516, %517 : vector<8x8xi1>, vector<8x8xf32>
    %519 = arith.addf %511, %518 : vector<8x8xf32>
    %c1_i32_136 = arith.constant 1 : i32
    %520 = vector.broadcast %c1_i32_136 : i32 to vector<8x8xi32>
    %521 = arith.cmpi eq, %510, %520 : vector<8x8xi32>
    %522 = vector.extract_strided_slice %502 {offsets = [0, 1], sizes = [8, 1], strides = [1, 1]} : vector<8x128xf32> to vector<8x1xf32>
    %cst_137 = arith.constant 0.000000e+00 : f32
    %523 = vector.shape_cast %522 : vector<8x1xf32> to vector<8x1xf32>
    %524 = vector.broadcast %523 : vector<8x1xf32> to vector<8x8xf32>
    %525 = vector.broadcast %cst_137 : f32 to vector<8x8xf32>
    %526 = arith.select %521, %524, %525 : vector<8x8xi1>, vector<8x8xf32>
    %527 = arith.addf %519, %526 : vector<8x8xf32>
    %c2_i32_138 = arith.constant 2 : i32
    %528 = vector.broadcast %c2_i32_138 : i32 to vector<8x8xi32>
    %529 = arith.cmpi eq, %510, %528 : vector<8x8xi32>
    %530 = vector.extract_strided_slice %502 {offsets = [0, 2], sizes = [8, 1], strides = [1, 1]} : vector<8x128xf32> to vector<8x1xf32>
    %cst_139 = arith.constant 0.000000e+00 : f32
    %531 = vector.shape_cast %530 : vector<8x1xf32> to vector<8x1xf32>
    %532 = vector.broadcast %531 : vector<8x1xf32> to vector<8x8xf32>
    %533 = vector.broadcast %cst_139 : f32 to vector<8x8xf32>
    %534 = arith.select %529, %532, %533 : vector<8x8xi1>, vector<8x8xf32>
    %535 = arith.addf %527, %534 : vector<8x8xf32>
    %c3_i32_140 = arith.constant 3 : i32
    %536 = vector.broadcast %c3_i32_140 : i32 to vector<8x8xi32>
    %537 = arith.cmpi eq, %510, %536 : vector<8x8xi32>
    %538 = vector.extract_strided_slice %502 {offsets = [0, 3], sizes = [8, 1], strides = [1, 1]} : vector<8x128xf32> to vector<8x1xf32>
    %cst_141 = arith.constant 0.000000e+00 : f32
    %539 = vector.shape_cast %538 : vector<8x1xf32> to vector<8x1xf32>
    %540 = vector.broadcast %539 : vector<8x1xf32> to vector<8x8xf32>
    %541 = vector.broadcast %cst_141 : f32 to vector<8x8xf32>
    %542 = arith.select %537, %540, %541 : vector<8x8xi1>, vector<8x8xf32>
    %543 = arith.addf %535, %542 : vector<8x8xf32>
    %c4_i32_142 = arith.constant 4 : i32
    %544 = vector.broadcast %c4_i32_142 : i32 to vector<8x8xi32>
    %545 = arith.cmpi eq, %510, %544 : vector<8x8xi32>
    %546 = vector.extract_strided_slice %502 {offsets = [0, 4], sizes = [8, 1], strides = [1, 1]} : vector<8x128xf32> to vector<8x1xf32>
    %cst_143 = arith.constant 0.000000e+00 : f32
    %547 = vector.shape_cast %546 : vector<8x1xf32> to vector<8x1xf32>
    %548 = vector.broadcast %547 : vector<8x1xf32> to vector<8x8xf32>
    %549 = vector.broadcast %cst_143 : f32 to vector<8x8xf32>
    %550 = arith.select %545, %548, %549 : vector<8x8xi1>, vector<8x8xf32>
    %551 = arith.addf %543, %550 : vector<8x8xf32>
    %c5_i32_144 = arith.constant 5 : i32
    %552 = vector.broadcast %c5_i32_144 : i32 to vector<8x8xi32>
    %553 = arith.cmpi eq, %510, %552 : vector<8x8xi32>
    %554 = vector.extract_strided_slice %502 {offsets = [0, 5], sizes = [8, 1], strides = [1, 1]} : vector<8x128xf32> to vector<8x1xf32>
    %cst_145 = arith.constant 0.000000e+00 : f32
    %555 = vector.shape_cast %554 : vector<8x1xf32> to vector<8x1xf32>
    %556 = vector.broadcast %555 : vector<8x1xf32> to vector<8x8xf32>
    %557 = vector.broadcast %cst_145 : f32 to vector<8x8xf32>
    %558 = arith.select %553, %556, %557 : vector<8x8xi1>, vector<8x8xf32>
    %559 = arith.addf %551, %558 : vector<8x8xf32>
    %c6_i32_146 = arith.constant 6 : i32
    %560 = vector.broadcast %c6_i32_146 : i32 to vector<8x8xi32>
    %561 = arith.cmpi eq, %510, %560 : vector<8x8xi32>
    %562 = vector.extract_strided_slice %502 {offsets = [0, 6], sizes = [8, 1], strides = [1, 1]} : vector<8x128xf32> to vector<8x1xf32>
    %cst_147 = arith.constant 0.000000e+00 : f32
    %563 = vector.shape_cast %562 : vector<8x1xf32> to vector<8x1xf32>
    %564 = vector.broadcast %563 : vector<8x1xf32> to vector<8x8xf32>
    %565 = vector.broadcast %cst_147 : f32 to vector<8x8xf32>
    %566 = arith.select %561, %564, %565 : vector<8x8xi1>, vector<8x8xf32>
    %567 = arith.addf %559, %566 : vector<8x8xf32>
    %c7_i32_148 = arith.constant 7 : i32
    %568 = vector.broadcast %c7_i32_148 : i32 to vector<8x8xi32>
    %569 = arith.cmpi eq, %510, %568 : vector<8x8xi32>
    %570 = vector.extract_strided_slice %502 {offsets = [0, 7], sizes = [8, 1], strides = [1, 1]} : vector<8x128xf32> to vector<8x1xf32>
    %cst_149 = arith.constant 0.000000e+00 : f32
    %571 = vector.shape_cast %570 : vector<8x1xf32> to vector<8x1xf32>
    %572 = vector.broadcast %571 : vector<8x1xf32> to vector<8x8xf32>
    %573 = vector.broadcast %cst_149 : f32 to vector<8x8xf32>
    %574 = arith.select %569, %572, %573 : vector<8x8xi1>, vector<8x8xf32>
    %575 = arith.addf %567, %574 : vector<8x8xf32>
    %c8_i32_150 = arith.constant 8 : i32
    %576 = vector.broadcast %c8_i32_150 : i32 to vector<8x8xi32>
    %577 = arith.cmpi eq, %510, %576 : vector<8x8xi32>
    %578 = vector.extract_strided_slice %502 {offsets = [0, 8], sizes = [8, 1], strides = [1, 1]} : vector<8x128xf32> to vector<8x1xf32>
    %cst_151 = arith.constant 0.000000e+00 : f32
    %579 = vector.shape_cast %578 : vector<8x1xf32> to vector<8x1xf32>
    %580 = vector.broadcast %579 : vector<8x1xf32> to vector<8x8xf32>
    %581 = vector.broadcast %cst_151 : f32 to vector<8x8xf32>
    %582 = arith.select %577, %580, %581 : vector<8x8xi1>, vector<8x8xf32>
    %583 = arith.addf %575, %582 : vector<8x8xf32>
    %c9_i32_152 = arith.constant 9 : i32
    %584 = vector.broadcast %c9_i32_152 : i32 to vector<8x8xi32>
    %585 = arith.cmpi eq, %510, %584 : vector<8x8xi32>
    %586 = vector.extract_strided_slice %502 {offsets = [0, 9], sizes = [8, 1], strides = [1, 1]} : vector<8x128xf32> to vector<8x1xf32>
    %cst_153 = arith.constant 0.000000e+00 : f32
    %587 = vector.shape_cast %586 : vector<8x1xf32> to vector<8x1xf32>
    %588 = vector.broadcast %587 : vector<8x1xf32> to vector<8x8xf32>
    %589 = vector.broadcast %cst_153 : f32 to vector<8x8xf32>
    %590 = arith.select %585, %588, %589 : vector<8x8xi1>, vector<8x8xf32>
    %591 = arith.addf %583, %590 : vector<8x8xf32>
    %c10_i32_154 = arith.constant 10 : i32
    %592 = vector.broadcast %c10_i32_154 : i32 to vector<8x8xi32>
    %593 = arith.cmpi eq, %510, %592 : vector<8x8xi32>
    %594 = vector.extract_strided_slice %502 {offsets = [0, 10], sizes = [8, 1], strides = [1, 1]} : vector<8x128xf32> to vector<8x1xf32>
    %cst_155 = arith.constant 0.000000e+00 : f32
    %595 = vector.shape_cast %594 : vector<8x1xf32> to vector<8x1xf32>
    %596 = vector.broadcast %595 : vector<8x1xf32> to vector<8x8xf32>
    %597 = vector.broadcast %cst_155 : f32 to vector<8x8xf32>
    %598 = arith.select %593, %596, %597 : vector<8x8xi1>, vector<8x8xf32>
    %599 = arith.addf %591, %598 : vector<8x8xf32>
    %c11_i32_156 = arith.constant 11 : i32
    %600 = vector.broadcast %c11_i32_156 : i32 to vector<8x8xi32>
    %601 = arith.cmpi eq, %510, %600 : vector<8x8xi32>
    %602 = vector.extract_strided_slice %502 {offsets = [0, 11], sizes = [8, 1], strides = [1, 1]} : vector<8x128xf32> to vector<8x1xf32>
    %cst_157 = arith.constant 0.000000e+00 : f32
    %603 = vector.shape_cast %602 : vector<8x1xf32> to vector<8x1xf32>
    %604 = vector.broadcast %603 : vector<8x1xf32> to vector<8x8xf32>
    %605 = vector.broadcast %cst_157 : f32 to vector<8x8xf32>
    %606 = arith.select %601, %604, %605 : vector<8x8xi1>, vector<8x8xf32>
    %607 = arith.addf %599, %606 : vector<8x8xf32>
    %c12_i32_158 = arith.constant 12 : i32
    %608 = vector.broadcast %c12_i32_158 : i32 to vector<8x8xi32>
    %609 = arith.cmpi eq, %510, %608 : vector<8x8xi32>
    %610 = vector.extract_strided_slice %502 {offsets = [0, 12], sizes = [8, 1], strides = [1, 1]} : vector<8x128xf32> to vector<8x1xf32>
    %cst_159 = arith.constant 0.000000e+00 : f32
    %611 = vector.shape_cast %610 : vector<8x1xf32> to vector<8x1xf32>
    %612 = vector.broadcast %611 : vector<8x1xf32> to vector<8x8xf32>
    %613 = vector.broadcast %cst_159 : f32 to vector<8x8xf32>
    %614 = arith.select %609, %612, %613 : vector<8x8xi1>, vector<8x8xf32>
    %615 = arith.addf %607, %614 : vector<8x8xf32>
    %c13_i32_160 = arith.constant 13 : i32
    %616 = vector.broadcast %c13_i32_160 : i32 to vector<8x8xi32>
    %617 = arith.cmpi eq, %510, %616 : vector<8x8xi32>
    %618 = vector.extract_strided_slice %502 {offsets = [0, 13], sizes = [8, 1], strides = [1, 1]} : vector<8x128xf32> to vector<8x1xf32>
    %cst_161 = arith.constant 0.000000e+00 : f32
    %619 = vector.shape_cast %618 : vector<8x1xf32> to vector<8x1xf32>
    %620 = vector.broadcast %619 : vector<8x1xf32> to vector<8x8xf32>
    %621 = vector.broadcast %cst_161 : f32 to vector<8x8xf32>
    %622 = arith.select %617, %620, %621 : vector<8x8xi1>, vector<8x8xf32>
    %623 = arith.addf %615, %622 : vector<8x8xf32>
    %c14_i32_162 = arith.constant 14 : i32
    %624 = vector.broadcast %c14_i32_162 : i32 to vector<8x8xi32>
    %625 = arith.cmpi eq, %510, %624 : vector<8x8xi32>
    %626 = vector.extract_strided_slice %502 {offsets = [0, 14], sizes = [8, 1], strides = [1, 1]} : vector<8x128xf32> to vector<8x1xf32>
    %cst_163 = arith.constant 0.000000e+00 : f32
    %627 = vector.shape_cast %626 : vector<8x1xf32> to vector<8x1xf32>
    %628 = vector.broadcast %627 : vector<8x1xf32> to vector<8x8xf32>
    %629 = vector.broadcast %cst_163 : f32 to vector<8x8xf32>
    %630 = arith.select %625, %628, %629 : vector<8x8xi1>, vector<8x8xf32>
    %631 = arith.addf %623, %630 : vector<8x8xf32>
    %632 = arith.addf %505, %631 : vector<8x8xf32>
    %cst_164 = arith.constant 0xFF800000 : f32
    %633 = vector.broadcast %cst_164 : f32 to vector<8x8xf32>
    %634 = arith.select %38, %632, %633 : vector<8x8xi1>, vector<8x8xf32>
    %cst_165 = arith.constant dense<0xFF800000> : vector<8xf32>
    %635 = vector.multi_reduction <maximumf>, %634, %cst_165 [1] : vector<8x8xf32> to vector<8xf32>
    %636 = vector.shape_cast %635 : vector<8xf32> to vector<8x1xf32>
    %637 = vector.broadcast %636 : vector<8x1xf32> to vector<8x8xf32>
    %638 = arith.subf %634, %637 : vector<8x8xf32>
    %639 = math.exp %638 : vector<8x8xf32>
    %cst_166 = arith.constant dense<0.000000e+00> : vector<8xf32>
    %640 = vector.multi_reduction <add>, %639, %cst_166 [1] : vector<8x8xf32> to vector<8xf32>
    %641 = vector.shape_cast %640 : vector<8xf32> to vector<8x1xf32>
    %642 = tpu.reciprocal %641 {approx = true} : vector<8x1xf32> -> vector<8x1xf32>
    %643 = vector.broadcast %642 : vector<8x1xf32> to vector<8x8xf32>
    %644 = arith.mulf %639, %643 : vector<8x8xf32>
    %645 = arith.truncf %644 : vector<8x8xf32> to vector<8x8xbf16>
    %cst_167 = arith.constant dense<0.000000e+00> : vector<8x8xf32>
    %646 = tpu.matmul %645, %497, %cst_167 {dimension_numbers = #tpu.dot_dimension_numbers<[1], [0], [0], [1], [0, 0, 1, 1], [], []>} : vector<8x8xbf16>, vector<8x8xbf16>, vector<8x8xf32> -> vector<8x8xf32>
    %647 = tpu.concatenate %190, %342, %494, %646 in 1 : vector<8x8xf32>, vector<8x8xf32>, vector<8x8xf32>, vector<8x8xf32> -> vector<8x32xf32>
    %648 = arith.truncf %647 : vector<8x32xf32> to vector<8x32xbf16>
    %c0_168 = arith.constant 0 : index
    %c0_169 = arith.constant 0 : index
    %c0_170 = arith.constant 0 : index
    %649 = vector.load %arg7[%c0_168, %c0_169, %c0_170] : memref<1x32x32xbf16, #tpu.memory_space<vmem>>, vector<1x32x32xbf16>
    %650 = vector.shape_cast %649 : vector<1x32x32xbf16> to vector<32x32xbf16>
    %cst_171 = arith.constant dense<0.000000e+00> : vector<8x32xf32>
    %651 = tpu.matmul %648, %650, %cst_171 {dimension_numbers = #tpu.dot_dimension_numbers<[1], [0], [0], [1], [0, 0, 1, 1], [], []>} : vector<8x32xbf16>, vector<32x32xbf16>, vector<8x32xf32> -> vector<8x32xf32>
    %c0_172 = arith.constant 0 : index
    %c0_173 = arith.constant 0 : index
    %c0_174 = arith.constant 0 : index
    %652 = vector.load %arg8[%c0_172, %c0_173, %c0_174] : memref<1x1x32xf32, #tpu.memory_space<vmem>>, vector<1x1x32xf32>
    %653 = vector.shape_cast %652 : vector<1x1x32xf32> to vector<1x32xf32>
    %654 = vector.broadcast %653 : vector<1x32xf32> to vector<8x32xf32>
    %655 = arith.addf %651, %654 : vector<8x32xf32>
    %656 = arith.addf %4, %655 : vector<8x32xf32>
    %c0_175 = arith.constant 0 : index
    %c0_176 = arith.constant 0 : index
    %c0_177 = arith.constant 0 : index
    %657 = vector.load %arg9[%c0_175, %c0_176, %c0_177] : memref<1x1x32xf32, #tpu.memory_space<vmem>>, vector<1x1x32xf32>
    %658 = vector.shape_cast %657 : vector<1x1x32xf32> to vector<1x32xf32>
    %c0_178 = arith.constant 0 : index
    %c0_179 = arith.constant 0 : index
    %c0_180 = arith.constant 0 : index
    %659 = vector.load %arg10[%c0_178, %c0_179, %c0_180] : memref<1x1x32xf32, #tpu.memory_space<vmem>>, vector<1x1x32xf32>
    %660 = vector.shape_cast %659 : vector<1x1x32xf32> to vector<1x32xf32>
    %cst_181 = arith.constant dense<0.000000e+00> : vector<8xf32>
    %661 = vector.multi_reduction <add>, %656, %cst_181 [1] : vector<8x32xf32> to vector<8xf32>
    %662 = vector.shape_cast %661 : vector<8xf32> to vector<8x1xf32>
    %cst_182 = arith.constant 3.200000e+01 : f32
    %663 = vector.broadcast %cst_182 : f32 to vector<8x1xf32>
    %664 = arith.divf %662, %663 : vector<8x1xf32>
    %665 = vector.broadcast %664 : vector<8x1xf32> to vector<8x32xf32>
    %666 = arith.subf %656, %665 : vector<8x32xf32>
    %667 = arith.mulf %666, %666 : vector<8x32xf32>
    %cst_183 = arith.constant dense<0.000000e+00> : vector<8xf32>
    %668 = vector.multi_reduction <add>, %667, %cst_183 [1] : vector<8x32xf32> to vector<8xf32>
    %669 = vector.shape_cast %668 : vector<8xf32> to vector<8x1xf32>
    %cst_184 = arith.constant 3.200000e+01 : f32
    %670 = vector.broadcast %cst_184 : f32 to vector<8x1xf32>
    %671 = arith.divf %669, %670 : vector<8x1xf32>
    %672 = vector.broadcast %664 : vector<8x1xf32> to vector<8x32xf32>
    %673 = arith.subf %656, %672 : vector<8x32xf32>
    %cst_185 = arith.constant 9.99999974E-6 : f32
    %674 = vector.broadcast %cst_185 : f32 to vector<8x1xf32>
    %675 = arith.addf %671, %674 : vector<8x1xf32>
    %676 = math.rsqrt %675 : vector<8x1xf32>
    %677 = vector.broadcast %676 : vector<8x1xf32> to vector<8x32xf32>
    %678 = arith.mulf %673, %677 : vector<8x32xf32>
    %679 = vector.broadcast %658 : vector<1x32xf32> to vector<8x32xf32>
    %680 = arith.mulf %678, %679 : vector<8x32xf32>
    %681 = vector.broadcast %660 : vector<1x32xf32> to vector<8x32xf32>
    %682 = arith.addf %680, %681 : vector<8x32xf32>
    %683 = arith.truncf %682 : vector<8x32xf32> to vector<8x32xbf16>
    %c0_186 = arith.constant 0 : index
    %c0_187 = arith.constant 0 : index
    %c0_188 = arith.constant 0 : index
    %684 = vector.load %arg11[%c0_186, %c0_187, %c0_188] : memref<1x32x128xbf16, #tpu.memory_space<vmem>>, vector<1x32x128xbf16>
    %685 = vector.shape_cast %684 : vector<1x32x128xbf16> to vector<32x128xbf16>
    %cst_189 = arith.constant dense<0.000000e+00> : vector<8x128xf32>
    %686 = tpu.matmul %683, %685, %cst_189 {dimension_numbers = #tpu.dot_dimension_numbers<[1], [0], [0], [1], [0, 0, 1, 1], [], []>} : vector<8x32xbf16>, vector<32x128xbf16>, vector<8x128xf32> -> vector<8x128xf32>
    %c0_190 = arith.constant 0 : index
    %c0_191 = arith.constant 0 : index
    %c0_192 = arith.constant 0 : index
    %687 = vector.load %arg12[%c0_190, %c0_191, %c0_192] : memref<1x1x128xf32, #tpu.memory_space<vmem>>, vector<1x1x128xf32>
    %688 = vector.shape_cast %687 : vector<1x1x128xf32> to vector<1x128xf32>
    %689 = vector.broadcast %688 : vector<1x128xf32> to vector<8x128xf32>
    %690 = arith.addf %686, %689 : vector<8x128xf32>
    %cst_193 = arith.constant 0.000000e+00 : f32
    %691 = vector.broadcast %cst_193 : f32 to vector<8x128xf32>
    %692 = arith.maximumf %690, %691 : vector<8x128xf32>
    %693 = arith.truncf %692 : vector<8x128xf32> to vector<8x128xbf16>
    %c0_194 = arith.constant 0 : index
    %c0_195 = arith.constant 0 : index
    %c0_196 = arith.constant 0 : index
    %694 = vector.load %arg13[%c0_194, %c0_195, %c0_196] : memref<1x128x32xbf16, #tpu.memory_space<vmem>>, vector<1x128x32xbf16>
    %695 = vector.shape_cast %694 : vector<1x128x32xbf16> to vector<128x32xbf16>
    %cst_197 = arith.constant dense<0.000000e+00> : vector<8x32xf32>
    %696 = tpu.matmul %693, %695, %cst_197 {dimension_numbers = #tpu.dot_dimension_numbers<[1], [0], [0], [1], [0, 0, 1, 1], [], []>} : vector<8x128xbf16>, vector<128x32xbf16>, vector<8x32xf32> -> vector<8x32xf32>
    %c0_198 = arith.constant 0 : index
    %c0_199 = arith.constant 0 : index
    %c0_200 = arith.constant 0 : index
    %697 = vector.load %arg14[%c0_198, %c0_199, %c0_200] : memref<1x1x32xf32, #tpu.memory_space<vmem>>, vector<1x1x32xf32>
    %698 = vector.shape_cast %697 : vector<1x1x32xf32> to vector<1x32xf32>
    %699 = vector.broadcast %698 : vector<1x32xf32> to vector<8x32xf32>
    %700 = arith.addf %696, %699 : vector<8x32xf32>
    %701 = arith.addf %656, %700 : vector<8x32xf32>
    %c0_201 = arith.constant 0 : index
    %c0_202 = arith.constant 0 : index
    %c0_203 = arith.constant 0 : index
    %702 = vector.load %arg15[%c0_201, %c0_202, %c0_203] : memref<1x8x32xf32, #tpu.memory_space<vmem>>, vector<1x8x32xf32>
    %703 = vector.shape_cast %702 : vector<1x8x32xf32> to vector<8x32xf32>
    %704 = vector.shape_cast %701 : vector<8x32xf32> to vector<1x8x32xf32>
    tpu.vector_store %arg15[%c0_201, %c0_202, %c0_203], %704 {strides = array<i32>} : memref<1x8x32xf32, #tpu.memory_space<vmem>>, vector<1x8x32xf32>,
    return
  }
  func.func @transform_0(%arg0: i32, %arg1: i32) -> (i32, i32, i32) {
    %c0_i32 = arith.constant 0 : i32
    %c0_i32_0 = arith.constant 0 : i32
    %c0_i32_1 = arith.constant 0 : i32
    return %arg0, %c0_i32, %c0_i32_0 : i32, i32, i32
  }
  func.func @transform_1(%arg0: i32, %arg1: i32) -> (i32, i32, i32) {
    %c0_i32 = arith.constant 0 : i32
    %c0_i32_0 = arith.constant 0 : i32
    %c0_i32_1 = arith.constant 0 : i32
    return %arg1, %c0_i32, %c0_i32_0 : i32, i32, i32
  }
  func.func @transform_2(%arg0: i32, %arg1: i32) -> (i32, i32, i32) {
    %c0_i32 = arith.constant 0 : i32
    %c0_i32_0 = arith.constant 0 : i32
    %c0_i32_1 = arith.constant 0 : i32
    return %arg1, %c0_i32, %c0_i32_0 : i32, i32, i32
  }
  func.func @transform_3(%arg0: i32, %arg1: i32) -> (i32, i32, i32) {
    %c0_i32 = arith.constant 0 : i32
    %c0_i32_0 = arith.constant 0 : i32
    %c0_i32_1 = arith.constant 0 : i32
    return %arg1, %c0_i32, %c0_i32_0 : i32, i32, i32
  }
  func.func @transform_4(%arg0: i32, %arg1: i32) -> (i32, i32, i32, i32) {
    %c0_i32 = arith.constant 0 : i32
    %c0_i32_0 = arith.constant 0 : i32
    %c0_i32_1 = arith.constant 0 : i32
    %c0_i32_2 = arith.constant 0 : i32
    return %arg1, %c0_i32, %c0_i32_0, %c0_i32_1 : i32, i32, i32, i32
  }
  func.func @transform_5(%arg0: i32, %arg1: i32) -> (i32, i32, i32) {
    %c0_i32 = arith.constant 0 : i32
    %c0_i32_0 = arith.constant 0 : i32
    %c0_i32_1 = arith.constant 0 : i32
    return %arg1, %c0_i32, %c0_i32_0 : i32, i32, i32
  }
  func.func @transform_6(%arg0: i32, %arg1: i32) -> (i32, i32, i32) {
    %c0_i32 = arith.constant 0 : i32
    %c0_i32_0 = arith.constant 0 : i32
    %c0_i32_1 = arith.constant 0 : i32
    return %arg1, %c0_i32, %c0_i32_0 : i32, i32, i32
  }
  func.func @transform_7(%arg0: i32, %arg1: i32) -> (i32, i32, i32) {
    %c0_i32 = arith.constant 0 : i32
    %c0_i32_0 = arith.constant 0 : i32
    %c0_i32_1 = arith.constant 0 : i32
    return %arg1, %c0_i32, %c0_i32_0 : i32, i32, i32
  }
  func.func @transform_8(%arg0: i32, %arg1: i32) -> (i32, i32, i32) {
    %c0_i32 = arith.constant 0 : i32
    %c0_i32_0 = arith.constant 0 : i32
    %c0_i32_1 = arith.constant 0 : i32
    return %arg1, %c0_i32, %c0_i32_0 : i32, i32, i32
  }
  func.func @transform_9(%arg0: i32, %arg1: i32) -> (i32, i32, i32) {
    %c0_i32 = arith.constant 0 : i32
    %c0_i32_0 = arith.constant 0 : i32
    %c0_i32_1 = arith.constant 0 : i32
    return %arg1, %c0_i32, %c0_i32_0 : i32, i32, i32
  }
  func.func @transform_10(%arg0: i32, %arg1: i32) -> (i32, i32, i32) {
    %c0_i32 = arith.constant 0 : i32
    %c0_i32_0 = arith.constant 0 : i32
    %c0_i32_1 = arith.constant 0 : i32
    return %arg1, %c0_i32, %c0_i32_0 : i32, i32, i32
  }
  func.func @transform_11(%arg0: i32, %arg1: i32) -> (i32, i32, i32) {
    %c0_i32 = arith.constant 0 : i32
    %c0_i32_0 = arith.constant 0 : i32
    %c0_i32_1 = arith.constant 0 : i32
    return %arg1, %c0_i32, %c0_i32_0 : i32, i32, i32
  }
  func.func @transform_12(%arg0: i32, %arg1: i32) -> (i32, i32, i32) {
    %c0_i32 = arith.constant 0 : i32
    %c0_i32_0 = arith.constant 0 : i32
    %c0_i32_1 = arith.constant 0 : i32
    return %arg1, %c0_i32, %c0_i32_0 : i32, i32, i32
  }
  func.func @transform_13(%arg0: i32, %arg1: i32) -> (i32, i32, i32) {
    %c0_i32 = arith.constant 0 : i32
    %c0_i32_0 = arith.constant 0 : i32
    %c0_i32_1 = arith.constant 0 : i32
    return %arg0, %c0_i32, %c0_i32_0 : i32, i32, i32
  }
}

</mosaic_0001>

<llo_original>
// kernel: tpu_custom_call.1
$region0: #{tpu_custom_call.1}
  #allocation0 [shape = 'u32[]', space=smem, size = 0x4, offset = 0x4, fixed_abs, tag = 'smem constant byte address 0x4 - core index']
  #allocation1 [shape = 'u32[144,128]{1,0:T(1,128)}', space=vmem, size = 0x12000, scoped, tag = 'internal scratch']
  %s0 = inlined_call_operand.hbm [shape: f32[8,128], index: 0, kind: input, shape index: {}]
  %s1 = inlined_call_operand.hbm [shape: f32[8,8], index: 1, kind: output, shape index: {}]
  %s2 = sld [smem:[#allocation0]]
  $region18: #{tpu_custom_call.1} parent=0
    _
  %s4 = ssub.s32 1, %s2
  %s5 = scalar_select 0, %s4, %s2
  $region1: #{tpu_custom_call.1} parent=0
    #allocation2 [shape = 'u8[4096]{0}', space=vmem, size = 0x1000, scoped, tag = 'input window, operand 0, single buffered']
    #allocation3 [shape = 's32[1]{0}', space=sflag, size = 0x4, scoped, tag = 'scoped memory for tpu_custom_call.1']
    #allocation4 [shape = 's32[1]{0}', space=sflag, size = 0x4, scoped, tag = 'scoped memory for tpu_custom_call.1']
    #allocation5 [shape = 'u8[4096]{0}', space=vmem, size = 0x1000, scoped, tag = 'output window, operand 0, single buffered']
    %6 = vsyncpa [#allocation3], 0
    %7 = vsyncpa [#allocation4], 0
    // Predicated region
    $region2: #{tpu_custom_call.1} parent=1 // pred_check
      _
    $region3: #{tpu_custom_call.1} parent=1 // pred_check_branch
      %9 = sbr.rel (0) target = $region5
    $region4: #{tpu_custom_call.1} parent=1 // pred_region
      %s11 = ssub.s32 128, 128
      %12 = vsyncadd [#allocation3], %s11
      %s14 = sshll.u32 [#allocation2], 4
      %s15 = int_to_ptr.vmem [resolvable:$true] %s14
      %17 = dma.hbm_to_vmem [thread:$0]  %s0, 128, %s15, [#allocation3]
    $region5: #{tpu_custom_call.1} parent=1 // pred_fallthru
      _
    // Predicated region
    $region6: #{tpu_custom_call.1} parent=1 // pred_check
      _
    $region7: #{tpu_custom_call.1} parent=1 // pred_check_branch
      %19 = sbr.rel (0) target = $region9
    $region8: #{tpu_custom_call.1} parent=1 // pred_region
      %20 = dma.done [#allocation3], 128
    $region9: #{tpu_custom_call.1} parent=1 // pred_fallthru
      _
    %v21 = vld [vmem:[#allocation2] sm:$0xff]
    %s23 = sor.u32 256, 121
    %24 = vrot.lane.b32.xlu0 %v21, %s23
    %v25 = vpop.permute.xlu0 %24
    %vm26 = vcmask 64512
    %27 = vst.msk [vmem:[#allocation5] sm:$0xff] %vm26, %v25
    // Predicated region
    $region10: #{tpu_custom_call.1} parent=1 // pred_check
      _
    $region11: #{tpu_custom_call.1} parent=1 // pred_check_branch
      %29 = sbr.rel (0) target = $region13
    $region12: #{tpu_custom_call.1} parent=1 // pred_region
      %s31 = ssub.s32 128, 128
      %32 = vsyncadd [#allocation4], %s31
      %s34 = sshll.u32 [#allocation5], 4
      %s35 = int_to_ptr.vmem [resolvable:$true] %s34
      %37 = dma.vmem_to_hbm [thread:$0]  %s35, 128, %s1, [#allocation4]
    $region13: #{tpu_custom_call.1} parent=1 // pred_fallthru
      _
    // Predicated region
    $region14: #{tpu_custom_call.1} parent=1 // pred_check
      _
    $region15: #{tpu_custom_call.1} parent=1 // pred_check_branch
      %39 = sbr.rel (0) target = $region17
    $region16: #{tpu_custom_call.1} parent=1 // pred_region
      %40 = dma.done [#allocation4], 128
    $region17: #{tpu_custom_call.1} parent=1 // pred_fallthru
      _
    %41 = vsyncpa [#allocation3], 1
    %42 = vsyncpa [#allocation4], 1

// kernel: tpu_custom_call.1
$region0: #{tpu_custom_call.1}
  #allocation0 [shape = 'u32[]', space=smem, size = 0x4, offset = 0x4, fixed_abs, tag = 'smem constant byte address 0x4 - core index']
  #allocation1 [shape = 'u32[144,128]{1,0:T(1,128)}', space=vmem, size = 0x12000, scoped, tag = 'internal scratch']
  %s0 = inlined_call_operand.vmem [shape: f32[2,8,32], index: 0, kind: input, shape index: {}]
  %s1 = inlined_call_operand.vmem [shape: f32[2,1,32], index: 1, kind: input, shape index: {}]
  %s2 = inlined_call_operand.vmem [shape: f32[2,1,32], index: 2, kind: input, shape index: {}]
  %s3 = inlined_call_operand.vmem [shape: bf16[2,32,96], index: 3, kind: input, shape index: {}]
  %s4 = inlined_call_operand.vmem [shape: bf16[2,4,128,8], index: 4, kind: input, shape index: {}]
  %s5 = inlined_call_operand.vmem [shape: bf16[2,32,32], index: 5, kind: input, shape index: {}]
  %s6 = inlined_call_operand.vmem [shape: f32[2,1,32], index: 6, kind: input, shape index: {}]
  %s7 = inlined_call_operand.vmem [shape: f32[2,1,32], index: 7, kind: input, shape index: {}]
  %s8 = inlined_call_operand.vmem [shape: f32[2,1,32], index: 8, kind: input, shape index: {}]
  %s9 = inlined_call_operand.vmem [shape: bf16[2,32,128], index: 9, kind: input, shape index: {}]
  %s10 = inlined_call_operand.vmem [shape: f32[2,1,128], index: 10, kind: input, shape index: {}]
  %s11 = inlined_call_operand.vmem [shape: bf16[2,128,32], index: 11, kind: input, shape index: {}]
  %s12 = inlined_call_operand.vmem [shape: f32[2,1,32], index: 12, kind: input, shape index: {}]
  %s13 = inlined_call_operand.hbm [shape: f32[2,8,32], index: 13, kind: output, shape index: {}]
  %s14 = sld [smem:[#allocation0]]
  $region89: #{tpu_custom_call.1} parent=0
    _
  %s16 = ssub.s32 1, %s14
  %s17 = scalar_select 0, %s16, %s14
  $region1: #{tpu_custom_call.1} parent=0
    #allocation2 [shape = 'u8[8192]{0}', space=vmem, size = 0x2000, scoped, tag = 'output window, operand 0']
    #allocation3 [shape = 's32[2]{0}', space=sflag, size = 0x8, scoped, tag = 'scoped memory for tpu_custom_call.1']
    %18 = vsyncpa [#allocation3], 0
    %s19 = scalar_lea.sflag [#allocation3], 1
    %20 = vsyncpa %s19, 0
    loop: start=0, step=1, limit=6
    $region2: #{tpu_custom_call.1} parent=1 // loop_pre_header
      _
    $region3: #{tpu_custom_call.1} parent=1 // loop_header
      %s22 = sphi 0, %s26
      %p23 = scmp.ge.s32.totalorder %s22, 6
      %s29 = sphi 0, %s41
      %s30 = sphi 0, %s37
      %s31 = sphi 0, %s29
      %s32 = sphi 0, %s30
      %s33 = sphi 0, %s31
      %s34 = sphi 0, %s32
      %s44 = sphi 0, %s46
      %s47 = sphi 0, %s44
      %s48 = sphi 0, %s47
      %s64 = sphi 0, %s48
      %s70 = sphi 0, %s72
      %s73 = sphi 0, %s70
      %s74 = sphi 0, %s73
      %s90 = sphi 0, %s74
      %s96 = sphi 0, %s98
      %s99 = sphi 0, %s96
      %s100 = sphi 0, %s99
      %s116 = sphi 0, %s100
      %s122 = sphi 0, %s124
      %s125 = sphi 0, %s122
      %s126 = sphi 0, %s125
      %s142 = sphi 0, %s126
      %s148 = sphi 0, %s150
      %s151 = sphi 0, %s148
      %s152 = sphi 0, %s151
      %s168 = sphi 0, %s152
      %s174 = sphi 0, %s176
      %s177 = sphi 0, %s174
      %s178 = sphi 0, %s177
      %s194 = sphi 0, %s178
      %s200 = sphi 0, %s202
      %s203 = sphi 0, %s200
      %s204 = sphi 0, %s203
      %s220 = sphi 0, %s204
      %s226 = sphi 0, %s228
      %s229 = sphi 0, %s226
      %s230 = sphi 0, %s229
      %s246 = sphi 0, %s230
      %s252 = sphi 0, %s254
      %s255 = sphi 0, %s252
      %s256 = sphi 0, %s255
      %s272 = sphi 0, %s256
      %s278 = sphi 0, %s280
      %s281 = sphi 0, %s278
      %s282 = sphi 0, %s281
      %s298 = sphi 0, %s282
      %s304 = sphi 0, %s306
      %s307 = sphi 0, %s304
      %s308 = sphi 0, %s307
      %s324 = sphi 0, %s308
      %s330 = sphi 0, %s332
      %s333 = sphi 0, %s330
      %s334 = sphi 0, %s333
      %s350 = sphi 0, %s334
      %s356 = sphi 0, %s358
      %s359 = sphi 0, %s356
      %s360 = sphi 0, %s359
      %s376 = sphi 0, %s360
      %s382 = sphi 0, %s384
      %s385 = sphi 0, %s382
      %s386 = sphi 0, %s385
      %s402 = sphi 0, %s386
    $region4: #{tpu_custom_call.1} parent=1 // loop_header_branch
      %25 = sbr.rel (%p23) target = $region8
    $region5: #{tpu_custom_call.1} parent=1 // loop_body
      %s27 = ssub.s32 %s22, 1
      %s28 = ssub.s32 %s22, 2
      %s35 = sadd.s32 1, %s30
      %p36 = scmp.ge.s32.totalorder %s35, 2
      %s37 = scalar_select %p36, 0, %s35
      %s38 = sadd.s32 1, %s29
      %s39 = scalar_select %p36, %s38, %s29
      %p40 = scmp.ge.s32.totalorder %s39, 2
      %s41 = scalar_select %p40, 0, %s39
      %s42 = ssub.s32 %s29, %s41
      %p43 = scmp.eq.s32.totalorder %s42, 0
      %s45 = sadd.s32 %s44, 1
      %s46 = scalar_select %p43, %s44, %s45
      %p49 = pneg %p43
      %p50 = scmp.eq.s32.totalorder %s22, 3
      %p51 = por %p49, %p50
      %p52 = scmp.ne.s32.totalorder %s44, %s47
      %p53 = scmp.eq.s32.totalorder %s22, 0
      %p54 = por %p52, %p53
      %p55 = scmp.ne.s32.totalorder %s44, %s47
      %p56 = scmp.eq.s32.totalorder %s27, 3
      %p57 = por %p55, %p56
      %p58 = scmp.ne.s32.totalorder %s47, %s48
      %p59 = scmp.eq.s32.totalorder %s27, 0
      %p60 = por %p58, %p59
      %p61 = scmp.ne.s32.totalorder %s47, %s48
      %p62 = scmp.eq.s32.totalorder %s28, 3
      %p63 = por %p61, %p62
      %p65 = scmp.ne.s32.totalorder %s48, %s64
      %p66 = scmp.eq.s32.totalorder %s28, 0
      %p67 = por %p65, %p66
      %s68 = ssub.s32 %s30, %s37
      %p69 = scmp.eq.s32.totalorder %s68, 0
      %s71 = sadd.s32 %s70, 1
      %s72 = scalar_select %p69, %s70, %s71
      %p75 = pneg %p69
      %p76 = scmp.eq.s32.totalorder %s22, 3
      %p77 = por %p75, %p76
      %p78 = scmp.ne.s32.totalorder %s70, %s73
      %p79 = scmp.eq.s32.totalorder %s22, 0
      %p80 = por %p78, %p79
      %p81 = scmp.ne.s32.totalorder %s70, %s73
      %p82 = scmp.eq.s32.totalorder %s27, 3
      %p83 = por %p81, %p82
      %p84 = scmp.ne.s32.totalorder %s73, %s74
      %p85 = scmp.eq.s32.totalorder %s27, 0
      %p86 = por %p84, %p85
      %p87 = scmp.ne.s32.totalorder %s73, %s74
      %p88 = scmp.eq.s32.totalorder %s28, 3
      %p89 = por %p87, %p88
      %p91 = scmp.ne.s32.totalorder %s74, %s90
      %p92 = scmp.eq.s32.totalorder %s28, 0
      %p93 = por %p91, %p92
      %s94 = ssub.s32 %s30, %s37
      %p95 = scmp.eq.s32.totalorder %s94, 0
      %s97 = sadd.s32 %s96, 1
      %s98 = scalar_select %p95, %s96, %s97
      %p101 = pneg %p95
      %p102 = scmp.eq.s32.totalorder %s22, 3
      %p103 = por %p101, %p102
      %p104 = scmp.ne.s32.totalorder %s96, %s99
      %p105 = scmp.eq.s32.totalorder %s22, 0
      %p106 = por %p104, %p105
      %p107 = scmp.ne.s32.totalorder %s96, %s99
      %p108 = scmp.eq.s32.totalorder %s27, 3
      %p109 = por %p107, %p108
      %p110 = scmp.ne.s32.totalorder %s99, %s100
      %p111 = scmp.eq.s32.totalorder %s27, 0
      %p112 = por %p110, %p111
      %p113 = scmp.ne.s32.totalorder %s99, %s100
      %p114 = scmp.eq.s32.totalorder %s28, 3
      %p115 = por %p113, %p114
      %p117 = scmp.ne.s32.totalorder %s100, %s116
      %p118 = scmp.eq.s32.totalorder %s28, 0
      %p119 = por %p117, %p118
      %s120 = ssub.s32 %s30, %s37
      %p121 = scmp.eq.s32.totalorder %s120, 0
      %s123 = sadd.s32 %s122, 1
      %s124 = scalar_select %p121, %s122, %s123
      %p127 = pneg %p121
      %p128 = scmp.eq.s32.totalorder %s22, 3
      %p129 = por %p127, %p128
      %p130 = scmp.ne.s32.totalorder %s122, %s125
      %p131 = scmp.eq.s32.totalorder %s22, 0
      %p132 = por %p130, %p131
      %p133 = scmp.ne.s32.totalorder %s122, %s125
      %p134 = scmp.eq.s32.totalorder %s27, 3
      %p135 = por %p133, %p134
      %p136 = scmp.ne.s32.totalorder %s125, %s126
      %p137 = scmp.eq.s32.totalorder %s27, 0
      %p138 = por %p136, %p137
      %p139 = scmp.ne.s32.totalorder %s125, %s126
      %p140 = scmp.eq.s32.totalorder %s28, 3
      %p141 = por %p139, %p140
      %p143 = scmp.ne.s32.totalorder %s126, %s142
      %p144 = scmp.eq.s32.totalorder %s28, 0
      %p145 = por %p143, %p144
      %s146 = ssub.s32 %s30, %s37
      %p147 = scmp.eq.s32.totalorder %s146, 0
      %s149 = sadd.s32 %s148, 1
      %s150 = scalar_select %p147, %s148, %s149
      %p153 = pneg %p147
      %p154 = scmp.eq.s32.totalorder %s22, 3
      %p155 = por %p153, %p154
      %p156 = scmp.ne.s32.totalorder %s148, %s151
      %p157 = scmp.eq.s32.totalorder %s22, 0
      %p158 = por %p156, %p157
      %p159 = scmp.ne.s32.totalorder %s148, %s151
      %p160 = scmp.eq.s32.totalorder %s27, 3
      %p161 = por %p159, %p160
      %p162 = scmp.ne.s32.totalorder %s151, %s152
      %p163 = scmp.eq.s32.totalorder %s27, 0
      %p164 = por %p162, %p163
      %p165 = scmp.ne.s32.totalorder %s151, %s152
      %p166 = scmp.eq.s32.totalorder %s28, 3
      %p167 = por %p165, %p166
      %p169 = scmp.ne.s32.totalorder %s152, %s168
      %p170 = scmp.eq.s32.totalorder %s28, 0
      %p171 = por %p169, %p170
      %s172 = ssub.s32 %s30, %s37
      %p173 = scmp.eq.s32.totalorder %s172, 0
      %s175 = sadd.s32 %s174, 1
      %s176 = scalar_select %p173, %s174, %s175
      %p179 = pneg %p173
      %p180 = scmp.eq.s32.totalorder %s22, 3
      %p181 = por %p179, %p180
      %p182 = scmp.ne.s32.totalorder %s174, %s177
      %p183 = scmp.eq.s32.totalorder %s22, 0
      %p184 = por %p182, %p183
      %p185 = scmp.ne.s32.totalorder %s174, %s177
      %p186 = scmp.eq.s32.totalorder %s27, 3
      %p187 = por %p185, %p186
      %p188 = scmp.ne.s32.totalorder %s177, %s178
      %p189 = scmp.eq.s32.totalorder %s27, 0
      %p190 = por %p188, %p189
      %p191 = scmp.ne.s32.totalorder %s177, %s178
      %p192 = scmp.eq.s32.totalorder %s28, 3
      %p193 = por %p191, %p192
      %p195 = scmp.ne.s32.totalorder %s178, %s194
      %p196 = scmp.eq.s32.totalorder %s28, 0
      %p197 = por %p195, %p196
      %s198 = ssub.s32 %s30, %s37
      %p199 = scmp.eq.s32.totalorder %s198, 0
      %s201 = sadd.s32 %s200, 1
      %s202 = scalar_select %p199, %s200, %s201
      %p205 = pneg %p199
      %p206 = scmp.eq.s32.totalorder %s22, 3
      %p207 = por %p205, %p206
      %p208 = scmp.ne.s32.totalorder %s200, %s203
      %p209 = scmp.eq.s32.totalorder %s22, 0
      %p210 = por %p208, %p209
      %p211 = scmp.ne.s32.totalorder %s200, %s203
      %p212 = scmp.eq.s32.totalorder %s27, 3
      %p213 = por %p211, %p212
      %p214 = scmp.ne.s32.totalorder %s203, %s204
      %p215 = scmp.eq.s32.totalorder %s27, 0
      %p216 = por %p214, %p215
      %p217 = scmp.ne.s32.totalorder %s203, %s204
      %p218 = scmp.eq.s32.totalorder %s28, 3
      %p219 = por %p217, %p218
      %p221 = scmp.ne.s32.totalorder %s204, %s220
      %p222 = scmp.eq.s32.totalorder %s28, 0
      %p223 = por %p221, %p222
      %s224 = ssub.s32 %s30, %s37
      %p225 = scmp.eq.s32.totalorder %s224, 0
      %s227 = sadd.s32 %s226, 1
      %s228 = scalar_select %p225, %s226, %s227
      %p231 = pneg %p225
      %p232 = scmp.eq.s32.totalorder %s22, 3
      %p233 = por %p231, %p232
      %p234 = scmp.ne.s32.totalorder %s226, %s229
      %p235 = scmp.eq.s32.totalorder %s22, 0
      %p236 = por %p234, %p235
      %p237 = scmp.ne.s32.totalorder %s226, %s229
      %p238 = scmp.eq.s32.totalorder %s27, 3
      %p239 = por %p237, %p238
      %p240 = scmp.ne.s32.totalorder %s229, %s230
      %p241 = scmp.eq.s32.totalorder %s27, 0
      %p242 = por %p240, %p241
      %p243 = scmp.ne.s32.totalorder %s229, %s230
      %p244 = scmp.eq.s32.totalorder %s28, 3
      %p245 = por %p243, %p244
      %p247 = scmp.ne.s32.totalorder %s230, %s246
      %p248 = scmp.eq.s32.totalorder %s28, 0
      %p249 = por %p247, %p248
      %s250 = ssub.s32 %s30, %s37
      %p251 = scmp.eq.s32.totalorder %s250, 0
      %s253 = sadd.s32 %s252, 1
      %s254 = scalar_select %p251, %s252, %s253
      %p257 = pneg %p251
      %p258 = scmp.eq.s32.totalorder %s22, 3
      %p259 = por %p257, %p258
      %p260 = scmp.ne.s32.totalorder %s252, %s255
      %p261 = scmp.eq.s32.totalorder %s22, 0
      %p262 = por %p260, %p261
      %p263 = scmp.ne.s32.totalorder %s252, %s255
      %p264 = scmp.eq.s32.totalorder %s27, 3
      %p265 = por %p263, %p264
      %p266 = scmp.ne.s32.totalorder %s255, %s256
      %p267 = scmp.eq.s32.totalorder %s27, 0
      %p268 = por %p266, %p267
      %p269 = scmp.ne.s32.totalorder %s255, %s256
      %p270 = scmp.eq.s32.totalorder %s28, 3
      %p271 = por %p269, %p270
      %p273 = scmp.ne.s32.totalorder %s256, %s272
      %p274 = scmp.eq.s32.totalorder %s28, 0
      %p275 = por %p273, %p274
      %s276 = ssub.s32 %s30, %s37
      %p277 = scmp.eq.s32.totalorder %s276, 0
      %s279 = sadd.s32 %s278, 1
      %s280 = scalar_select %p277, %s278, %s279
      %p283 = pneg %p277
      %p284 = scmp.eq.s32.totalorder %s22, 3
      %p285 = por %p283, %p284
      %p286 = scmp.ne.s32.totalorder %s278, %s281
      %p287 = scmp.eq.s32.totalorder %s22, 0
      %p288 = por %p286, %p287
      %p289 = scmp.ne.s32.totalorder %s278, %s281
      %p290 = scmp.eq.s32.totalorder %s27, 3
      %p291 = por %p289, %p290
      %p292 = scmp.ne.s32.totalorder %s281, %s282
      %p293 = scmp.eq.s32.totalorder %s27, 0
      %p294 = por %p292, %p293
      %p295 = scmp.ne.s32.totalorder %s281, %s282
      %p296 = scmp.eq.s32.totalorder %s28, 3
      %p297 = por %p295, %p296
      %p299 = scmp.ne.s32.totalorder %s282, %s298
      %p300 = scmp.eq.s32.totalorder %s28, 0
      %p301 = por %p299, %p300
      %s302 = ssub.s32 %s30, %s37
      %p303 = scmp.eq.s32.totalorder %s302, 0
      %s305 = sadd.s32 %s304, 1
      %s306 = scalar_select %p303, %s304, %s305
      %p309 = pneg %p303
      %p310 = scmp.eq.s32.totalorder %s22, 3
      %p311 = por %p309, %p310
      %p312 = scmp.ne.s32.totalorder %s304, %s307
      %p313 = scmp.eq.s32.totalorder %s22, 0
      %p314 = por %p312, %p313
      %p315 = scmp.ne.s32.totalorder %s304, %s307
      %p316 = scmp.eq.s32.totalorder %s27, 3
      %p317 = por %p315, %p316
      %p318 = scmp.ne.s32.totalorder %s307, %s308
      %p319 = scmp.eq.s32.totalorder %s27, 0
      %p320 = por %p318, %p319
      %p321 = scmp.ne.s32.totalorder %s307, %s308
      %p322 = scmp.eq.s32.totalorder %s28, 3
      %p323 = por %p321, %p322
      %p325 = scmp.ne.s32.totalorder %s308, %s324
      %p326 = scmp.eq.s32.totalorder %s28, 0
      %p327 = por %p325, %p326
      %s328 = ssub.s32 %s30, %s37
      %p329 = scmp.eq.s32.totalorder %s328, 0
      %s331 = sadd.s32 %s330, 1
      %s332 = scalar_select %p329, %s330, %s331
      %p335 = pneg %p329
      %p336 = scmp.eq.s32.totalorder %s22, 3
      %p337 = por %p335, %p336
      %p338 = scmp.ne.s32.totalorder %s330, %s333
      %p339 = scmp.eq.s32.totalorder %s22, 0
      %p340 = por %p338, %p339
      %p341 = scmp.ne.s32.totalorder %s330, %s333
      %p342 = scmp.eq.s32.totalorder %s27, 3
      %p343 = por %p341, %p342
      %p344 = scmp.ne.s32.totalorder %s333, %s334
      %p345 = scmp.eq.s32.totalorder %s27, 0
      %p346 = por %p344, %p345
      %p347 = scmp.ne.s32.totalorder %s333, %s334
      %p348 = scmp.eq.s32.totalorder %s28, 3
      %p349 = por %p347, %p348
      %p351 = scmp.ne.s32.totalorder %s334, %s350
      %p352 = scmp.eq.s32.totalorder %s28, 0
      %p353 = por %p351, %p352
      %s354 = ssub.s32 %s30, %s37
      %p355 = scmp.eq.s32.totalorder %s354, 0
      %s357 = sadd.s32 %s356, 1
      %s358 = scalar_select %p355, %s356, %s357
      %p361 = pneg %p355
      %p362 = scmp.eq.s32.totalorder %s22, 3
      %p363 = por %p361, %p362
      %p364 = scmp.ne.s32.totalorder %s356, %s359
      %p365 = scmp.eq.s32.totalorder %s22, 0
      %p366 = por %p364, %p365
      %p367 = scmp.ne.s32.totalorder %s356, %s359
      %p368 = scmp.eq.s32.totalorder %s27, 3
      %p369 = por %p367, %p368
      %p370 = scmp.ne.s32.totalorder %s359, %s360
      %p371 = scmp.eq.s32.totalorder %s27, 0
      %p372 = por %p370, %p371
      %p373 = scmp.ne.s32.totalorder %s359, %s360
      %p374 = scmp.eq.s32.totalorder %s28, 3
      %p375 = por %p373, %p374
      %p377 = scmp.ne.s32.totalorder %s360, %s376
      %p378 = scmp.eq.s32.totalorder %s28, 0
      %p379 = por %p377, %p378
      %s380 = ssub.s32 %s29, %s41
      %p381 = scmp.eq.s32.totalorder %s380, 0
      %s383 = sadd.s32 %s382, 1
      %s384 = scalar_select %p381, %s382, %s383
      %p387 = pneg %p381
      %p388 = scmp.eq.s32.totalorder %s22, 3
      %p389 = por %p387, %p388
      %p390 = scmp.ne.s32.totalorder %s382, %s385
      %p391 = scmp.eq.s32.totalorder %s22, 0
      %p392 = por %p390, %p391
      %p393 = scmp.ne.s32.totalorder %s382, %s385
      %p394 = scmp.eq.s32.totalorder %s27, 3
      %p395 = por %p393, %p394
      %p396 = scmp.ne.s32.totalorder %s385, %s386
      %p397 = scmp.eq.s32.totalorder %s27, 0
      %p398 = por %p396, %p397
      %p399 = scmp.ne.s32.totalorder %s385, %s386
      %p400 = scmp.eq.s32.totalorder %s28, 3
      %p401 = por %p399, %p400
      %p403 = scmp.ne.s32.totalorder %s386, %s402
      %p404 = scmp.eq.s32.totalorder %s28, 0
      %p405 = por %p403, %p404
      %p406 = scmp.le.s32.totalorder 1, %s22
      %p407 = scmp.lt.s32.totalorder %s22, 5
      %p408 = pnand %p406, %p407
      %p409 = pneg %p408
      // Predicated region
      $region9: #{tpu_custom_call.1} parent=5 // pred_check
        _
      $region10: #{tpu_custom_call.1} parent=5 // pred_check_branch
        %411 = sbr.rel (%p408) target = $region12
      $region11: #{tpu_custom_call.1} parent=5 // pred_region
        %s412 = ssub.s32 %s22, 1
      $region12: #{tpu_custom_call.1} parent=5 // pred_fallthru
        _
      %p413 = scmp.lt.s32.totalorder %s22, 4
      // Predicated region
      $region13: #{tpu_custom_call.1} parent=5 // pred_check
        %p414 = pneg %p413
      $region14: #{tpu_custom_call.1} parent=5 // pred_check_branch
        %416 = sbr.rel (%p414) target = $region16
      $region15: #{tpu_custom_call.1} parent=5 // pred_region
        // Predicated region
        $region17: #{tpu_custom_call.1} parent=15 // pred_check
          %p417 = pneg %p54
        $region18: #{tpu_custom_call.1} parent=15 // pred_check_branch
          %419 = sbr.rel (%p417) target = $region20
        $region19: #{tpu_custom_call.1} parent=15 // pred_region
          %p420 = scmp.lt.s32.totalorder %s29, 1
          %s421 = scalar_select %p420, %s29, 1
          %s422 = smul.addr %s421, 8
          %s423 = scalar_lea.vmem %s0, %s422
        $region20: #{tpu_custom_call.1} parent=15 // pred_fallthru
          _
        // Predicated region
        $region21: #{tpu_custom_call.1} parent=15 // pred_check
          %p424 = pneg %p80
        $region22: #{tpu_custom_call.1} parent=15 // pred_check_branch
          %426 = sbr.rel (%p424) target = $region24
        $region23: #{tpu_custom_call.1} parent=15 // pred_region
          %p427 = scmp.lt.s32.totalorder %s30, 1
          %s428 = scalar_select %p427, %s30, 1
          %s429 = scalar_lea.vmem %s1, %s428
        $region24: #{tpu_custom_call.1} parent=15 // pred_fallthru
          _
        // Predicated region
        $region25: #{tpu_custom_call.1} parent=15 // pred_check
          %p430 = pneg %p106
        $region26: #{tpu_custom_call.1} parent=15 // pred_check_branch
          %432 = sbr.rel (%p430) target = $region28
        $region27: #{tpu_custom_call.1} parent=15 // pred_region
          %p433 = scmp.lt.s32.totalorder %s30, 1
          %s434 = scalar_select %p433, %s30, 1
          %s435 = scalar_lea.vmem %s2, %s434
        $region28: #{tpu_custom_call.1} parent=15 // pred_fallthru
          _
        // Predicated region
        $region29: #{tpu_custom_call.1} parent=15 // pred_check
          %p436 = pneg %p132
        $region30: #{tpu_custom_call.1} parent=15 // pred_check_branch
          %438 = sbr.rel (%p436) target = $region32
        $region31: #{tpu_custom_call.1} parent=15 // pred_region
          %p439 = scmp.lt.s32.totalorder %s30, 1
          %s440 = scalar_select %p439, %s30, 1
          %s441 = smul.addr %s440, 4
          %s442 = smul.addr %s441, 4
          %s443 = scalar_lea.vmem %s3, %s442
        $region32: #{tpu_custom_call.1} parent=15 // pred_fallthru
          _
        // Predicated region
        $region33: #{tpu_custom_call.1} parent=15 // pred_check
          %p444 = pneg %p158
        $region34: #{tpu_custom_call.1} parent=15 // pred_check_branch
          %446 = sbr.rel (%p444) target = $region36
        $region35: #{tpu_custom_call.1} parent=15 // pred_region
          %p447 = scmp.lt.s32.totalorder %s30, 1
          %s448 = scalar_select %p447, %s30, 1
          %s449 = smul.addr %s448, 64
          %s450 = smul.addr %s449, 4
          %s451 = scalar_lea.vmem %s4, %s450
        $region36: #{tpu_custom_call.1} parent=15 // pred_fallthru
          _
        // Predicated region
        $region37: #{tpu_custom_call.1} parent=15 // pred_check
          %p452 = pneg %p184
        $region38: #{tpu_custom_call.1} parent=15 // pred_check_branch
          %454 = sbr.rel (%p452) target = $region40
        $region39: #{tpu_custom_call.1} parent=15 // pred_region
          %p455 = scmp.lt.s32.totalorder %s30, 1
          %s456 = scalar_select %p455, %s30, 1
          %s457 = smul.addr %s456, 4
          %s458 = smul.addr %s457, 4
          %s459 = scalar_lea.vmem %s5, %s458
        $region40: #{tpu_custom_call.1} parent=15 // pred_fallthru
          _
        // Predicated region
        $region41: #{tpu_custom_call.1} parent=15 // pred_check
          %p460 = pneg %p210
        $region42: #{tpu_custom_call.1} parent=15 // pred_check_branch
          %462 = sbr.rel (%p460) target = $region44
        $region43: #{tpu_custom_call.1} parent=15 // pred_region
          %p463 = scmp.lt.s32.totalorder %s30, 1
          %s464 = scalar_select %p463, %s30, 1
          %s465 = scalar_lea.vmem %s6, %s464
        $region44: #{tpu_custom_call.1} parent=15 // pred_fallthru
          _
        // Predicated region
        $region45: #{tpu_custom_call.1} parent=15 // pred_check
          %p466 = pneg %p236
        $region46: #{tpu_custom_call.1} parent=15 // pred_check_branch
          %468 = sbr.rel (%p466) target = $region48
        $region47: #{tpu_custom_call.1} parent=15 // pred_region
          %p469 = scmp.lt.s32.totalorder %s30, 1
          %s470 = scalar_select %p469, %s30, 1
          %s471 = scalar_lea.vmem %s7, %s470
        $region48: #{tpu_custom_call.1} parent=15 // pred_fallthru
          _
        // Predicated region
        $region49: #{tpu_custom_call.1} parent=15 // pred_check
          %p472 = pneg %p262
        $region50: #{tpu_custom_call.1} parent=15 // pred_check_branch
          %474 = sbr.rel (%p472) target = $region52
        $region51: #{tpu_custom_call.1} parent=15 // pred_region
          %p475 = scmp.lt.s32.totalorder %s30, 1
          %s476 = scalar_select %p475, %s30, 1
          %s477 = scalar_lea.vmem %s8, %s476
        $region52: #{tpu_custom_call.1} parent=15 // pred_fallthru
          _
        // Predicated region
        $region53: #{tpu_custom_call.1} parent=15 // pred_check
          %p478 = pneg %p288
        $region54: #{tpu_custom_call.1} parent=15 // pred_check_branch
          %480 = sbr.rel (%p478) target = $region56
        $region55: #{tpu_custom_call.1} parent=15 // pred_region
          %p481 = scmp.lt.s32.totalorder %s30, 1
          %s482 = scalar_select %p481, %s30, 1
          %s483 = smul.addr %s482, 4
          %s484 = smul.addr %s483, 4
          %s485 = scalar_lea.vmem %s9, %s484
        $region56: #{tpu_custom_call.1} parent=15 // pred_fallthru
          _
        // Predicated region
        $region57: #{tpu_custom_call.1} parent=15 // pred_check
          %p486 = pneg %p314
        $region58: #{tpu_custom_call.1} parent=15 // pred_check_branch
          %488 = sbr.rel (%p486) target = $region60
        $region59: #{tpu_custom_call.1} parent=15 // pred_region
          %p489 = scmp.lt.s32.totalorder %s30, 1
          %s490 = scalar_select %p489, %s30, 1
          %s491 = scalar_lea.vmem %s10, %s490
        $region60: #{tpu_custom_call.1} parent=15 // pred_fallthru
          _
        // Predicated region
        $region61: #{tpu_custom_call.1} parent=15 // pred_check
          %p492 = pneg %p340
        $region62: #{tpu_custom_call.1} parent=15 // pred_check_branch
          %494 = sbr.rel (%p492) target = $region64
        $region63: #{tpu_custom_call.1} parent=15 // pred_region
          %p495 = scmp.lt.s32.totalorder %s30, 1
          %s496 = scalar_select %p495, %s30, 1
          %s497 = smul.addr %s496, 16
          %s498 = smul.addr %s497, 4
          %s499 = scalar_lea.vmem %s11, %s498
        $region64: #{tpu_custom_call.1} parent=15 // pred_fallthru
          _
        // Predicated region
        $region65: #{tpu_custom_call.1} parent=15 // pred_check
          %p500 = pneg %p366
        $region66: #{tpu_custom_call.1} parent=15 // pred_check_branch
          %502 = sbr.rel (%p500) target = $region68
        $region67: #{tpu_custom_call.1} parent=15 // pred_region
          %p503 = scmp.lt.s32.totalorder %s30, 1
          %s504 = scalar_select %p503, %s30, 1
          %s505 = scalar_lea.vmem %s12, %s504
        $region68: #{tpu_custom_call.1} parent=15 // pred_fallthru
          _
      $region16: #{tpu_custom_call.1} parent=5 // pred_fallthru
        _
      %p506 = scmp.le.s32.totalorder 1, %s22
      %p507 = scmp.lt.s32.totalorder %s22, 5
      %p508 = pnand %p506, %p507
      %p509 = pneg %p508
      // Predicated region
      $region69: #{tpu_custom_call.1} parent=5 // pred_check
        _
      $region70: #{tpu_custom_call.1} parent=5 // pred_check_branch
        %511 = sbr.rel (%p508) target = $region72
      $region71: #{tpu_custom_call.1} parent=5 // pred_region
        %s512 = ssub.s32 %s22, 1
        %p513 = scmp.lt.s32.totalorder %s31, 1
        %s514 = scalar_select %p513, %s31, 1
        %s515 = smul.addr %s514, 8
        %s516 = scalar_lea.vmem %s0, %s515
        %p517 = pneg %p60
        %p518 = pneg %p57
        %p519 = scmp.lt.s32.totalorder %s32, 1
        %s520 = scalar_select %p519, %s32, 1
        %s521 = scalar_lea.vmem %s1, %s520
        %p522 = pneg %p86
        %p523 = pneg %p83
        %p524 = scmp.lt.s32.totalorder %s32, 1
        %s525 = scalar_select %p524, %s32, 1
        %s526 = scalar_lea.vmem %s2, %s525
        %p527 = pneg %p112
        %p528 = pneg %p109
        %p529 = scmp.lt.s32.totalorder %s32, 1
        %s530 = scalar_select %p529, %s32, 1
        %s531 = smul.addr %s530, 4
        %s532 = smul.addr %s531, 4
        %s533 = scalar_lea.vmem %s3, %s532
        %p534 = pneg %p138
        %p535 = pneg %p135
        %p536 = scmp.lt.s32.totalorder %s32, 1
        %s537 = scalar_select %p536, %s32, 1
        %s538 = smul.addr %s537, 64
        %s539 = smul.addr %s538, 4
        %s540 = scalar_lea.vmem %s4, %s539
        %p541 = pneg %p164
        %p542 = pneg %p161
        %p543 = scmp.lt.s32.totalorder %s32, 1
        %s544 = scalar_select %p543, %s32, 1
        %s545 = smul.addr %s544, 4
        %s546 = smul.addr %s545, 4
        %s547 = scalar_lea.vmem %s5, %s546
        %p548 = pneg %p190
        %p549 = pneg %p187
        %p550 = scmp.lt.s32.totalorder %s32, 1
        %s551 = scalar_select %p550, %s32, 1
        %s552 = scalar_lea.vmem %s6, %s551
        %p553 = pneg %p216
        %p554 = pneg %p213
        %p555 = scmp.lt.s32.totalorder %s32, 1
        %s556 = scalar_select %p555, %s32, 1
        %s557 = scalar_lea.vmem %s7, %s556
        %p558 = pneg %p242
        %p559 = pneg %p239
        %p560 = scmp.lt.s32.totalorder %s32, 1
        %s561 = scalar_select %p560, %s32, 1
        %s562 = scalar_lea.vmem %s8, %s561
        %p563 = pneg %p268
        %p564 = pneg %p265
        %p565 = scmp.lt.s32.totalorder %s32, 1
        %s566 = scalar_select %p565, %s32, 1
        %s567 = smul.addr %s566, 4
        %s568 = smul.addr %s567, 4
        %s569 = scalar_lea.vmem %s9, %s568
        %p570 = pneg %p294
        %p571 = pneg %p291
        %p572 = scmp.lt.s32.totalorder %s32, 1
        %s573 = scalar_select %p572, %s32, 1
        %s574 = scalar_lea.vmem %s10, %s573
        %p575 = pneg %p320
        %p576 = pneg %p317
        %p577 = scmp.lt.s32.totalorder %s32, 1
        %s578 = scalar_select %p577, %s32, 1
        %s579 = smul.addr %s578, 16
        %s580 = smul.addr %s579, 4
        %s581 = scalar_lea.vmem %s11, %s580
        %p582 = pneg %p346
        %p583 = pneg %p343
        %p584 = scmp.lt.s32.totalorder %s32, 1
        %s585 = scalar_select %p584, %s32, 1
        %s586 = scalar_lea.vmem %s12, %s585
        %p587 = pneg %p372
        %p588 = pneg %p369
        %p589 = pneg %p398
        %p590 = pneg %p395
        %s591 = sand.u32 %s385, 1
        %s592 = scalar_lea.sflag [#allocation3], %s591
        %s593 = sand.u32 %s385, 1
        %s594 = smul.addr %s593, 8
        %s595 = scalar_lea.vmem [#allocation2], %s594
        %p596 = scmp.lt.s32.totalorder %s31, 1
        %s597 = scalar_select %p596, %s31, 1
        %s598 = smul.addr %s597, 8
        %s599 = scalar_lea.vmem %s0, %s598
        %p600 = scmp.lt.s32.totalorder %s32, 1
        %s601 = scalar_select %p600, %s32, 1
        %s602 = scalar_lea.vmem %s1, %s601
        %p603 = scmp.lt.s32.totalorder %s32, 1
        %s604 = scalar_select %p603, %s32, 1
        %s605 = scalar_lea.vmem %s2, %s604
        %p606 = scmp.lt.s32.totalorder %s32, 1
        %s607 = scalar_select %p606, %s32, 1
        %s608 = smul.addr %s607, 4
        %s609 = smul.addr %s608, 4
        %s610 = scalar_lea.vmem %s3, %s609
        %p611 = scmp.lt.s32.totalorder %s32, 1
        %s612 = scalar_select %p611, %s32, 1
        %s613 = smul.addr %s612, 64
        %s614 = smul.addr %s613, 4
        %s615 = scalar_lea.vmem %s4, %s614
        %p616 = scmp.lt.s32.totalorder %s32, 1
        %s617 = scalar_select %p616, %s32, 1
        %s618 = smul.addr %s617, 4
        %s619 = smul.addr %s618, 4
        %s620 = scalar_lea.vmem %s5, %s619
        %p621 = scmp.lt.s32.totalorder %s32, 1
        %s622 = scalar_select %p621, %s32, 1
        %s623 = scalar_lea.vmem %s6, %s622
        %p624 = scmp.lt.s32.totalorder %s32, 1
        %s625 = scalar_select %p624, %s32, 1
        %s626 = scalar_lea.vmem %s7, %s625
        %p627 = scmp.lt.s32.totalorder %s32, 1
        %s628 = scalar_select %p627, %s32, 1
        %s629 = scalar_lea.vmem %s8, %s628
        %p630 = scmp.lt.s32.totalorder %s32, 1
        %s631 = scalar_select %p630, %s32, 1
        %s632 = smul.addr %s631, 4
        %s633 = smul.addr %s632, 4
        %s634 = scalar_lea.vmem %s9, %s633
        %p635 = scmp.lt.s32.totalorder %s32, 1
        %s636 = scalar_select %p635, %s32, 1
        %s637 = scalar_lea.vmem %s10, %s636
        %p638 = scmp.lt.s32.totalorder %s32, 1
        %s639 = scalar_select %p638, %s32, 1
        %s640 = smul.addr %s639, 16
        %s641 = smul.addr %s640, 4
        %s642 = scalar_lea.vmem %s11, %s641
        %p643 = scmp.lt.s32.totalorder %s32, 1
        %s644 = scalar_select %p643, %s32, 1
        %s645 = scalar_lea.vmem %s12, %s644
        %p647 = scmp.eq.s32.totalorder %s32, 0
        // Predicated region
        $region73: #{tpu_custom_call.1} parent=71 // pred_check
          %p648 = pneg %p647
        $region74: #{tpu_custom_call.1} parent=71 // pred_check_branch
          %650 = sbr.rel (%p648) target = $region76
        $region75: #{tpu_custom_call.1} parent=71 // pred_region
          %v651 = vld [vmem:[%s599] sm:$0xff]
          %vm652 = vcmask 261120
          %653 = vst.msk [vmem:[%s595] sm:$0xff] %vm652, %v651
        $region76: #{tpu_custom_call.1} parent=71 // pred_fallthru
          _
        %v654 = vld [vmem:[%s595] sm:$0xff]
        %v655 = vld [vmem:[%s602] sm:$0x1]
        %v656 = vld [vmem:[%s605] sm:$0x1]
        %vm657 = vcmask 261120
        %v658 = vsel %vm657, %v654, 0.0
        %659 = vadd.xlane.f32.xlu0 %v658
        %v660 = vpop.xlane.xlu0 %659
        %v661 = vrcp.pop 32.0
        %v662 = vmul.f32 %v660, %v661
        %v663 = vsub.f32 %v654, %v662
        %v664 = vmul.f32 %v663, %v663
        %v665 = vsel %vm657, %v664, 0.0
        %666 = vadd.xlane.f32.xlu0 %v665
        %v667 = vpop.xlane.xlu0 %666
        %v668 = vmul.f32 %v667, %v661
        %v669 = vadd.f32 %v668, 1e-05
        %v670 = vrsqrt.pop %v669
        %v671 = vmul.f32 %v663, %v670
        %v673 = vlaneseq
        %v674 = vshrl.u32 %v673, 7
        %v675 = vsub.s32 0, %v674
        %v676 = vrot.slane %v655, %v675
        %v678 = vmul.f32 %v671, %v676
        %v680 = vlaneseq
        %v681 = vshrl.u32 %v680, 7
        %v682 = vsub.s32 0, %v681
        %v683 = vrot.slane %v656, %v682
        %v685 = vadd.f32 %v678, %v683
        %v686 = vpack.c.bf16 %v685, %v685
        %v687 = vld [vmem:[%s610] sm:$0xf]
        %v688 = vld [vmem:[%s610 + $0x4] sm:$0xf]
        %v689 = vld [vmem:[%s610 + $0x8] sm:$0xf]
        %v690 = vld [vmem:[%s610 + $0xc] sm:$0xf]
        %v695 = vunpack.c.l.b16 %v687
        %v696 = vunpack.c.l.b16 %v688
        %v697 = vunpack.c.l.b16 %v689
        %v698 = vunpack.c.l.b16 %v690
        %v699 = vpack.c.b16 %v696, %v695
        %v700 = vpack.c.b16 %v698, %v697
        %v704 = vsel %vm657, %v686, 0
        %706 = vmatprep.subr.bf16.mxu0 0
        %707 = vmatpush1.bf16.msra.mxu0 0
        %708 = vmatprep.subr.bf16.mxu0 0
        %709 = vmatpush1.bf16.msra.mxu0 0
        %710 = vmatprep.subr.bf16.mxu0 0
        %711 = vmatpush1.bf16.msra.mxu0 0
        %712 = vmatprep.subr.bf16.mxu0 0
        %713 = vmatpush1.bf16.msra.mxu0 0
        %714 = vmatprep.subr.bf16.mxu0 0
        %715 = vmatpush1.bf16.msra.mxu0 0
        %716 = vmatprep.subr.bf16.mxu0 0
        %717 = vmatpush1.bf16.msra.mxu0 0
        %718 = vmatprep.subr.bf16.mxu0 0
        %719 = vmatpush1.bf16.msra.mxu0 %v700
        %720 = vmatprep.subr.bf16.mxu0 0
        %721 = vmatpush1.bf16.msra.mxu0 %v699
        %722 = vmatprep.subr.bf16.mxu0 0
        %723 = vmatpush2.bf16.msra.mxu0 0
        %724 = vmatprep.subr.bf16.mxu0 0
        %725 = vmatpush2.bf16.msra.mxu0 0
        %726 = vmatprep.subr.bf16.mxu0 0
        %727 = vmatpush2.bf16.msra.mxu0 0
        %728 = vmatprep.subr.bf16.mxu0 0
        %729 = vmatpush2.bf16.msra.mxu0 0
        %730 = vmatprep.subr.bf16.mxu0 0
        %731 = vmatpush2.bf16.msra.mxu0 0
        %732 = vmatprep.subr.bf16.mxu0 0
        %733 = vmatpush2.bf16.msra.mxu0 0
        %734 = vmatprep.subr.bf16.mxu0 0
        %735 = vmatpush2.bf16.msra.mxu0 0
        %736 = vmatprep.subr.bf16.mxu0 0
        %737 = vmatpush2.bf16.msra.mxu0 0
        %738 = vmatprep.mubr.bf16.mxu0 0
        %739 = vmatmul.mubr.bf16.gmra.mxu0 %v704
        %v740 = vpop.f32.mrf.mxu0
        %v741 = vadd.f32 0.0, %v740
        %v742 = vpop.f32.mrf.mxu0
        %v743 = vpop.f32.mrf.mxu0
        %v744 = vpop.f32.mrf.mxu0
        %745 = vdwg.mxu0
        %v746 = vpack.c.bf16 %v741, %v741
        %v747 = vlaneseq
        %v748 = vshrl.u32 %v747, 7
        %v749 = vlaneseq
        %v750 = vand.u32 %v749, 127
        %vm751 = vcmp.ge.s32.totalorder %v748, %v750
        %v752 = vld [vmem:[%s615] sm:$0xf]
        %v753 = vld [vmem:[%s615 + $0x4] sm:$0xf]
        %v754 = vld [vmem:[%s615 + $0x8] sm:$0xf]
        %v755 = vld [vmem:[%s615 + $0xc] sm:$0xf]
        %v756 = vld [vmem:[%s615 + $0x10] sm:$0xf]
        %v757 = vld [vmem:[%s615 + $0x14] sm:$0xf]
        %v758 = vld [vmem:[%s615 + $0x18] sm:$0xf]
        %v759 = vld [vmem:[%s615 + $0x1c] sm:$0xf]
        %v760 = vld [vmem:[%s615 + $0x20] sm:$0xf]
        %v761 = vld [vmem:[%s615 + $0x24] sm:$0xf]
        %v762 = vld [vmem:[%s615 + $0x28] sm:$0xf]
        %v763 = vld [vmem:[%s615 + $0x2c] sm:$0xf]
        %v764 = vld [vmem:[%s615 + $0x30] sm:$0xf]
        %v765 = vld [vmem:[%s615 + $0x34] sm:$0xf]
        %v766 = vld [vmem:[%s615 + $0x38] sm:$0xf]
        %v767 = vld [vmem:[%s615 + $0x3c] sm:$0xf]
        %v784 = vunpack.c.l.b16 %v752
        %v785 = vunpack.c.l.b16 %v753
        %v786 = vunpack.c.l.b16 %v754
        %v787 = vunpack.c.l.b16 %v755
        %v788 = vunpack.c.l.b16 %v756
        %v789 = vunpack.c.l.b16 %v757
        %v790 = vunpack.c.l.b16 %v758
        %v791 = vunpack.c.l.b16 %v759
        %v792 = vunpack.c.l.b16 %v760
        %v793 = vunpack.c.l.b16 %v761
        %v794 = vunpack.c.l.b16 %v762
        %v795 = vunpack.c.l.b16 %v763
        %v796 = vunpack.c.l.b16 %v764
        %v797 = vunpack.c.l.b16 %v765
        %v798 = vunpack.c.l.b16 %v766
        %v799 = vunpack.c.l.b16 %v767
        %v800 = vpack.c.b16 %v785, %v784
        %v801 = vpack.c.b16 %v787, %v786
        %v802 = vpack.c.b16 %v789, %v788
        %v803 = vpack.c.b16 %v791, %v790
        %v804 = vpack.c.b16 %v793, %v792
        %v805 = vpack.c.b16 %v795, %v794
        %v806 = vpack.c.b16 %v797, %v796
        %v807 = vpack.c.b16 %v799, %v798
        %809 = vrot.lane.b32.xlu0 %v746, 96
        %v810 = vpop.permute.xlu0 %809
        %vm811 = vcmask 64512
        %v813 = vsel %vm811, %v746, 0
        %v816 = vsel %vm811, %v800, 0
        %v819 = vsel %vm811, %v801, 0
        %v822 = vsel %vm811, %v802, 0
        %v825 = vsel %vm811, %v803, 0
        %v828 = vsel %vm811, %v804, 0
        %v831 = vsel %vm811, %v805, 0
        %v834 = vsel %vm811, %v806, 0
        %v837 = vsel %vm811, %v807, 0
        %v840 = vsel %vm811, %v810, 0
        %842 = vmatprep.subr.bf16.mxu0 0
        %843 = vmatpush1.bf16.xpose.msra.mxu0 %v837
        %844 = vmatprep.subr.bf16.mxu0 0
        %845 = vmatpush1.bf16.xpose.msra.mxu0 %v834
        %846 = vmatprep.subr.bf16.mxu0 0
        %847 = vmatpush1.bf16.xpose.msra.mxu0 %v831
        %848 = vmatprep.subr.bf16.mxu0 0
        %849 = vmatpush1.bf16.xpose.msra.mxu0 %v828
        %850 = vmatprep.subr.bf16.mxu0 0
        %851 = vmatpush1.bf16.xpose.msra.mxu0 %v825
        %852 = vmatprep.subr.bf16.mxu0 0
        %853 = vmatpush1.bf16.xpose.msra.mxu0 %v822
        %854 = vmatprep.subr.bf16.mxu0 0
        %855 = vmatpush1.bf16.xpose.msra.mxu0 %v819
        %856 = vmatprep.subr.bf16.mxu0 0
        %857 = vmatpush1.bf16.xpose.msra.mxu0 %v816
        %858 = vmatprep.subr.bf16.mxu0 0
        %859 = vmatpush2.bf16.xpose.msra.mxu0 0
        %860 = vmatprep.subr.bf16.mxu0 0
        %861 = vmatpush2.bf16.xpose.msra.mxu0 0
        %862 = vmatprep.subr.bf16.mxu0 0
        %863 = vmatpush2.bf16.xpose.msra.mxu0 0
        %864 = vmatprep.subr.bf16.mxu0 0
        %865 = vmatpush2.bf16.xpose.msra.mxu0 0
        %866 = vmatprep.subr.bf16.mxu0 0
        %867 = vmatpush2.bf16.xpose.msra.mxu0 0
        %868 = vmatprep.subr.bf16.mxu0 0
        %869 = vmatpush2.bf16.xpose.msra.mxu0 0
        %870 = vmatprep.subr.bf16.mxu0 0
        %871 = vmatpush2.bf16.xpose.msra.mxu0 0
        %872 = vmatprep.subr.bf16.mxu0 0
        %873 = vmatpush2.bf16.xpose.msra.mxu0 %v840
        %874 = vmatprep.mubr.bf16.mxu0 0
        %875 = vmatmul.mubr.bf16.gmra.mxu0 %v813
        %v876 = vpop.f32.mrf.mxu0
        %v877 = vadd.f32 0.0, %v876
        %v878 = vpop.f32.mrf.mxu0
        %v879 = vadd.f32 0.0, %v878
        %v880 = vpop.f32.mrf.mxu0
        %v881 = vpop.f32.mrf.mxu0
        %882 = vdwg.mxu0
        %v883 = vmul.f32 %v879, 0.35355338
        %v884 = vadd.s32 %v750, 7
        %v885 = vsub.s32 %v884, %v748
        %vm886 = vcmp.eq.s32.totalorder %v885, 0
        %888 = vset.pattern.permute.xlu0 0
        %889 = vperm.xlu0 %888, %v877
        %v890 = vpop.permute.xlu0 %889
        %v892 = vsel %vm886, %v890, 0.0
        %v893 = vadd.f32 %v892, 0.0
        %vm894 = vcmp.eq.s32.totalorder %v885, 1
        %895 = vset.pattern.permute.xlu0 1
        %896 = vperm.xlu0 %895, %v877
        %v897 = vpop.permute.xlu0 %896
        %v899 = vsel %vm894, %v897, 0.0
        %v900 = vadd.f32 %v893, %v899
        %vm901 = vcmp.eq.s32.totalorder %v885, 2
        %902 = vset.pattern.permute.xlu0 2
        %903 = vperm.xlu0 %902, %v877
        %v904 = vpop.permute.xlu0 %903
        %v906 = vsel %vm901, %v904, 0.0
        %v907 = vadd.f32 %v900, %v906
        %vm908 = vcmp.eq.s32.totalorder %v885, 3
        %909 = vset.pattern.permute.xlu0 3
        %910 = vperm.xlu0 %909, %v877
        %v911 = vpop.permute.xlu0 %910
        %v913 = vsel %vm908, %v911, 0.0
        %v914 = vadd.f32 %v907, %v913
        %vm915 = vcmp.eq.s32.totalorder %v885, 4
        %916 = vset.pattern.permute.xlu0 4
        %917 = vperm.xlu0 %916, %v877
        %v918 = vpop.permute.xlu0 %917
        %v920 = vsel %vm915, %v918, 0.0
        %v921 = vadd.f32 %v914, %v920
        %vm922 = vcmp.eq.s32.totalorder %v885, 5
        %923 = vset.pattern.permute.xlu0 5
        %924 = vperm.xlu0 %923, %v877
        %v925 = vpop.permute.xlu0 %924
        %v927 = vsel %vm922, %v925, 0.0
        %v928 = vadd.f32 %v921, %v927
        %vm929 = vcmp.eq.s32.totalorder %v885, 6
        %930 = vset.pattern.permute.xlu0 6
        %931 = vperm.xlu0 %930, %v877
        %v932 = vpop.permute.xlu0 %931
        %v934 = vsel %vm929, %v932, 0.0
        %v935 = vadd.f32 %v928, %v934
        %vm936 = vcmp.eq.s32.totalorder %v885, 7
        %937 = vset.pattern.permute.xlu0 7
        %938 = vperm.xlu0 %937, %v877
        %v939 = vpop.permute.xlu0 %938
        %v941 = vsel %vm936, %v939, 0.0
        %v942 = vadd.f32 %v935, %v941
        %vm943 = vcmp.eq.s32.totalorder %v885, 8
        %944 = vset.pattern.permute.xlu0 8
        %945 = vperm.xlu0 %944, %v877
        %v946 = vpop.permute.xlu0 %945
        %v948 = vsel %vm943, %v946, 0.0
        %v949 = vadd.f32 %v942, %v948
        %vm950 = vcmp.eq.s32.totalorder %v885, 9
        %951 = vset.pattern.permute.xlu0 9
        %952 = vperm.xlu0 %951, %v877
        %v953 = vpop.permute.xlu0 %952
        %v955 = vsel %vm950, %v953, 0.0
        %v956 = vadd.f32 %v949, %v955
        %vm957 = vcmp.eq.s32.totalorder %v885, 10
        %958 = vset.pattern.permute.xlu0 10
        %959 = vperm.xlu0 %958, %v877
        %v960 = vpop.permute.xlu0 %959
        %v962 = vsel %vm957, %v960, 0.0
        %v963 = vadd.f32 %v956, %v962
        %vm964 = vcmp.eq.s32.totalorder %v885, 11
        %965 = vset.pattern.permute.xlu0 11
        %966 = vperm.xlu0 %965, %v877
        %v967 = vpop.permute.xlu0 %966
        %v969 = vsel %vm964, %v967, 0.0
        %v970 = vadd.f32 %v963, %v969
        %vm971 = vcmp.eq.s32.totalorder %v885, 12
        %972 = vset.pattern.permute.xlu0 12
        %973 = vperm.xlu0 %972, %v877
        %v974 = vpop.permute.xlu0 %973
        %v976 = vsel %vm971, %v974, 0.0
        %v977 = vadd.f32 %v970, %v976
        %vm978 = vcmp.eq.s32.totalorder %v885, 13
        %979 = vset.pattern.permute.xlu0 13
        %980 = vperm.xlu0 %979, %v877
        %v981 = vpop.permute.xlu0 %980
        %v983 = vsel %vm978, %v981, 0.0
        %v984 = vadd.f32 %v977, %v983
        %vm985 = vcmp.eq.s32.totalorder %v885, 14
        %986 = vset.pattern.permute.xlu0 14
        %987 = vperm.xlu0 %986, %v877
        %v988 = vpop.permute.xlu0 %987
        %v990 = vsel %vm985, %v988, 0.0
        %v991 = vadd.f32 %v984, %v990
        %v992 = vadd.f32 %v883, %v991
        %v993 = vsel %vm751, %v992, -inf
        %v994 = vsel %vm811, %v993, -inf
        %995 = vmax.xlane.f32.xlu0 %v994
        %v996 = vpop.xlane.xlu0 %995
        %v997 = vsub.f32 %v993, %v996
        %v998 = vmul.f32 %v997, 1.442695
        %v999 = vpow.pop %v998
        %v1000 = vsel %vm811, %v999, 0.0
        %1001 = vadd.xlane.f32.xlu0 %v1000
        %v1002 = vpop.xlane.xlu0 %1001
        %v1003 = vrcp.pop %v1002
        %v1004 = vmul.f32 %v999, %v1003
        %v1005 = vpack.c.bf16 %v1004, %v1004
        %1006 = vrot.lane.b32.xlu0 %v746, 64
        %v1007 = vpop.permute.xlu0 %1006
        %v1009 = vsel %vm811, %v1005, 0
        %vm1011 = vcmask 1043456
        %v1013 = vsel %vm1011, %v1007, 0
        %1015 = vmatprep.subr.bf16.mxu0 0
        %1016 = vmatpush1.bf16.msra.mxu0 0
        %1017 = vmatprep.subr.bf16.mxu0 0
        %1018 = vmatpush1.bf16.msra.mxu0 0
        %1019 = vmatprep.subr.bf16.mxu0 0
        %1020 = vmatpush1.bf16.msra.mxu0 0
        %1021 = vmatprep.subr.bf16.mxu0 0
        %1022 = vmatpush1.bf16.msra.mxu0 0
        %1023 = vmatprep.subr.bf16.mxu0 0
        %1024 = vmatpush1.bf16.msra.mxu0 0
        %1025 = vmatprep.subr.bf16.mxu0 0
        %1026 = vmatpush1.bf16.msra.mxu0 0
        %1027 = vmatprep.subr.bf16.mxu0 0
        %1028 = vmatpush1.bf16.msra.mxu0 0
        %1029 = vmatprep.subr.bf16.mxu0 0
        %1030 = vmatpush1.bf16.msra.mxu0 %v1013
        %1031 = vmatprep.subr.bf16.mxu0 0
        %1032 = vmatpush2.bf16.msra.mxu0 0
        %1033 = vmatprep.subr.bf16.mxu0 0
        %1034 = vmatpush2.bf16.msra.mxu0 0
        %1035 = vmatprep.subr.bf16.mxu0 0
        %1036 = vmatpush2.bf16.msra.mxu0 0
        %1037 = vmatprep.subr.bf16.mxu0 0
        %1038 = vmatpush2.bf16.msra.mxu0 0
        %1039 = vmatprep.subr.bf16.mxu0 0
        %1040 = vmatpush2.bf16.msra.mxu0 0
        %1041 = vmatprep.subr.bf16.mxu0 0
        %1042 = vmatpush2.bf16.msra.mxu0 0
        %1043 = vmatprep.subr.bf16.mxu0 0
        %1044 = vmatpush2.bf16.msra.mxu0 0
        %1045 = vmatprep.subr.bf16.mxu0 0
        %1046 = vmatpush2.bf16.msra.mxu0 0
        %1047 = vmatprep.mubr.bf16.mxu0 0
        %1048 = vmatmul.mubr.bf16.gmra.mxu0 %v1009
        %v1049 = vpop.f32.mrf.mxu0
        %v1050 = vadd.f32 0.0, %v1049
        %v1051 = vpop.f32.mrf.mxu0
        %v1052 = vpop.f32.mrf.mxu0
        %v1053 = vpop.f32.mrf.mxu0
        %1054 = vdwg.mxu0
        %s1055 = scalar_lea.vmem %s615, 64
        %v1056 = vld [vmem:[%s1055] sm:$0xf]
        %v1057 = vld [vmem:[%s1055 + $0x4] sm:$0xf]
        %v1058 = vld [vmem:[%s1055 + $0x8] sm:$0xf]
        %v1059 = vld [vmem:[%s1055 + $0xc] sm:$0xf]
        %v1060 = vld [vmem:[%s1055 + $0x10] sm:$0xf]
        %v1061 = vld [vmem:[%s1055 + $0x14] sm:$0xf]
        %v1062 = vld [vmem:[%s1055 + $0x18] sm:$0xf]
        %v1063 = vld [vmem:[%s1055 + $0x1c] sm:$0xf]
        %v1064 = vld [vmem:[%s1055 + $0x20] sm:$0xf]
        %v1065 = vld [vmem:[%s1055 + $0x24] sm:$0xf]
        %v1066 = vld [vmem:[%s1055 + $0x28] sm:$0xf]
        %v1067 = vld [vmem:[%s1055 + $0x2c] sm:$0xf]
        %v1068 = vld [vmem:[%s1055 + $0x30] sm:$0xf]
        %v1069 = vld [vmem:[%s1055 + $0x34] sm:$0xf]
        %v1070 = vld [vmem:[%s1055 + $0x38] sm:$0xf]
        %v1071 = vld [vmem:[%s1055 + $0x3c] sm:$0xf]
        %v1088 = vunpack.c.l.b16 %v1056
        %v1089 = vunpack.c.l.b16 %v1057
        %v1090 = vunpack.c.l.b16 %v1058
        %v1091 = vunpack.c.l.b16 %v1059
        %v1092 = vunpack.c.l.b16 %v1060
        %v1093 = vunpack.c.l.b16 %v1061
        %v1094 = vunpack.c.l.b16 %v1062
        %v1095 = vunpack.c.l.b16 %v1063
        %v1096 = vunpack.c.l.b16 %v1064
        %v1097 = vunpack.c.l.b16 %v1065
        %v1098 = vunpack.c.l.b16 %v1066
        %v1099 = vunpack.c.l.b16 %v1067
        %v1100 = vunpack.c.l.b16 %v1068
        %v1101 = vunpack.c.l.b16 %v1069
        %v1102 = vunpack.c.l.b16 %v1070
        %v1103 = vunpack.c.l.b16 %v1071
        %v1104 = vpack.c.b16 %v1089, %v1088
        %v1105 = vpack.c.b16 %v1091, %v1090
        %v1106 = vpack.c.b16 %v1093, %v1092
        %v1107 = vpack.c.b16 %v1095, %v1094
        %v1108 = vpack.c.b16 %v1097, %v1096
        %v1109 = vpack.c.b16 %v1099, %v1098
        %v1110 = vpack.c.b16 %v1101, %v1100
        %v1111 = vpack.c.b16 %v1103, %v1102
        %1112 = vrot.lane.b32.xlu0 %v746, 88
        %v1113 = vpop.permute.xlu0 %1112
        %1114 = vrot.lane.b32.xlu0 %v746, 120
        %v1115 = vpop.permute.xlu0 %1114
        %v1117 = vsel %vm811, %v1115, 0
        %v1120 = vsel %vm811, %v1104, 0
        %v1123 = vsel %vm811, %v1105, 0
        %v1126 = vsel %vm811, %v1106, 0
        %v1129 = vsel %vm811, %v1107, 0
        %v1132 = vsel %vm811, %v1108, 0
        %v1135 = vsel %vm811, %v1109, 0
        %v1138 = vsel %vm811, %v1110, 0
        %v1141 = vsel %vm811, %v1111, 0
        %v1144 = vsel %vm811, %v1113, 0
        %1146 = vmatprep.subr.bf16.mxu0 0
        %1147 = vmatpush1.bf16.xpose.msra.mxu0 %v1141
        %1148 = vmatprep.subr.bf16.mxu0 0
        %1149 = vmatpush1.bf16.xpose.msra.mxu0 %v1138
        %1150 = vmatprep.subr.bf16.mxu0 0
        %1151 = vmatpush1.bf16.xpose.msra.mxu0 %v1135
        %1152 = vmatprep.subr.bf16.mxu0 0
        %1153 = vmatpush1.bf16.xpose.msra.mxu0 %v1132
        %1154 = vmatprep.subr.bf16.mxu0 0
        %1155 = vmatpush1.bf16.xpose.msra.mxu0 %v1129
        %1156 = vmatprep.subr.bf16.mxu0 0
        %1157 = vmatpush1.bf16.xpose.msra.mxu0 %v1126
        %1158 = vmatprep.subr.bf16.mxu0 0
        %1159 = vmatpush1.bf16.xpose.msra.mxu0 %v1123
        %1160 = vmatprep.subr.bf16.mxu0 0
        %1161 = vmatpush1.bf16.xpose.msra.mxu0 %v1120
        %1162 = vmatprep.subr.bf16.mxu0 0
        %1163 = vmatpush2.bf16.xpose.msra.mxu0 0
        %1164 = vmatprep.subr.bf16.mxu0 0
        %1165 = vmatpush2.bf16.xpose.msra.mxu0 0
        %1166 = vmatprep.subr.bf16.mxu0 0
        %1167 = vmatpush2.bf16.xpose.msra.mxu0 0
        %1168 = vmatprep.subr.bf16.mxu0 0
        %1169 = vmatpush2.bf16.xpose.msra.mxu0 0
        %1170 = vmatprep.subr.bf16.mxu0 0
        %1171 = vmatpush2.bf16.xpose.msra.mxu0 0
        %1172 = vmatprep.subr.bf16.mxu0 0
        %1173 = vmatpush2.bf16.xpose.msra.mxu0 0
        %1174 = vmatprep.subr.bf16.mxu0 0
        %1175 = vmatpush2.bf16.xpose.msra.mxu0 0
        %1176 = vmatprep.subr.bf16.mxu0 0
        %1177 = vmatpush2.bf16.xpose.msra.mxu0 %v1144
        %1178 = vmatprep.mubr.bf16.mxu0 0
        %1179 = vmatmul.mubr.bf16.gmra.mxu0 %v1117
        %v1180 = vpop.f32.mrf.mxu0
        %v1181 = vadd.f32 0.0, %v1180
        %v1182 = vpop.f32.mrf.mxu0
        %v1183 = vadd.f32 0.0, %v1182
        %v1184 = vpop.f32.mrf.mxu0
        %v1185 = vpop.f32.mrf.mxu0
        %1186 = vdwg.mxu0
        %v1187 = vmul.f32 %v1183, 0.35355338
        %1189 = vset.pattern.permute.xlu0 0
        %1190 = vperm.xlu0 %1189, %v1181
        %v1191 = vpop.permute.xlu0 %1190
        %v1193 = vsel %vm886, %v1191, 0.0
        %v1194 = vadd.f32 %v1193, 0.0
        %1195 = vset.pattern.permute.xlu0 1
        %1196 = vperm.xlu0 %1195, %v1181
        %v1197 = vpop.permute.xlu0 %1196
        %v1199 = vsel %vm894, %v1197, 0.0
        %v1200 = vadd.f32 %v1194, %v1199
        %1201 = vset.pattern.permute.xlu0 2
        %1202 = vperm.xlu0 %1201, %v1181
        %v1203 = vpop.permute.xlu0 %1202
        %v1205 = vsel %vm901, %v1203, 0.0
        %v1206 = vadd.f32 %v1200, %v1205
        %1207 = vset.pattern.permute.xlu0 3
        %1208 = vperm.xlu0 %1207, %v1181
        %v1209 = vpop.permute.xlu0 %1208
        %v1211 = vsel %vm908, %v1209, 0.0
        %v1212 = vadd.f32 %v1206, %v1211
        %1213 = vset.pattern.permute.xlu0 4
        %1214 = vperm.xlu0 %1213, %v1181
        %v1215 = vpop.permute.xlu0 %1214
        %v1217 = vsel %vm915, %v1215, 0.0
        %v1218 = vadd.f32 %v1212, %v1217
        %1219 = vset.pattern.permute.xlu0 5
        %1220 = vperm.xlu0 %1219, %v1181
        %v1221 = vpop.permute.xlu0 %1220
        %v1223 = vsel %vm922, %v1221, 0.0
        %v1224 = vadd.f32 %v1218, %v1223
        %1225 = vset.pattern.permute.xlu0 6
        %1226 = vperm.xlu0 %1225, %v1181
        %v1227 = vpop.permute.xlu0 %1226
        %v1229 = vsel %vm929, %v1227, 0.0
        %v1230 = vadd.f32 %v1224, %v1229
        %1231 = vset.pattern.permute.xlu0 7
        %1232 = vperm.xlu0 %1231, %v1181
        %v1233 = vpop.permute.xlu0 %1232
        %v1235 = vsel %vm936, %v1233, 0.0
        %v1236 = vadd.f32 %v1230, %v1235
        %1237 = vset.pattern.permute.xlu0 8
        %1238 = vperm.xlu0 %1237, %v1181
        %v1239 = vpop.permute.xlu0 %1238
        %v1241 = vsel %vm943, %v1239, 0.0
        %v1242 = vadd.f32 %v1236, %v1241
        %1243 = vset.pattern.permute.xlu0 9
        %1244 = vperm.xlu0 %1243, %v1181
        %v1245 = vpop.permute.xlu0 %1244
        %v1247 = vsel %vm950, %v1245, 0.0
        %v1248 = vadd.f32 %v1242, %v1247
        %1249 = vset.pattern.permute.xlu0 10
        %1250 = vperm.xlu0 %1249, %v1181
        %v1251 = vpop.permute.xlu0 %1250
        %v1253 = vsel %vm957, %v1251, 0.0
        %v1254 = vadd.f32 %v1248, %v1253
        %1255 = vset.pattern.permute.xlu0 11
        %1256 = vperm.xlu0 %1255, %v1181
        %v1257 = vpop.permute.xlu0 %1256
        %v1259 = vsel %vm964, %v1257, 0.0
        %v1260 = vadd.f32 %v1254, %v1259
        %1261 = vset.pattern.permute.xlu0 12
        %1262 = vperm.xlu0 %1261, %v1181
        %v1263 = vpop.permute.xlu0 %1262
        %v1265 = vsel %vm971, %v1263, 0.0
        %v1266 = vadd.f32 %v1260, %v1265
        %1267 = vset.pattern.permute.xlu0 13
        %1268 = vperm.xlu0 %1267, %v1181
        %v1269 = vpop.permute.xlu0 %1268
        %v1271 = vsel %vm978, %v1269, 0.0
        %v1272 = vadd.f32 %v1266, %v1271
        %1273 = vset.pattern.permute.xlu0 14
        %1274 = vperm.xlu0 %1273, %v1181
        %v1275 = vpop.permute.xlu0 %1274
        %v1277 = vsel %vm985, %v1275, 0.0
        %v1278 = vadd.f32 %v1272, %v1277
        %v1279 = vadd.f32 %v1187, %v1278
        %v1280 = vsel %vm751, %v1279, -inf
        %v1281 = vsel %vm811, %v1280, -inf
        %1282 = vmax.xlane.f32.xlu0 %v1281
        %v1283 = vpop.xlane.xlu0 %1282
        %v1284 = vsub.f32 %v1280, %v1283
        %v1285 = vmul.f32 %v1284, 1.442695
        %v1286 = vpow.pop %v1285
        %v1287 = vsel %vm811, %v1286, 0.0
        %1288 = vadd.xlane.f32.xlu0 %v1287
        %v1289 = vpop.xlane.xlu0 %1288
        %v1290 = vrcp.pop %v1289
        %v1291 = vmul.f32 %v1286, %v1290
        %v1292 = vpack.c.bf16 %v1291, %v1291
        %1293 = vrot.lane.b32.xlu0 %v746, 56
        %v1294 = vpop.permute.xlu0 %1293
        %v1296 = vsel %vm811, %v1292, 0
        %v1299 = vsel %vm1011, %v1294, 0
        %1301 = vmatprep.subr.bf16.mxu0 0
        %1302 = vmatpush1.bf16.msra.mxu0 0
        %1303 = vmatprep.subr.bf16.mxu0 0
        %1304 = vmatpush1.bf16.msra.mxu0 0
        %1305 = vmatprep.subr.bf16.mxu0 0
        %1306 = vmatpush1.bf16.msra.mxu0 0
        %1307 = vmatprep.subr.bf16.mxu0 0
        %1308 = vmatpush1.bf16.msra.mxu0 0
        %1309 = vmatprep.subr.bf16.mxu0 0
        %1310 = vmatpush1.bf16.msra.mxu0 0
        %1311 = vmatprep.subr.bf16.mxu0 0
        %1312 = vmatpush1.bf16.msra.mxu0 0
        %1313 = vmatprep.subr.bf16.mxu0 0
        %1314 = vmatpush1.bf16.msra.mxu0 0
        %1315 = vmatprep.subr.bf16.mxu0 0
        %1316 = vmatpush1.bf16.msra.mxu0 %v1299
        %1317 = vmatprep.subr.bf16.mxu0 0
        %1318 = vmatpush2.bf16.msra.mxu0 0
        %1319 = vmatprep.subr.bf16.mxu0 0
        %1320 = vmatpush2.bf16.msra.mxu0 0
        %1321 = vmatprep.subr.bf16.mxu0 0
        %1322 = vmatpush2.bf16.msra.mxu0 0
        %1323 = vmatprep.subr.bf16.mxu0 0
        %1324 = vmatpush2.bf16.msra.mxu0 0
        %1325 = vmatprep.subr.bf16.mxu0 0
        %1326 = vmatpush2.bf16.msra.mxu0 0
        %1327 = vmatprep.subr.bf16.mxu0 0
        %1328 = vmatpush2.bf16.msra.mxu0 0
        %1329 = vmatprep.subr.bf16.mxu0 0
        %1330 = vmatpush2.bf16.msra.mxu0 0
        %1331 = vmatprep.subr.bf16.mxu0 0
        %1332 = vmatpush2.bf16.msra.mxu0 0
        %1333 = vmatprep.mubr.bf16.mxu0 0
        %1334 = vmatmul.mubr.bf16.gmra.mxu0 %v1296
        %v1335 = vpop.f32.mrf.mxu0
        %v1336 = vadd.f32 0.0, %v1335
        %v1337 = vpop.f32.mrf.mxu0
        %v1338 = vpop.f32.mrf.mxu0
        %v1339 = vpop.f32.mrf.mxu0
        %1340 = vdwg.mxu0
        %s1341 = scalar_lea.vmem %s615, 128
        %v1342 = vld [vmem:[%s1341] sm:$0xf]
        %v1343 = vld [vmem:[%s1341 + $0x4] sm:$0xf]
        %v1344 = vld [vmem:[%s1341 + $0x8] sm:$0xf]
        %v1345 = vld [vmem:[%s1341 + $0xc] sm:$0xf]
        %v1346 = vld [vmem:[%s1341 + $0x10] sm:$0xf]
        %v1347 = vld [vmem:[%s1341 + $0x14] sm:$0xf]
        %v1348 = vld [vmem:[%s1341 + $0x18] sm:$0xf]
        %v1349 = vld [vmem:[%s1341 + $0x1c] sm:$0xf]
        %v1350 = vld [vmem:[%s1341 + $0x20] sm:$0xf]
        %v1351 = vld [vmem:[%s1341 + $0x24] sm:$0xf]
        %v1352 = vld [vmem:[%s1341 + $0x28] sm:$0xf]
        %v1353 = vld [vmem:[%s1341 + $0x2c] sm:$0xf]
        %v1354 = vld [vmem:[%s1341 + $0x30] sm:$0xf]
        %v1355 = vld [vmem:[%s1341 + $0x34] sm:$0xf]
        %v1356 = vld [vmem:[%s1341 + $0x38] sm:$0xf]
        %v1357 = vld [vmem:[%s1341 + $0x3c] sm:$0xf]
        %v1374 = vunpack.c.l.b16 %v1342
        %v1375 = vunpack.c.l.b16 %v1343
        %v1376 = vunpack.c.l.b16 %v1344
        %v1377 = vunpack.c.l.b16 %v1345
        %v1378 = vunpack.c.l.b16 %v1346
        %v1379 = vunpack.c.l.b16 %v1347
        %v1380 = vunpack.c.l.b16 %v1348
        %v1381 = vunpack.c.l.b16 %v1349
        %v1382 = vunpack.c.l.b16 %v1350
        %v1383 = vunpack.c.l.b16 %v1351
        %v1384 = vunpack.c.l.b16 %v1352
        %v1385 = vunpack.c.l.b16 %v1353
        %v1386 = vunpack.c.l.b16 %v1354
        %v1387 = vunpack.c.l.b16 %v1355
        %v1388 = vunpack.c.l.b16 %v1356
        %v1389 = vunpack.c.l.b16 %v1357
        %v1390 = vpack.c.b16 %v1375, %v1374
        %v1391 = vpack.c.b16 %v1377, %v1376
        %v1392 = vpack.c.b16 %v1379, %v1378
        %v1393 = vpack.c.b16 %v1381, %v1380
        %v1394 = vpack.c.b16 %v1383, %v1382
        %v1395 = vpack.c.b16 %v1385, %v1384
        %v1396 = vpack.c.b16 %v1387, %v1386
        %v1397 = vpack.c.b16 %v1389, %v1388
        %1398 = vrot.lane.b32.xlu0 %v746, 80
        %v1399 = vpop.permute.xlu0 %1398
        %1400 = vrot.lane.b32.xlu0 %v746, 112
        %v1401 = vpop.permute.xlu0 %1400
        %v1403 = vsel %vm811, %v1401, 0
        %v1406 = vsel %vm811, %v1390, 0
        %v1409 = vsel %vm811, %v1391, 0
        %v1412 = vsel %vm811, %v1392, 0
        %v1415 = vsel %vm811, %v1393, 0
        %v1418 = vsel %vm811, %v1394, 0
        %v1421 = vsel %vm811, %v1395, 0
        %v1424 = vsel %vm811, %v1396, 0
        %v1427 = vsel %vm811, %v1397, 0
        %v1430 = vsel %vm811, %v1399, 0
        %1432 = vmatprep.subr.bf16.mxu0 0
        %1433 = vmatpush1.bf16.xpose.msra.mxu0 %v1427
        %1434 = vmatprep.subr.bf16.mxu0 0
        %1435 = vmatpush1.bf16.xpose.msra.mxu0 %v1424
        %1436 = vmatprep.subr.bf16.mxu0 0
        %1437 = vmatpush1.bf16.xpose.msra.mxu0 %v1421
        %1438 = vmatprep.subr.bf16.mxu0 0
        %1439 = vmatpush1.bf16.xpose.msra.mxu0 %v1418
        %1440 = vmatprep.subr.bf16.mxu0 0
        %1441 = vmatpush1.bf16.xpose.msra.mxu0 %v1415
        %1442 = vmatprep.subr.bf16.mxu0 0
        %1443 = vmatpush1.bf16.xpose.msra.mxu0 %v1412
        %1444 = vmatprep.subr.bf16.mxu0 0
        %1445 = vmatpush1.bf16.xpose.msra.mxu0 %v1409
        %1446 = vmatprep.subr.bf16.mxu0 0
        %1447 = vmatpush1.bf16.xpose.msra.mxu0 %v1406
        %1448 = vmatprep.subr.bf16.mxu0 0
        %1449 = vmatpush2.bf16.xpose.msra.mxu0 0
        %1450 = vmatprep.subr.bf16.mxu0 0
        %1451 = vmatpush2.bf16.xpose.msra.mxu0 0
        %1452 = vmatprep.subr.bf16.mxu0 0
        %1453 = vmatpush2.bf16.xpose.msra.mxu0 0
        %1454 = vmatprep.subr.bf16.mxu0 0
        %1455 = vmatpush2.bf16.xpose.msra.mxu0 0
        %1456 = vmatprep.subr.bf16.mxu0 0
        %1457 = vmatpush2.bf16.xpose.msra.mxu0 0
        %1458 = vmatprep.subr.bf16.mxu0 0
        %1459 = vmatpush2.bf16.xpose.msra.mxu0 0
        %1460 = vmatprep.subr.bf16.mxu0 0
        %1461 = vmatpush2.bf16.xpose.msra.mxu0 0
        %1462 = vmatprep.subr.bf16.mxu0 0
        %1463 = vmatpush2.bf16.xpose.msra.mxu0 %v1430
        %1464 = vmatprep.mubr.bf16.mxu0 0
        %1465 = vmatmul.mubr.bf16.gmra.mxu0 %v1403
        %v1466 = vpop.f32.mrf.mxu0
        %v1467 = vadd.f32 0.0, %v1466
        %v1468 = vpop.f32.mrf.mxu0
        %v1469 = vadd.f32 0.0, %v1468
        %v1470 = vpop.f32.mrf.mxu0
        %v1471 = vpop.f32.mrf.mxu0
        %1472 = vdwg.mxu0
        %v1473 = vmul.f32 %v1469, 0.35355338
        %1475 = vset.pattern.permute.xlu0 0
        %1476 = vperm.xlu0 %1475, %v1467
        %v1477 = vpop.permute.xlu0 %1476
        %v1479 = vsel %vm886, %v1477, 0.0
        %v1480 = vadd.f32 %v1479, 0.0
        %1481 = vset.pattern.permute.xlu0 1
        %1482 = vperm.xlu0 %1481, %v1467
        %v1483 = vpop.permute.xlu0 %1482
        %v1485 = vsel %vm894, %v1483, 0.0
        %v1486 = vadd.f32 %v1480, %v1485
        %1487 = vset.pattern.permute.xlu0 2
        %1488 = vperm.xlu0 %1487, %v1467
        %v1489 = vpop.permute.xlu0 %1488
        %v1491 = vsel %vm901, %v1489, 0.0
        %v1492 = vadd.f32 %v1486, %v1491
        %1493 = vset.pattern.permute.xlu0 3
        %1494 = vperm.xlu0 %1493, %v1467
        %v1495 = vpop.permute.xlu0 %1494
        %v1497 = vsel %vm908, %v1495, 0.0
        %v1498 = vadd.f32 %v1492, %v1497
        %1499 = vset.pattern.permute.xlu0 4
        %1500 = vperm.xlu0 %1499, %v1467
        %v1501 = vpop.permute.xlu0 %1500
        %v1503 = vsel %vm915, %v1501, 0.0
        %v1504 = vadd.f32 %v1498, %v1503
        %1505 = vset.pattern.permute.xlu0 5
        %1506 = vperm.xlu0 %1505, %v1467
        %v1507 = vpop.permute.xlu0 %1506
        %v1509 = vsel %vm922, %v1507, 0.0
        %v1510 = vadd.f32 %v1504, %v1509
        %1511 = vset.pattern.permute.xlu0 6
        %1512 = vperm.xlu0 %1511, %v1467
        %v1513 = vpop.permute.xlu0 %1512
        %v1515 = vsel %vm929, %v1513, 0.0
        %v1516 = vadd.f32 %v1510, %v1515
        %1517 = vset.pattern.permute.xlu0 7
        %1518 = vperm.xlu0 %1517, %v1467
        %v1519 = vpop.permute.xlu0 %1518
        %v1521 = vsel %vm936, %v1519, 0.0
        %v1522 = vadd.f32 %v1516, %v1521
        %1523 = vset.pattern.permute.xlu0 8
        %1524 = vperm.xlu0 %1523, %v1467
        %v1525 = vpop.permute.xlu0 %1524
        %v1527 = vsel %vm943, %v1525, 0.0
        %v1528 = vadd.f32 %v1522, %v1527
        %1529 = vset.pattern.permute.xlu0 9
        %1530 = vperm.xlu0 %1529, %v1467
        %v1531 = vpop.permute.xlu0 %1530
        %v1533 = vsel %vm950, %v1531, 0.0
        %v1534 = vadd.f32 %v1528, %v1533
        %1535 = vset.pattern.permute.xlu0 10
        %1536 = vperm.xlu0 %1535, %v1467
        %v1537 = vpop.permute.xlu0 %1536
        %v1539 = vsel %vm957, %v1537, 0.0
        %v1540 = vadd.f32 %v1534, %v1539
        %1541 = vset.pattern.permute.xlu0 11
        %1542 = vperm.xlu0 %1541, %v1467
        %v1543 = vpop.permute.xlu0 %1542
        %v1545 = vsel %vm964, %v1543, 0.0
        %v1546 = vadd.f32 %v1540, %v1545
        %1547 = vset.pattern.permute.xlu0 12
        %1548 = vperm.xlu0 %1547, %v1467
        %v1549 = vpop.permute.xlu0 %1548
        %v1551 = vsel %vm971, %v1549, 0.0
        %v1552 = vadd.f32 %v1546, %v1551
        %1553 = vset.pattern.permute.xlu0 13
        %1554 = vperm.xlu0 %1553, %v1467
        %v1555 = vpop.permute.xlu0 %1554
        %v1557 = vsel %vm978, %v1555, 0.0
        %v1558 = vadd.f32 %v1552, %v1557
        %1559 = vset.pattern.permute.xlu0 14
        %1560 = vperm.xlu0 %1559, %v1467
        %v1561 = vpop.permute.xlu0 %1560
        %v1563 = vsel %vm985, %v1561, 0.0
        %v1564 = vadd.f32 %v1558, %v1563
        %v1565 = vadd.f32 %v1473, %v1564
        %v1566 = vsel %vm751, %v1565, -inf
        %v1567 = vsel %vm811, %v1566, -inf
        %1568 = vmax.xlane.f32.xlu0 %v1567
        %v1569 = vpop.xlane.xlu0 %1568
        %v1570 = vsub.f32 %v1566, %v1569
        %v1571 = vmul.f32 %v1570, 1.442695
        %v1572 = vpow.pop %v1571
        %v1573 = vsel %vm811, %v1572, 0.0
        %1574 = vadd.xlane.f32.xlu0 %v1573
        %v1575 = vpop.xlane.xlu0 %1574
        %v1576 = vrcp.pop %v1575
        %v1577 = vmul.f32 %v1572, %v1576
        %v1578 = vpack.c.bf16 %v1577, %v1577
        %1579 = vrot.lane.b32.xlu0 %v746, 48
        %v1580 = vpop.permute.xlu0 %1579
        %v1582 = vsel %vm811, %v1578, 0
        %v1585 = vsel %vm1011, %v1580, 0
        %1587 = vmatprep.subr.bf16.mxu0 0
        %1588 = vmatpush1.bf16.msra.mxu0 0
        %1589 = vmatprep.subr.bf16.mxu0 0
        %1590 = vmatpush1.bf16.msra.mxu0 0
        %1591 = vmatprep.subr.bf16.mxu0 0
        %1592 = vmatpush1.bf16.msra.mxu0 0
        %1593 = vmatprep.subr.bf16.mxu0 0
        %1594 = vmatpush1.bf16.msra.mxu0 0
        %1595 = vmatprep.subr.bf16.mxu0 0
        %1596 = vmatpush1.bf16.msra.mxu0 0
        %1597 = vmatprep.subr.bf16.mxu0 0
        %1598 = vmatpush1.bf16.msra.mxu0 0
        %1599 = vmatprep.subr.bf16.mxu0 0
        %1600 = vmatpush1.bf16.msra.mxu0 0
        %1601 = vmatprep.subr.bf16.mxu0 0
        %1602 = vmatpush1.bf16.msra.mxu0 %v1585
        %1603 = vmatprep.subr.bf16.mxu0 0
        %1604 = vmatpush2.bf16.msra.mxu0 0
        %1605 = vmatprep.subr.bf16.mxu0 0
        %1606 = vmatpush2.bf16.msra.mxu0 0
        %1607 = vmatprep.subr.bf16.mxu0 0
        %1608 = vmatpush2.bf16.msra.mxu0 0
        %1609 = vmatprep.subr.bf16.mxu0 0
        %1610 = vmatpush2.bf16.msra.mxu0 0
        %1611 = vmatprep.subr.bf16.mxu0 0
        %1612 = vmatpush2.bf16.msra.mxu0 0
        %1613 = vmatprep.subr.bf16.mxu0 0
        %1614 = vmatpush2.bf16.msra.mxu0 0
        %1615 = vmatprep.subr.bf16.mxu0 0
        %1616 = vmatpush2.bf16.msra.mxu0 0
        %1617 = vmatprep.subr.bf16.mxu0 0
        %1618 = vmatpush2.bf16.msra.mxu0 0
        %1619 = vmatprep.mubr.bf16.mxu0 0
        %1620 = vmatmul.mubr.bf16.gmra.mxu0 %v1582
        %v1621 = vpop.f32.mrf.mxu0
        %v1622 = vadd.f32 0.0, %v1621
        %v1623 = vpop.f32.mrf.mxu0
        %v1624 = vpop.f32.mrf.mxu0
        %v1625 = vpop.f32.mrf.mxu0
        %1626 = vdwg.mxu0
        %s1627 = scalar_lea.vmem %s615, 192
        %v1628 = vld [vmem:[%s1627] sm:$0xf]
        %v1629 = vld [vmem:[%s1627 + $0x4] sm:$0xf]
        %v1630 = vld [vmem:[%s1627 + $0x8] sm:$0xf]
        %v1631 = vld [vmem:[%s1627 + $0xc] sm:$0xf]
        %v1632 = vld [vmem:[%s1627 + $0x10] sm:$0xf]
        %v1633 = vld [vmem:[%s1627 + $0x14] sm:$0xf]
        %v1634 = vld [vmem:[%s1627 + $0x18] sm:$0xf]
        %v1635 = vld [vmem:[%s1627 + $0x1c] sm:$0xf]
        %v1636 = vld [vmem:[%s1627 + $0x20] sm:$0xf]
        %v1637 = vld [vmem:[%s1627 + $0x24] sm:$0xf]
        %v1638 = vld [vmem:[%s1627 + $0x28] sm:$0xf]
        %v1639 = vld [vmem:[%s1627 + $0x2c] sm:$0xf]
        %v1640 = vld [vmem:[%s1627 + $0x30] sm:$0xf]
        %v1641 = vld [vmem:[%s1627 + $0x34] sm:$0xf]
        %v1642 = vld [vmem:[%s1627 + $0x38] sm:$0xf]
        %v1643 = vld [vmem:[%s1627 + $0x3c] sm:$0xf]
        %v1660 = vunpack.c.l.b16 %v1628
        %v1661 = vunpack.c.l.b16 %v1629
        %v1662 = vunpack.c.l.b16 %v1630
        %v1663 = vunpack.c.l.b16 %v1631
        %v1664 = vunpack.c.l.b16 %v1632
        %v1665 = vunpack.c.l.b16 %v1633
        %v1666 = vunpack.c.l.b16 %v1634
        %v1667 = vunpack.c.l.b16 %v1635
        %v1668 = vunpack.c.l.b16 %v1636
        %v1669 = vunpack.c.l.b16 %v1637
        %v1670 = vunpack.c.l.b16 %v1638
        %v1671 = vunpack.c.l.b16 %v1639
        %v1672 = vunpack.c.l.b16 %v1640
        %v1673 = vunpack.c.l.b16 %v1641
        %v1674 = vunpack.c.l.b16 %v1642
        %v1675 = vunpack.c.l.b16 %v1643
        %v1676 = vpack.c.b16 %v1661, %v1660
        %v1677 = vpack.c.b16 %v1663, %v1662
        %v1678 = vpack.c.b16 %v1665, %v1664
        %v1679 = vpack.c.b16 %v1667, %v1666
        %v1680 = vpack.c.b16 %v1669, %v1668
        %v1681 = vpack.c.b16 %v1671, %v1670
        %v1682 = vpack.c.b16 %v1673, %v1672
        %v1683 = vpack.c.b16 %v1675, %v1674
        %1684 = vrot.lane.b32.xlu0 %v746, 72
        %v1685 = vpop.permute.xlu0 %1684
        %1686 = vrot.lane.b32.xlu0 %v746, 104
        %v1687 = vpop.permute.xlu0 %1686
        %v1689 = vsel %vm811, %v1687, 0
        %v1692 = vsel %vm811, %v1676, 0
        %v1695 = vsel %vm811, %v1677, 0
        %v1698 = vsel %vm811, %v1678, 0
        %v1701 = vsel %vm811, %v1679, 0
        %v1704 = vsel %vm811, %v1680, 0
        %v1707 = vsel %vm811, %v1681, 0
        %v1710 = vsel %vm811, %v1682, 0
        %v1713 = vsel %vm811, %v1683, 0
        %v1716 = vsel %vm811, %v1685, 0
        %1718 = vmatprep.subr.bf16.mxu0 0
        %1719 = vmatpush1.bf16.xpose.msra.mxu0 %v1713
        %1720 = vmatprep.subr.bf16.mxu0 0
        %1721 = vmatpush1.bf16.xpose.msra.mxu0 %v1710
        %1722 = vmatprep.subr.bf16.mxu0 0
        %1723 = vmatpush1.bf16.xpose.msra.mxu0 %v1707
        %1724 = vmatprep.subr.bf16.mxu0 0
        %1725 = vmatpush1.bf16.xpose.msra.mxu0 %v1704
        %1726 = vmatprep.subr.bf16.mxu0 0
        %1727 = vmatpush1.bf16.xpose.msra.mxu0 %v1701
        %1728 = vmatprep.subr.bf16.mxu0 0
        %1729 = vmatpush1.bf16.xpose.msra.mxu0 %v1698
        %1730 = vmatprep.subr.bf16.mxu0 0
        %1731 = vmatpush1.bf16.xpose.msra.mxu0 %v1695
        %1732 = vmatprep.subr.bf16.mxu0 0
        %1733 = vmatpush1.bf16.xpose.msra.mxu0 %v1692
        %1734 = vmatprep.subr.bf16.mxu0 0
        %1735 = vmatpush2.bf16.xpose.msra.mxu0 0
        %1736 = vmatprep.subr.bf16.mxu0 0
        %1737 = vmatpush2.bf16.xpose.msra.mxu0 0
        %1738 = vmatprep.subr.bf16.mxu0 0
        %1739 = vmatpush2.bf16.xpose.msra.mxu0 0
        %1740 = vmatprep.subr.bf16.mxu0 0
        %1741 = vmatpush2.bf16.xpose.msra.mxu0 0
        %1742 = vmatprep.subr.bf16.mxu0 0
        %1743 = vmatpush2.bf16.xpose.msra.mxu0 0
        %1744 = vmatprep.subr.bf16.mxu0 0
        %1745 = vmatpush2.bf16.xpose.msra.mxu0 0
        %1746 = vmatprep.subr.bf16.mxu0 0
        %1747 = vmatpush2.bf16.xpose.msra.mxu0 0
        %1748 = vmatprep.subr.bf16.mxu0 0
        %1749 = vmatpush2.bf16.xpose.msra.mxu0 %v1716
        %1750 = vmatprep.mubr.bf16.mxu0 0
        %1751 = vmatmul.mubr.bf16.gmra.mxu0 %v1689
        %v1752 = vpop.f32.mrf.mxu0
        %v1753 = vadd.f32 0.0, %v1752
        %v1754 = vpop.f32.mrf.mxu0
        %v1755 = vadd.f32 0.0, %v1754
        %v1756 = vpop.f32.mrf.mxu0
        %v1757 = vpop.f32.mrf.mxu0
        %1758 = vdwg.mxu0
        %v1759 = vmul.f32 %v1755, 0.35355338
        %1761 = vset.pattern.permute.xlu0 0
        %1762 = vperm.xlu0 %1761, %v1753
        %v1763 = vpop.permute.xlu0 %1762
        %v1765 = vsel %vm886, %v1763, 0.0
        %v1766 = vadd.f32 %v1765, 0.0
        %1767 = vset.pattern.permute.xlu0 1
        %1768 = vperm.xlu0 %1767, %v1753
        %v1769 = vpop.permute.xlu0 %1768
        %v1771 = vsel %vm894, %v1769, 0.0
        %v1772 = vadd.f32 %v1766, %v1771
        %1773 = vset.pattern.permute.xlu0 2
        %1774 = vperm.xlu0 %1773, %v1753
        %v1775 = vpop.permute.xlu0 %1774
        %v1777 = vsel %vm901, %v1775, 0.0
        %v1778 = vadd.f32 %v1772, %v1777
        %1779 = vset.pattern.permute.xlu0 3
        %1780 = vperm.xlu0 %1779, %v1753
        %v1781 = vpop.permute.xlu0 %1780
        %v1783 = vsel %vm908, %v1781, 0.0
        %v1784 = vadd.f32 %v1778, %v1783
        %1785 = vset.pattern.permute.xlu0 4
        %1786 = vperm.xlu0 %1785, %v1753
        %v1787 = vpop.permute.xlu0 %1786
        %v1789 = vsel %vm915, %v1787, 0.0
        %v1790 = vadd.f32 %v1784, %v1789
        %1791 = vset.pattern.permute.xlu0 5
        %1792 = vperm.xlu0 %1791, %v1753
        %v1793 = vpop.permute.xlu0 %1792
        %v1795 = vsel %vm922, %v1793, 0.0
        %v1796 = vadd.f32 %v1790, %v1795
        %1797 = vset.pattern.permute.xlu0 6
        %1798 = vperm.xlu0 %1797, %v1753
        %v1799 = vpop.permute.xlu0 %1798
        %v1801 = vsel %vm929, %v1799, 0.0
        %v1802 = vadd.f32 %v1796, %v1801
        %1803 = vset.pattern.permute.xlu0 7
        %1804 = vperm.xlu0 %1803, %v1753
        %v1805 = vpop.permute.xlu0 %1804
        %v1807 = vsel %vm936, %v1805, 0.0
        %v1808 = vadd.f32 %v1802, %v1807
        %1809 = vset.pattern.permute.xlu0 8
        %1810 = vperm.xlu0 %1809, %v1753
        %v1811 = vpop.permute.xlu0 %1810
        %v1813 = vsel %vm943, %v1811, 0.0
        %v1814 = vadd.f32 %v1808, %v1813
        %1815 = vset.pattern.permute.xlu0 9
        %1816 = vperm.xlu0 %1815, %v1753
        %v1817 = vpop.permute.xlu0 %1816
        %v1819 = vsel %vm950, %v1817, 0.0
        %v1820 = vadd.f32 %v1814, %v1819
        %1821 = vset.pattern.permute.xlu0 10
        %1822 = vperm.xlu0 %1821, %v1753
        %v1823 = vpop.permute.xlu0 %1822
        %v1825 = vsel %vm957, %v1823, 0.0
        %v1826 = vadd.f32 %v1820, %v1825
        %1827 = vset.pattern.permute.xlu0 11
        %1828 = vperm.xlu0 %1827, %v1753
        %v1829 = vpop.permute.xlu0 %1828
        %v1831 = vsel %vm964, %v1829, 0.0
        %v1832 = vadd.f32 %v1826, %v1831
        %1833 = vset.pattern.permute.xlu0 12
        %1834 = vperm.xlu0 %1833, %v1753
        %v1835 = vpop.permute.xlu0 %1834
        %v1837 = vsel %vm971, %v1835, 0.0
        %v1838 = vadd.f32 %v1832, %v1837
        %1839 = vset.pattern.permute.xlu0 13
        %1840 = vperm.xlu0 %1839, %v1753
        %v1841 = vpop.permute.xlu0 %1840
        %v1843 = vsel %vm978, %v1841, 0.0
        %v1844 = vadd.f32 %v1838, %v1843
        %1845 = vset.pattern.permute.xlu0 14
        %1846 = vperm.xlu0 %1845, %v1753
        %v1847 = vpop.permute.xlu0 %1846
        %v1849 = vsel %vm985, %v1847, 0.0
        %v1850 = vadd.f32 %v1844, %v1849
        %v1851 = vadd.f32 %v1759, %v1850
        %v1852 = vsel %vm751, %v1851, -inf
        %v1853 = vsel %vm811, %v1852, -inf
        %1854 = vmax.xlane.f32.xlu0 %v1853
        %v1855 = vpop.xlane.xlu0 %1854
        %v1856 = vsub.f32 %v1852, %v1855
        %v1857 = vmul.f32 %v1856, 1.442695
        %v1858 = vpow.pop %v1857
        %v1859 = vsel %vm811, %v1858, 0.0
        %1860 = vadd.xlane.f32.xlu0 %v1859
        %v1861 = vpop.xlane.xlu0 %1860
        %v1862 = vrcp.pop %v1861
        %v1863 = vmul.f32 %v1858, %v1862
        %v1864 = vpack.c.bf16 %v1863, %v1863
        %1865 = vrot.lane.b32.xlu0 %v746, 40
        %v1866 = vpop.permute.xlu0 %1865
        %v1868 = vsel %vm811, %v1864, 0
        %v1871 = vsel %vm1011, %v1866, 0
        %1873 = vmatprep.subr.bf16.mxu0 0
        %1874 = vmatpush1.bf16.msra.mxu0 0
        %1875 = vmatprep.subr.bf16.mxu0 0
        %1876 = vmatpush1.bf16.msra.mxu0 0
        %1877 = vmatprep.subr.bf16.mxu0 0
        %1878 = vmatpush1.bf16.msra.mxu0 0
        %1879 = vmatprep.subr.bf16.mxu0 0
        %1880 = vmatpush1.bf16.msra.mxu0 0
        %1881 = vmatprep.subr.bf16.mxu0 0
        %1882 = vmatpush1.bf16.msra.mxu0 0
        %1883 = vmatprep.subr.bf16.mxu0 0
        %1884 = vmatpush1.bf16.msra.mxu0 0
        %1885 = vmatprep.subr.bf16.mxu0 0
        %1886 = vmatpush1.bf16.msra.mxu0 0
        %1887 = vmatprep.subr.bf16.mxu0 0
        %1888 = vmatpush1.bf16.msra.mxu0 %v1871
        %1889 = vmatprep.subr.bf16.mxu0 0
        %1890 = vmatpush2.bf16.msra.mxu0 0
        %1891 = vmatprep.subr.bf16.mxu0 0
        %1892 = vmatpush2.bf16.msra.mxu0 0
        %1893 = vmatprep.subr.bf16.mxu0 0
        %1894 = vmatpush2.bf16.msra.mxu0 0
        %1895 = vmatprep.subr.bf16.mxu0 0
        %1896 = vmatpush2.bf16.msra.mxu0 0
        %1897 = vmatprep.subr.bf16.mxu0 0
        %1898 = vmatpush2.bf16.msra.mxu0 0
        %1899 = vmatprep.subr.bf16.mxu0 0
        %1900 = vmatpush2.bf16.msra.mxu0 0
        %1901 = vmatprep.subr.bf16.mxu0 0
        %1902 = vmatpush2.bf16.msra.mxu0 0
        %1903 = vmatprep.subr.bf16.mxu0 0
        %1904 = vmatpush2.bf16.msra.mxu0 0
        %1905 = vmatprep.mubr.bf16.mxu0 0
        %1906 = vmatmul.mubr.bf16.gmra.mxu0 %v1868
        %v1907 = vpop.f32.mrf.mxu0
        %v1908 = vadd.f32 0.0, %v1907
        %v1909 = vpop.f32.mrf.mxu0
        %v1910 = vpop.f32.mrf.mxu0
        %v1911 = vpop.f32.mrf.mxu0
        %1912 = vdwg.mxu0
        %1914 = vrot.lane.b32.xlu0 %v1336, 8
        %v1915 = vpop.permute.xlu0 %1914
        %1918 = vrot.lane.b32.xlu0 %v1622, 16
        %v1919 = vpop.permute.xlu0 %1918
        %1922 = vrot.lane.b32.xlu0 %v1908, 24
        %v1923 = vpop.permute.xlu0 %1922
        %v1925 = vsel %vm811, %v1050, %v1915
        %vm1926 = vcmask 130048
        %v1927 = vsel %vm1926, %v1925, %v1919
        %vm1928 = vcmask 195584
        %v1929 = vsel %vm1928, %v1927, %v1923
        %v1930 = vpack.c.bf16 %v1929, %v1929
        %v1931 = vld [vmem:[%s620] sm:$0xf]
        %v1932 = vld [vmem:[%s620 + $0x4] sm:$0xf]
        %v1933 = vld [vmem:[%s620 + $0x8] sm:$0xf]
        %v1934 = vld [vmem:[%s620 + $0xc] sm:$0xf]
        %v1935 = vld [vmem:[%s623] sm:$0x1]
        %v1937 = vlaneseq
        %v1938 = vshrl.u32 %v1937, 7
        %v1939 = vsub.s32 0, %v1938
        %v1940 = vrot.slane %v1935, %v1939
        %v1946 = vunpack.c.l.b16 %v1931
        %v1947 = vunpack.c.l.b16 %v1932
        %v1948 = vunpack.c.l.b16 %v1933
        %v1949 = vunpack.c.l.b16 %v1934
        %v1950 = vpack.c.b16 %v1947, %v1946
        %v1951 = vpack.c.b16 %v1949, %v1948
        %v1955 = vsel %vm657, %v1930, 0
        %1957 = vmatprep.subr.bf16.mxu0 0
        %1958 = vmatpush1.bf16.msra.mxu0 0
        %1959 = vmatprep.subr.bf16.mxu0 0
        %1960 = vmatpush1.bf16.msra.mxu0 0
        %1961 = vmatprep.subr.bf16.mxu0 0
        %1962 = vmatpush1.bf16.msra.mxu0 0
        %1963 = vmatprep.subr.bf16.mxu0 0
        %1964 = vmatpush1.bf16.msra.mxu0 0
        %1965 = vmatprep.subr.bf16.mxu0 0
        %1966 = vmatpush1.bf16.msra.mxu0 0
        %1967 = vmatprep.subr.bf16.mxu0 0
        %1968 = vmatpush1.bf16.msra.mxu0 0
        %1969 = vmatprep.subr.bf16.mxu0 0
        %1970 = vmatpush1.bf16.msra.mxu0 %v1951
        %1971 = vmatprep.subr.bf16.mxu0 0
        %1972 = vmatpush1.bf16.msra.mxu0 %v1950
        %1973 = vmatprep.subr.bf16.mxu0 0
        %1974 = vmatpush2.bf16.msra.mxu0 0
        %1975 = vmatprep.subr.bf16.mxu0 0
        %1976 = vmatpush2.bf16.msra.mxu0 0
        %1977 = vmatprep.subr.bf16.mxu0 0
        %1978 = vmatpush2.bf16.msra.mxu0 0
        %1979 = vmatprep.subr.bf16.mxu0 0
        %1980 = vmatpush2.bf16.msra.mxu0 0
        %1981 = vmatprep.subr.bf16.mxu0 0
        %1982 = vmatpush2.bf16.msra.mxu0 0
        %1983 = vmatprep.subr.bf16.mxu0 0
        %1984 = vmatpush2.bf16.msra.mxu0 0
        %1985 = vmatprep.subr.bf16.mxu0 0
        %1986 = vmatpush2.bf16.msra.mxu0 0
        %1987 = vmatprep.subr.bf16.mxu0 0
        %1988 = vmatpush2.bf16.msra.mxu0 0
        %1989 = vmatprep.mubr.bf16.mxu0 0
        %1990 = vmatmul.mubr.bf16.gmra.mxu0 %v1955
        %v1991 = vpop.f32.mrf.mxu0
        %v1992 = vadd.f32 %v1940, %v1991
        %v1993 = vpop.f32.mrf.mxu0
        %v1994 = vpop.f32.mrf.mxu0
        %v1995 = vpop.f32.mrf.mxu0
        %1996 = vdwg.mxu0
        %v1997 = vadd.f32 %v654, %v1992
        %v1998 = vld [vmem:[%s626] sm:$0x1]
        %v1999 = vld [vmem:[%s629] sm:$0x1]
        %v2000 = vsel %vm657, %v1997, 0.0
        %2001 = vadd.xlane.f32.xlu0 %v2000
        %v2002 = vpop.xlane.xlu0 %2001
        %v2003 = vmul.f32 %v2002, %v661
        %v2004 = vsub.f32 %v1997, %v2003
        %v2005 = vmul.f32 %v2004, %v2004
        %v2006 = vsel %vm657, %v2005, 0.0
        %2007 = vadd.xlane.f32.xlu0 %v2006
        %v2008 = vpop.xlane.xlu0 %2007
        %v2009 = vmul.f32 %v2008, %v661
        %v2010 = vadd.f32 %v2009, 1e-05
        %v2011 = vrsqrt.pop %v2010
        %v2012 = vmul.f32 %v2004, %v2011
        %v2014 = vlaneseq
        %v2015 = vshrl.u32 %v2014, 7
        %v2016 = vsub.s32 0, %v2015
        %v2017 = vrot.slane %v1998, %v2016
        %v2019 = vmul.f32 %v2012, %v2017
        %v2021 = vlaneseq
        %v2022 = vshrl.u32 %v2021, 7
        %v2023 = vsub.s32 0, %v2022
        %v2024 = vrot.slane %v1999, %v2023
        %v2026 = vadd.f32 %v2019, %v2024
        %v2027 = vpack.c.bf16 %v2026, %v2026
        %v2028 = vld [vmem:[%s634] sm:$0xf]
        %v2029 = vld [vmem:[%s634 + $0x4] sm:$0xf]
        %v2030 = vld [vmem:[%s634 + $0x8] sm:$0xf]
        %v2031 = vld [vmem:[%s634 + $0xc] sm:$0xf]
        %v2032 = vld [vmem:[%s637] sm:$0x1]
        %v2034 = vlaneseq
        %v2035 = vshrl.u32 %v2034, 7
        %v2036 = vsub.s32 0, %v2035
        %v2037 = vrot.slane %v2032, %v2036
        %v2043 = vunpack.c.l.b16 %v2028
        %v2044 = vunpack.c.l.b16 %v2029
        %v2045 = vunpack.c.l.b16 %v2030
        %v2046 = vunpack.c.l.b16 %v2031
        %v2047 = vpack.c.b16 %v2044, %v2043
        %v2048 = vpack.c.b16 %v2046, %v2045
        %v2052 = vsel %vm657, %v2027, 0
        %2054 = vmatprep.subr.bf16.mxu0 0
        %2055 = vmatpush1.bf16.msra.mxu0 0
        %2056 = vmatprep.subr.bf16.mxu0 0
        %2057 = vmatpush1.bf16.msra.mxu0 0
        %2058 = vmatprep.subr.bf16.mxu0 0
        %2059 = vmatpush1.bf16.msra.mxu0 0
        %2060 = vmatprep.subr.bf16.mxu0 0
        %2061 = vmatpush1.bf16.msra.mxu0 0
        %2062 = vmatprep.subr.bf16.mxu0 0
        %2063 = vmatpush1.bf16.msra.mxu0 0
        %2064 = vmatprep.subr.bf16.mxu0 0
        %2065 = vmatpush1.bf16.msra.mxu0 0
        %2066 = vmatprep.subr.bf16.mxu0 0
        %2067 = vmatpush1.bf16.msra.mxu0 %v2048
        %2068 = vmatprep.subr.bf16.mxu0 0
        %2069 = vmatpush1.bf16.msra.mxu0 %v2047
        %2070 = vmatprep.subr.bf16.mxu0 0
        %2071 = vmatpush2.bf16.msra.mxu0 0
        %2072 = vmatprep.subr.bf16.mxu0 0
        %2073 = vmatpush2.bf16.msra.mxu0 0
        %2074 = vmatprep.subr.bf16.mxu0 0
        %2075 = vmatpush2.bf16.msra.mxu0 0
        %2076 = vmatprep.subr.bf16.mxu0 0
        %2077 = vmatpush2.bf16.msra.mxu0 0
        %2078 = vmatprep.subr.bf16.mxu0 0
        %2079 = vmatpush2.bf16.msra.mxu0 0
        %2080 = vmatprep.subr.bf16.mxu0 0
        %2081 = vmatpush2.bf16.msra.mxu0 0
        %2082 = vmatprep.subr.bf16.mxu0 0
        %2083 = vmatpush2.bf16.msra.mxu0 0
        %2084 = vmatprep.subr.bf16.mxu0 0
        %2085 = vmatpush2.bf16.msra.mxu0 0
        %2086 = vmatprep.mubr.bf16.mxu0 0
        %2087 = vmatmul.mubr.bf16.gmra.mxu0 %v2052
        %v2088 = vpop.f32.mrf.mxu0
        %v2089 = vadd.f32 %v2037, %v2088
        %v2090 = vpop.f32.mrf.mxu0
        %v2091 = vpop.f32.mrf.mxu0
        %v2092 = vpop.f32.mrf.mxu0
        %2093 = vdwg.mxu0
        %v2094 = vmax.f32 %v2089, 0.0
        %v2095 = vpack.c.bf16 %v2094, %v2094
        %v2096 = vld [vmem:[%s642] sm:$0xf]
        %v2097 = vld [vmem:[%s642 + $0x4] sm:$0xf]
        %v2098 = vld [vmem:[%s642 + $0x8] sm:$0xf]
        %v2099 = vld [vmem:[%s642 + $0xc] sm:$0xf]
        %v2100 = vld [vmem:[%s642 + $0x10] sm:$0xf]
        %v2101 = vld [vmem:[%s642 + $0x14] sm:$0xf]
        %v2102 = vld [vmem:[%s642 + $0x18] sm:$0xf]
        %v2103 = vld [vmem:[%s642 + $0x1c] sm:$0xf]
        %v2104 = vld [vmem:[%s642 + $0x20] sm:$0xf]
        %v2105 = vld [vmem:[%s642 + $0x24] sm:$0xf]
        %v2106 = vld [vmem:[%s642 + $0x28] sm:$0xf]
        %v2107 = vld [vmem:[%s642 + $0x2c] sm:$0xf]
        %v2108 = vld [vmem:[%s642 + $0x30] sm:$0xf]
        %v2109 = vld [vmem:[%s642 + $0x34] sm:$0xf]
        %v2110 = vld [vmem:[%s642 + $0x38] sm:$0xf]
        %v2111 = vld [vmem:[%s642 + $0x3c] sm:$0xf]
        %v2112 = vld [vmem:[%s645] sm:$0x1]
        %v2114 = vlaneseq
        %v2115 = vshrl.u32 %v2114, 7
        %v2116 = vsub.s32 0, %v2115
        %v2117 = vrot.slane %v2112, %v2116
        %v2135 = vunpack.c.l.b16 %v2096
        %v2136 = vunpack.c.l.b16 %v2097
        %v2137 = vunpack.c.l.b16 %v2098
        %v2138 = vunpack.c.l.b16 %v2099
        %v2139 = vunpack.c.l.b16 %v2100
        %v2140 = vunpack.c.l.b16 %v2101
        %v2141 = vunpack.c.l.b16 %v2102
        %v2142 = vunpack.c.l.b16 %v2103
        %v2143 = vunpack.c.l.b16 %v2104
        %v2144 = vunpack.c.l.b16 %v2105
        %v2145 = vunpack.c.l.b16 %v2106
        %v2146 = vunpack.c.l.b16 %v2107
        %v2147 = vunpack.c.l.b16 %v2108
        %v2148 = vunpack.c.l.b16 %v2109
        %v2149 = vunpack.c.l.b16 %v2110
        %v2150 = vunpack.c.l.b16 %v2111
        %v2151 = vpack.c.b16 %v2136, %v2135
        %v2152 = vpack.c.b16 %v2138, %v2137
        %v2153 = vpack.c.b16 %v2140, %v2139
        %v2154 = vpack.c.b16 %v2142, %v2141
        %v2155 = vpack.c.b16 %v2144, %v2143
        %v2156 = vpack.c.b16 %v2146, %v2145
        %v2157 = vpack.c.b16 %v2148, %v2147
        %v2158 = vpack.c.b16 %v2150, %v2149
        %2167 = vmatprep.subr.bf16.mxu0 0
        %2168 = vmatpush1.bf16.msra.mxu0 %v2158
        %2169 = vmatprep.subr.bf16.mxu0 0
        %2170 = vmatpush1.bf16.msra.mxu0 %v2157
        %2171 = vmatprep.subr.bf16.mxu0 0
        %2172 = vmatpush1.bf16.msra.mxu0 %v2156
        %2173 = vmatprep.subr.bf16.mxu0 0
        %2174 = vmatpush1.bf16.msra.mxu0 %v2155
        %2175 = vmatprep.subr.bf16.mxu0 0
        %2176 = vmatpush1.bf16.msra.mxu0 %v2154
        %2177 = vmatprep.subr.bf16.mxu0 0
        %2178 = vmatpush1.bf16.msra.mxu0 %v2153
        %2179 = vmatprep.subr.bf16.mxu0 0
        %2180 = vmatpush1.bf16.msra.mxu0 %v2152
        %2181 = vmatprep.subr.bf16.mxu0 0
        %2182 = vmatpush1.bf16.msra.mxu0 %v2151
        %2183 = vmatprep.subr.bf16.mxu0 0
        %2184 = vmatpush2.bf16.msra.mxu0 0
        %2185 = vmatprep.subr.bf16.mxu0 0
        %2186 = vmatpush2.bf16.msra.mxu0 0
        %2187 = vmatprep.subr.bf16.mxu0 0
        %2188 = vmatpush2.bf16.msra.mxu0 0
        %2189 = vmatprep.subr.bf16.mxu0 0
        %2190 = vmatpush2.bf16.msra.mxu0 0
        %2191 = vmatprep.subr.bf16.mxu0 0
        %2192 = vmatpush2.bf16.msra.mxu0 0
        %2193 = vmatprep.subr.bf16.mxu0 0
        %2194 = vmatpush2.bf16.msra.mxu0 0
        %2195 = vmatprep.subr.bf16.mxu0 0
        %2196 = vmatpush2.bf16.msra.mxu0 0
        %2197 = vmatprep.subr.bf16.mxu0 0
        %2198 = vmatpush2.bf16.msra.mxu0 0
        %2199 = vmatprep.mubr.bf16.mxu0 0
        %2200 = vmatmul.mubr.bf16.gmra.mxu0 %v2095
        %v2201 = vpop.f32.mrf.mxu0
        %v2202 = vadd.f32 %v2117, %v2201
        %v2203 = vpop.f32.mrf.mxu0
        %v2204 = vpop.f32.mrf.mxu0
        %v2205 = vpop.f32.mrf.mxu0
        %2206 = vdwg.mxu0
        %v2207 = vadd.f32 %v1997, %v2202
        %2208 = vst.msk [vmem:[%s595] sm:$0xff] %vm657, %v2207
        %s2209 = sand.u32 %s385, 1
        %s2210 = scalar_lea.sflag [#allocation3], %s2209
        %s2211 = sand.u32 %s385, 1
        %s2212 = smul.addr %s2211, 8
        %s2213 = scalar_lea.vmem [#allocation2], %s2212
        // Predicated region
        $region77: #{tpu_custom_call.1} parent=71 // pred_check
          %p2214 = pneg %p395
        $region78: #{tpu_custom_call.1} parent=71 // pred_check_branch
          %2216 = sbr.rel (%p2214) target = $region80
        $region79: #{tpu_custom_call.1} parent=71 // pred_region
          %s2218 = ssub.s32 128, 128
          %2219 = vsyncadd %s2210, %s2218
          %s2220 = smul.addr %s31, 128
          %s2221 = scalar_lea.hbm %s13, %s2220
          %s2223 = sshll.u32 %s2213, 4
          %s2224 = int_to_ptr.vmem [resolvable:$true] %s2223
          %2226 = dma.vmem_to_hbm [thread:$0]  %s2224, 128, %s2221, %s2210
        $region80: #{tpu_custom_call.1} parent=71 // pred_fallthru
          _
      $region72: #{tpu_custom_call.1} parent=5 // pred_fallthru
        _
      %p2227 = scmp.le.s32.totalorder 2, %s22
      // Predicated region
      $region81: #{tpu_custom_call.1} parent=5 // pred_check
        %p2228 = pneg %p2227
      $region82: #{tpu_custom_call.1} parent=5 // pred_check_branch
        %2230 = sbr.rel (%p2228) target = $region84
      $region83: #{tpu_custom_call.1} parent=5 // pred_region
        %s2231 = ssub.s32 %s22, 2
        // Predicated region
        $region85: #{tpu_custom_call.1} parent=83 // pred_check
          %p2232 = pneg %p401
        $region86: #{tpu_custom_call.1} parent=83 // pred_check_branch
          %2234 = sbr.rel (%p2232) target = $region88
        $region87: #{tpu_custom_call.1} parent=83 // pred_region
          %s2235 = sand.u32 %s386, 1
          %s2236 = scalar_lea.sflag [#allocation3], %s2235
          %s2237 = sand.u32 %s386, 1
          %s2238 = smul.addr %s2237, 8
          %s2239 = scalar_lea.vmem [#allocation2], %s2238
          %2240 = dma.done %s2236, 128
        $region88: #{tpu_custom_call.1} parent=83 // pred_fallthru
          _
      $region84: #{tpu_custom_call.1} parent=5 // pred_fallthru
        _
    $region6: #{tpu_custom_call.1} parent=1 // loop_footer
      %s26 = sadd.s32 1, %s22
    $region7: #{tpu_custom_call.1} parent=1 // loop_footer_branch
      %21 = sbr.rel target = $region3
    $region8: #{tpu_custom_call.1} parent=1 // loop_exit
      _
    %2241 = vsyncpa [#allocation3], 1
    %s2242 = scalar_lea.sflag [#allocation3], 1
    %2243 = vsyncpa %s2242, 1

</llo_original>
